<compile_context>
chip_gen: v7x
topology: tpu7x:2x2x1
jax: 0.10.0
libtpu: 0.0.40
codegen_flags: <defaults>
</compile_context>

<pallas_src>
import jax
import jax.numpy as jnp
from jax.experimental import pallas as pl
from jax.experimental.pallas import tpu as pltpu

# ----------------------- synthetic BERT config -----------------------
HIDDEN = 32
NUM_HEADS = 2
HEAD_DIM = HIDDEN // NUM_HEADS
INTERMEDIATE = 64
NUM_LAYERS = 2
VOCAB = 100
MAX_POS = 16
NUM_LABELS = 2
NPAD = 128           # lane-dense padded classifier output width
LN_EPS = 1e-12
BN_EPS = 1e-5


# --------------------------- in-kernel helpers ---------------------------

def _layernorm(x, gb, eps):
    # x: (M, H); gb: (2, H) rows = [gamma, beta]
    g = gb[0:1, :]
    b = gb[1:2, :]
    mean = jnp.mean(x, axis=-1, keepdims=True)
    xc = x - mean
    var = jnp.mean(xc * xc, axis=-1, keepdims=True)
    return xc * jax.lax.rsqrt(var + eps) * g + b


def _gelu(x):
    # tanh-approximate GELU (EUP tanh)
    return 0.5 * x * (1.0 + jnp.tanh(0.7978845608028654 * (x + 0.044715 * x * x * x)))


# ------------------------------ fused kernel ------------------------------

def _fused_forward_kernel(x_ref, mask_ref, emb_ln_ref,
                          wqkv_ref, bqkv_ref, wo_ref, bo_ref, ln1_ref,
                          w1_ref, b1_ref, w2_ref, b2_ref, ln2_ref,
                          pool_w_ref, pool_b_ref, bn_ref, fc_w_ref, fc_b_ref,
                          o_ref):
    S, H, dh = x_ref.shape[1], HIDDEN, HEAD_DIM
    scale = 1.0 / float(dh) ** 0.5

    x = x_ref[0]                                   # (S, H)  summed embeddings
    mask = mask_ref[0]                             # (1, S)
    bias = (1.0 - mask) * -10000.0                 # additive attention bias

    # embeddings LayerNorm
    h = _layernorm(x, emb_ln_ref[...], LN_EPS)

    for l in range(NUM_LAYERS):
        # ---- fused QKV projection: one MXU pass for q|k|v ----
        qkv = jnp.dot(h, wqkv_ref[l], preferred_element_type=jnp.float32) + bqkv_ref[l]
        wo_l = wo_ref[l]                           # (H, H)

        # ---- attention, per head; output projection folded into the loop ----
        acc = None
        for hd in range(NUM_HEADS):
            qh = qkv[:, hd * dh:(hd + 1) * dh]                 # (S, dh)
            kh = qkv[:, H + hd * dh:H + (hd + 1) * dh]         # (S, dh)
            vh = qkv[:, 2 * H + hd * dh:2 * H + (hd + 1) * dh]  # (S, dh)
            s = jnp.dot(qh, kh.T, preferred_element_type=jnp.float32) * scale + bias
            s = s - jnp.max(s, axis=-1, keepdims=True)
            p = jnp.exp(s)
            p = p * pl.reciprocal(jnp.sum(p, axis=-1, keepdims=True), approx=True)
            ctx_h = jnp.dot(p, vh, preferred_element_type=jnp.float32)   # (S, dh)
            # ctx @ wo  ==  sum_h ctx_h @ wo[h*dh:(h+1)*dh, :]
            part = jnp.dot(ctx_h, wo_l[hd * dh:(hd + 1) * dh, :],
                           preferred_element_type=jnp.float32)
            acc = part if acc is None else acc + part
        attn_out = acc + bo_ref[l]

        # ---- residual + LN1 ----
        h = _layernorm(attn_out + h, ln1_ref[l], LN_EPS)

        # ---- FFN + residual + LN2 ----
        ff = jnp.dot(h, w1_ref[l], preferred_element_type=jnp.float32) + b1_ref[l]
        ff = _gelu(ff)
        ff = jnp.dot(ff, w2_ref[l], preferred_element_type=jnp.float32) + b2_ref[l]
        h = _layernorm(ff + h, ln2_ref[l], LN_EPS)

    # ---- pooler: dense + tanh on [CLS] token ----
    cls = h[0:1, :]                                                # (1, H)
    pooled = jnp.tanh(jnp.dot(cls, pool_w_ref[...],
                              preferred_element_type=jnp.float32) + pool_b_ref[...])

    # ---- BatchNorm1d (eval, running stats) + classifier ----
    bn = bn_ref[...]                                               # (4, H): rm, rv, g, b
    xn = (pooled - bn[0:1]) * jax.lax.rsqrt(bn[1:2] + BN_EPS) * bn[2:3] + bn[3:4]
    logits = jnp.dot(xn, fc_w_ref[...], preferred_element_type=jnp.float32) + fc_b_ref[...]
    o_ref[0] = logits                                              # (1, NPAD) lane-dense store


# -------------------------- parameter setup --------------------------

def init_params(key):
    std = 0.02
    H, I, L = HIDDEN, INTERMEDIATE, NUM_LAYERS

    def nrm(k, shape):
        return std * jax.random.normal(k, shape, dtype=jnp.float32)

    keys = iter(jax.random.split(key, 64))
    ones_zeros = jnp.stack([jnp.ones((H,), jnp.float32), jnp.zeros((H,), jnp.float32)])  # (2, H)

    p = {
        "word_emb": nrm(next(keys), (VOCAB, H)),
        "pos_emb": nrm(next(keys), (MAX_POS, H)),
        "type_emb": nrm(next(keys), (2, H)),
        "emb_ln": ones_zeros,                                      # (2, H) = [gamma; beta]
        # per-layer stacked weights (fused QKV)
        "wqkv": nrm(next(keys), (L, H, 3 * H)),
        "bqkv": jnp.zeros((L, 1, 3 * H), jnp.float32),
        "wo":   nrm(next(keys), (L, H, H)),
        "bo":   jnp.zeros((L, 1, H), jnp.float32),
        "ln1":  jnp.tile(ones_zeros[None], (L, 1, 1)),             # (L, 2, H)
        "w1":   nrm(next(keys), (L, H, I)),
        "b1":   jnp.zeros((L, 1, I), jnp.float32),
        "w2":   nrm(next(keys), (L, I, H)),
        "b2":   jnp.zeros((L, 1, H), jnp.float32),
        "ln2":  jnp.tile(ones_zeros[None], (L, 1, 1)),             # (L, 2, H)
        "pool_w": nrm(next(keys), (H, H)),
        "pool_b": jnp.zeros((1, H), jnp.float32),
        # BatchNorm1d defaults: running_mean=0, running_var=1, weight=1, bias=0
        "bn": jnp.stack([jnp.zeros((H,), jnp.float32), jnp.ones((H,), jnp.float32),
                         jnp.ones((H,), jnp.float32), jnp.zeros((H,), jnp.float32)]),
        # classifier, zero-padded to a lane-dense 128-wide output slab
        "fc_w": jnp.concatenate([nrm(next(keys), (H, NUM_LABELS)),
                                 jnp.zeros((H, NPAD - NUM_LABELS), jnp.float32)], axis=1),
        "fc_b": jnp.zeros((1, NPAD), jnp.float32),
    }
    return p


# ---------------------------- forward pass ----------------------------

def model_forward(params, input_ids, attention_mask):
    B, S = input_ids.shape
    H, I, L = HIDDEN, INTERMEDIATE, NUM_LAYERS

    # --- embeddings (table gathers are glue; everything else is in-kernel) ---
    we = params["word_emb"][input_ids]                      # (B, S, H)
    pe = params["pos_emb"][:S][None, :, :]                  # (1, S, H)
    te = params["type_emb"][0][None, None, :]               # token_type_ids = 0
    x = (we + pe + te).astype(jnp.float32)                  # (B, S, H)
    mask = attention_mask.astype(jnp.float32).reshape(B, 1, S)

    const3 = lambda b: (0, 0, 0)
    const2 = lambda b: (0, 0)

    out = pl.pallas_call(
        _fused_forward_kernel,
        out_shape=jax.ShapeDtypeStruct((B, 1, NPAD), jnp.float32),
        grid=(B,),
        in_specs=[
            pl.BlockSpec((1, S, H), lambda b: (b, 0, 0)),            # x (per-batch)
            pl.BlockSpec((1, 1, S), lambda b: (b, 0, 0)),            # attention mask
            pl.BlockSpec((2, H), const2),                            # emb LN
            pl.BlockSpec((L, H, 3 * H), const3),                     # wqkv
            pl.BlockSpec((L, 1, 3 * H), const3),                     # bqkv
            pl.BlockSpec((L, H, H), const3),                         # wo
            pl.BlockSpec((L, 1, H), const3),                         # bo
            pl.BlockSpec((L, 2, H), const3),                         # ln1
            pl.BlockSpec((L, H, I), const3),                         # w1
            pl.BlockSpec((L, 1, I), const3),                         # b1
            pl.BlockSpec((L, I, H), const3),                         # w2
            pl.BlockSpec((L, 1, H), const3),                         # b2
            pl.BlockSpec((L, 2, H), const3),                         # ln2
            pl.BlockSpec((H, H), const2),                            # pool_w
            pl.BlockSpec((1, H), const2),                            # pool_b
            pl.BlockSpec((4, H), const2),                            # bn (rm, rv, g, b)
            pl.BlockSpec((H, NPAD), const2),                         # fc_w (padded)
            pl.BlockSpec((1, NPAD), const2),                         # fc_b (padded)
        ],
        out_specs=pl.BlockSpec((1, 1, NPAD), lambda b: (b, 0, 0)),
        compiler_params=pltpu.CompilerParams(dimension_semantics=("parallel",)),
    )(x, mask, params["emb_ln"],
      params["wqkv"], params["bqkv"], params["wo"], params["bo"], params["ln1"],
      params["w1"], params["b1"], params["w2"], params["b2"], params["ln2"],
      params["pool_w"], params["pool_b"], params["bn"],
      params["fc_w"], params["fc_b"])

    return out.reshape(B, NPAD)[:, :NUM_LABELS]               # (B, NUM_LABELS)


# -------------------------------- main --------------------------------

if __name__ == "__main__":
    key = jax.random.PRNGKey(0)
    k_param, k_ids = jax.random.split(key)

    params = init_params(k_param)

    B, S = 2, 8
    input_ids = jax.random.randint(k_ids, (B, S), 0, VOCAB, dtype=jnp.int32)
    attention_mask = jnp.array([[1, 1, 1, 1, 1, 1, 1, 1],
                                [1, 1, 1, 1, 1, 0, 0, 0]], dtype=jnp.int32)

    logits = jax.jit(model_forward)(params, input_ids, attention_mask)
    logits = jax.block_until_ready(logits)
    assert logits.shape == (B, NUM_LABELS)
    assert bool(jnp.all(jnp.isfinite(logits)))
    print("KERNEL_OK")
</pallas_src>

<mosaic_0001>
module attributes {stable_mosaic.version = 11 : i64} {
  func.func @_fused_forward_kernel(%arg0: i32, %arg1: memref<1x8x32xf32, #tpu.memory_space<vmem>>, %arg2: memref<1x1x8xf32, #tpu.memory_space<vmem>>, %arg3: memref<2x32xf32, #tpu.memory_space<vmem>>, %arg4: memref<2x32x96xf32, #tpu.memory_space<vmem>>, %arg5: memref<2x1x96xf32, #tpu.memory_space<vmem>>, %arg6: memref<2x32x32xf32, #tpu.memory_space<vmem>>, %arg7: memref<2x1x32xf32, #tpu.memory_space<vmem>>, %arg8: memref<2x2x32xf32, #tpu.memory_space<vmem>>, %arg9: memref<2x32x64xf32, #tpu.memory_space<vmem>>, %arg10: memref<2x1x64xf32, #tpu.memory_space<vmem>>, %arg11: memref<2x64x32xf32, #tpu.memory_space<vmem>>, %arg12: memref<2x1x32xf32, #tpu.memory_space<vmem>>, %arg13: memref<2x2x32xf32, #tpu.memory_space<vmem>>, %arg14: memref<32x32xf32, #tpu.memory_space<vmem>>, %arg15: memref<1x32xf32, #tpu.memory_space<vmem>>, %arg16: memref<4x32xf32, #tpu.memory_space<vmem>>, %arg17: memref<32x128xf32, #tpu.memory_space<vmem>>, %arg18: memref<1x128xf32, #tpu.memory_space<vmem>>, %arg19: memref<1x1x128xf32, #tpu.memory_space<vmem>>) attributes {dimension_semantics = [#tpu.dimension_semantics<parallel>], iteration_bounds = array<i64: 2>, scalar_prefetch = 0 : i64, scratch_operands = 0 : i64, tpu.core_type = #tpu.core_type<tc>, window_params = [{transform_indices = @transform_0, window_bounds = array<i64: 1, 8, 32>}, {transform_indices = @transform_1, window_bounds = array<i64: 1, 1, 8>}, {pipeline_mode = #tpu.pipeline_mode<synchronous>, transform_indices = @transform_2, window_bounds = array<i64: 2, 32>}, {pipeline_mode = #tpu.pipeline_mode<synchronous>, transform_indices = @transform_3, window_bounds = array<i64: 2, 32, 96>}, {pipeline_mode = #tpu.pipeline_mode<synchronous>, transform_indices = @transform_4, window_bounds = array<i64: 2, 1, 96>}, {pipeline_mode = #tpu.pipeline_mode<synchronous>, transform_indices = @transform_5, window_bounds = array<i64: 2, 32, 32>}, {pipeline_mode = #tpu.pipeline_mode<synchronous>, transform_indices = @transform_6, window_bounds = array<i64: 2, 1, 32>}, {pipeline_mode = #tpu.pipeline_mode<synchronous>, transform_indices = @transform_7, window_bounds = array<i64: 2, 2, 32>}, {pipeline_mode = #tpu.pipeline_mode<synchronous>, transform_indices = @transform_8, window_bounds = array<i64: 2, 32, 64>}, {pipeline_mode = #tpu.pipeline_mode<synchronous>, transform_indices = @transform_9, window_bounds = array<i64: 2, 1, 64>}, {pipeline_mode = #tpu.pipeline_mode<synchronous>, transform_indices = @transform_10, window_bounds = array<i64: 2, 64, 32>}, {pipeline_mode = #tpu.pipeline_mode<synchronous>, transform_indices = @transform_11, window_bounds = array<i64: 2, 1, 32>}, {pipeline_mode = #tpu.pipeline_mode<synchronous>, transform_indices = @transform_12, window_bounds = array<i64: 2, 2, 32>}, {pipeline_mode = #tpu.pipeline_mode<synchronous>, transform_indices = @transform_13, window_bounds = array<i64: 32, 32>}, {pipeline_mode = #tpu.pipeline_mode<synchronous>, transform_indices = @transform_14, window_bounds = array<i64: 1, 32>}, {pipeline_mode = #tpu.pipeline_mode<synchronous>, transform_indices = @transform_15, window_bounds = array<i64: 4, 32>}, {pipeline_mode = #tpu.pipeline_mode<synchronous>, transform_indices = @transform_16, window_bounds = array<i64: 32, 128>}, {pipeline_mode = #tpu.pipeline_mode<synchronous>, transform_indices = @transform_17, window_bounds = array<i64: 1, 128>}, {transform_indices = @transform_18, window_bounds = array<i64: 1, 1, 128>}]} {
    %c0 = arith.constant 0 : index
    %c0_0 = arith.constant 0 : index
    %c0_1 = arith.constant 0 : index
    %0 = vector.load %arg1[%c0, %c0_0, %c0_1] : memref<1x8x32xf32, #tpu.memory_space<vmem>>, vector<1x8x32xf32>
    %1 = vector.shape_cast %0 : vector<1x8x32xf32> to vector<8x32xf32>
    %c0_2 = arith.constant 0 : index
    %c0_3 = arith.constant 0 : index
    %c0_4 = arith.constant 0 : index
    %2 = vector.load %arg2[%c0_2, %c0_3, %c0_4] : memref<1x1x8xf32, #tpu.memory_space<vmem>>, vector<1x1x8xf32>
    %3 = vector.shape_cast %2 : vector<1x1x8xf32> to vector<1x8xf32>
    %cst = arith.constant 1.000000e+00 : f32
    %4 = vector.broadcast %cst : f32 to vector<1x8xf32>
    %5 = arith.subf %4, %3 : vector<1x8xf32>
    %cst_5 = arith.constant -1.000000e+04 : f32
    %6 = vector.broadcast %cst_5 : f32 to vector<1x8xf32>
    %7 = arith.mulf %5, %6 : vector<1x8xf32>
    %c0_6 = arith.constant 0 : index
    %c0_7 = arith.constant 0 : index
    %8 = vector.load %arg3[%c0_6, %c0_7] : memref<2x32xf32, #tpu.memory_space<vmem>>, vector<2x32xf32>
    %9 = vector.extract_strided_slice %8 {offsets = [0, 0], sizes = [1, 32], strides = [1, 1]} : vector<2x32xf32> to vector<1x32xf32>
    %10 = vector.extract_strided_slice %8 {offsets = [1, 0], sizes = [1, 32], strides = [1, 1]} : vector<2x32xf32> to vector<1x32xf32>
    %cst_8 = arith.constant dense<0.000000e+00> : vector<8xf32>
    %11 = vector.multi_reduction <add>, %1, %cst_8 [1] : vector<8x32xf32> to vector<8xf32>
    %12 = vector.shape_cast %11 : vector<8xf32> to vector<8x1xf32>
    %cst_9 = arith.constant 3.200000e+01 : f32
    %13 = vector.broadcast %cst_9 : f32 to vector<8x1xf32>
    %14 = arith.divf %12, %13 : vector<8x1xf32>
    %15 = vector.broadcast %14 : vector<8x1xf32> to vector<8x32xf32>
    %16 = arith.subf %1, %15 : vector<8x32xf32>
    %17 = arith.mulf %16, %16 : vector<8x32xf32>
    %cst_10 = arith.constant dense<0.000000e+00> : vector<8xf32>
    %18 = vector.multi_reduction <add>, %17, %cst_10 [1] : vector<8x32xf32> to vector<8xf32>
    %19 = vector.shape_cast %18 : vector<8xf32> to vector<8x1xf32>
    %cst_11 = arith.constant 3.200000e+01 : f32
    %20 = vector.broadcast %cst_11 : f32 to vector<8x1xf32>
    %21 = arith.divf %19, %20 : vector<8x1xf32>
    %cst_12 = arith.constant 9.99999996E-13 : f32
    %22 = vector.broadcast %cst_12 : f32 to vector<8x1xf32>
    %23 = arith.addf %21, %22 : vector<8x1xf32>
    %24 = math.rsqrt %23 : vector<8x1xf32>
    %25 = vector.broadcast %24 : vector<8x1xf32> to vector<8x32xf32>
    %26 = arith.mulf %16, %25 : vector<8x32xf32>
    %27 = vector.broadcast %9 : vector<1x32xf32> to vector<8x32xf32>
    %28 = arith.mulf %26, %27 : vector<8x32xf32>
    %29 = vector.broadcast %10 : vector<1x32xf32> to vector<8x32xf32>
    %30 = arith.addf %28, %29 : vector<8x32xf32>
    %c0_13 = arith.constant 0 : index
    %c0_14 = arith.constant 0 : index
    %c0_15 = arith.constant 0 : index
    %31 = vector.load %arg4[%c0_13, %c0_14, %c0_15] : memref<2x32x96xf32, #tpu.memory_space<vmem>>, vector<1x32x96xf32>
    %32 = vector.shape_cast %31 : vector<1x32x96xf32> to vector<32x96xf32>
    %cst_16 = arith.constant dense<0.000000e+00> : vector<8x96xf32>
    %33 = tpu.matmul %30, %32, %cst_16 {dimension_numbers = #tpu.dot_dimension_numbers<[1], [0], [0], [1], [0, 0, 1, 1], [], []>} : vector<8x32xf32>, vector<32x96xf32>, vector<8x96xf32> -> vector<8x96xf32>
    %c0_17 = arith.constant 0 : index
    %c0_18 = arith.constant 0 : index
    %c0_19 = arith.constant 0 : index
    %34 = vector.load %arg5[%c0_17, %c0_18, %c0_19] : memref<2x1x96xf32, #tpu.memory_space<vmem>>, vector<1x1x96xf32>
    %35 = vector.shape_cast %34 : vector<1x1x96xf32> to vector<1x96xf32>
    %36 = vector.broadcast %35 : vector<1x96xf32> to vector<8x96xf32>
    %37 = arith.addf %33, %36 : vector<8x96xf32>
    %c0_20 = arith.constant 0 : index
    %c0_21 = arith.constant 0 : index
    %c0_22 = arith.constant 0 : index
    %38 = vector.load %arg6[%c0_20, %c0_21, %c0_22] : memref<2x32x32xf32, #tpu.memory_space<vmem>>, vector<1x32x32xf32>
    %39 = vector.shape_cast %38 : vector<1x32x32xf32> to vector<32x32xf32>
    %40 = vector.extract_strided_slice %37 {offsets = [0, 0], sizes = [8, 16], strides = [1, 1]} : vector<8x96xf32> to vector<8x16xf32>
    %41 = vector.extract_strided_slice %37 {offsets = [0, 32], sizes = [8, 16], strides = [1, 1]} : vector<8x96xf32> to vector<8x16xf32>
    %42 = vector.extract_strided_slice %37 {offsets = [0, 64], sizes = [8, 16], strides = [1, 1]} : vector<8x96xf32> to vector<8x16xf32>
    %43 = tpu.transpose %41, [1, 0] : vector<8x16xf32> -> vector<16x8xf32>
    %cst_23 = arith.constant dense<0.000000e+00> : vector<8x8xf32>
    %44 = tpu.matmul %40, %43, %cst_23 {dimension_numbers = #tpu.dot_dimension_numbers<[1], [0], [0], [1], [0, 0, 1, 1], [], []>} : vector<8x16xf32>, vector<16x8xf32>, vector<8x8xf32> -> vector<8x8xf32>
    %cst_24 = arith.constant 2.500000e-01 : f32
    %45 = vector.broadcast %cst_24 : f32 to vector<8x8xf32>
    %46 = arith.mulf %44, %45 : vector<8x8xf32>
    %47 = vector.broadcast %7 : vector<1x8xf32> to vector<8x8xf32>
    %48 = arith.addf %46, %47 : vector<8x8xf32>
    %cst_25 = arith.constant dense<0xFF800000> : vector<8xf32>
    %49 = vector.multi_reduction <maximumf>, %48, %cst_25 [1] : vector<8x8xf32> to vector<8xf32>
    %50 = vector.shape_cast %49 : vector<8xf32> to vector<8x1xf32>
    %51 = vector.broadcast %50 : vector<8x1xf32> to vector<8x8xf32>
    %52 = arith.subf %48, %51 : vector<8x8xf32>
    %53 = math.exp %52 : vector<8x8xf32>
    %cst_26 = arith.constant dense<0.000000e+00> : vector<8xf32>
    %54 = vector.multi_reduction <add>, %53, %cst_26 [1] : vector<8x8xf32> to vector<8xf32>
    %55 = vector.shape_cast %54 : vector<8xf32> to vector<8x1xf32>
    %56 = tpu.reciprocal %55 {approx = true} : vector<8x1xf32> -> vector<8x1xf32>
    %57 = vector.broadcast %56 : vector<8x1xf32> to vector<8x8xf32>
    %58 = arith.mulf %53, %57 : vector<8x8xf32>
    %cst_27 = arith.constant dense<0.000000e+00> : vector<8x16xf32>
    %59 = tpu.matmul %58, %42, %cst_27 {dimension_numbers = #tpu.dot_dimension_numbers<[1], [0], [0], [1], [0, 0, 1, 1], [], []>} : vector<8x8xf32>, vector<8x16xf32>, vector<8x16xf32> -> vector<8x16xf32>
    %60 = vector.extract_strided_slice %39 {offsets = [0, 0], sizes = [16, 32], strides = [1, 1]} : vector<32x32xf32> to vector<16x32xf32>
    %cst_28 = arith.constant dense<0.000000e+00> : vector<8x32xf32>
    %61 = tpu.matmul %59, %60, %cst_28 {dimension_numbers = #tpu.dot_dimension_numbers<[1], [0], [0], [1], [0, 0, 1, 1], [], []>} : vector<8x16xf32>, vector<16x32xf32>, vector<8x32xf32> -> vector<8x32xf32>
    %62 = vector.extract_strided_slice %37 {offsets = [0, 16], sizes = [8, 16], strides = [1, 1]} : vector<8x96xf32> to vector<8x16xf32>
    %63 = vector.extract_strided_slice %37 {offsets = [0, 48], sizes = [8, 16], strides = [1, 1]} : vector<8x96xf32> to vector<8x16xf32>
    %64 = vector.extract_strided_slice %37 {offsets = [0, 80], sizes = [8, 16], strides = [1, 1]} : vector<8x96xf32> to vector<8x16xf32>
    %65 = tpu.transpose %63, [1, 0] : vector<8x16xf32> -> vector<16x8xf32>
    %cst_29 = arith.constant dense<0.000000e+00> : vector<8x8xf32>
    %66 = tpu.matmul %62, %65, %cst_29 {dimension_numbers = #tpu.dot_dimension_numbers<[1], [0], [0], [1], [0, 0, 1, 1], [], []>} : vector<8x16xf32>, vector<16x8xf32>, vector<8x8xf32> -> vector<8x8xf32>
    %cst_30 = arith.constant 2.500000e-01 : f32
    %67 = vector.broadcast %cst_30 : f32 to vector<8x8xf32>
    %68 = arith.mulf %66, %67 : vector<8x8xf32>
    %69 = vector.broadcast %7 : vector<1x8xf32> to vector<8x8xf32>
    %70 = arith.addf %68, %69 : vector<8x8xf32>
    %cst_31 = arith.constant dense<0xFF800000> : vector<8xf32>
    %71 = vector.multi_reduction <maximumf>, %70, %cst_31 [1] : vector<8x8xf32> to vector<8xf32>
    %72 = vector.shape_cast %71 : vector<8xf32> to vector<8x1xf32>
    %73 = vector.broadcast %72 : vector<8x1xf32> to vector<8x8xf32>
    %74 = arith.subf %70, %73 : vector<8x8xf32>
    %75 = math.exp %74 : vector<8x8xf32>
    %cst_32 = arith.constant dense<0.000000e+00> : vector<8xf32>
    %76 = vector.multi_reduction <add>, %75, %cst_32 [1] : vector<8x8xf32> to vector<8xf32>
    %77 = vector.shape_cast %76 : vector<8xf32> to vector<8x1xf32>
    %78 = tpu.reciprocal %77 {approx = true} : vector<8x1xf32> -> vector<8x1xf32>
    %79 = vector.broadcast %78 : vector<8x1xf32> to vector<8x8xf32>
    %80 = arith.mulf %75, %79 : vector<8x8xf32>
    %cst_33 = arith.constant dense<0.000000e+00> : vector<8x16xf32>
    %81 = tpu.matmul %80, %64, %cst_33 {dimension_numbers = #tpu.dot_dimension_numbers<[1], [0], [0], [1], [0, 0, 1, 1], [], []>} : vector<8x8xf32>, vector<8x16xf32>, vector<8x16xf32> -> vector<8x16xf32>
    %82 = vector.extract_strided_slice %39 {offsets = [16, 0], sizes = [16, 32], strides = [1, 1]} : vector<32x32xf32> to vector<16x32xf32>
    %cst_34 = arith.constant dense<0.000000e+00> : vector<8x32xf32>
    %83 = tpu.matmul %81, %82, %cst_34 {dimension_numbers = #tpu.dot_dimension_numbers<[1], [0], [0], [1], [0, 0, 1, 1], [], []>} : vector<8x16xf32>, vector<16x32xf32>, vector<8x32xf32> -> vector<8x32xf32>
    %84 = arith.addf %61, %83 : vector<8x32xf32>
    %c0_35 = arith.constant 0 : index
    %c0_36 = arith.constant 0 : index
    %c0_37 = arith.constant 0 : index
    %85 = vector.load %arg7[%c0_35, %c0_36, %c0_37] : memref<2x1x32xf32, #tpu.memory_space<vmem>>, vector<1x1x32xf32>
    %86 = vector.shape_cast %85 : vector<1x1x32xf32> to vector<1x32xf32>
    %87 = vector.broadcast %86 : vector<1x32xf32> to vector<8x32xf32>
    %88 = arith.addf %84, %87 : vector<8x32xf32>
    %89 = arith.addf %88, %30 : vector<8x32xf32>
    %c0_38 = arith.constant 0 : index
    %c0_39 = arith.constant 0 : index
    %c0_40 = arith.constant 0 : index
    %90 = vector.load %arg8[%c0_38, %c0_39, %c0_40] : memref<2x2x32xf32, #tpu.memory_space<vmem>>, vector<1x2x32xf32>
    %91 = vector.shape_cast %90 : vector<1x2x32xf32> to vector<2x32xf32>
    %92 = vector.extract_strided_slice %91 {offsets = [0, 0], sizes = [1, 32], strides = [1, 1]} : vector<2x32xf32> to vector<1x32xf32>
    %93 = vector.extract_strided_slice %91 {offsets = [1, 0], sizes = [1, 32], strides = [1, 1]} : vector<2x32xf32> to vector<1x32xf32>
    %cst_41 = arith.constant dense<0.000000e+00> : vector<8xf32>
    %94 = vector.multi_reduction <add>, %89, %cst_41 [1] : vector<8x32xf32> to vector<8xf32>
    %95 = vector.shape_cast %94 : vector<8xf32> to vector<8x1xf32>
    %cst_42 = arith.constant 3.200000e+01 : f32
    %96 = vector.broadcast %cst_42 : f32 to vector<8x1xf32>
    %97 = arith.divf %95, %96 : vector<8x1xf32>
    %98 = vector.broadcast %97 : vector<8x1xf32> to vector<8x32xf32>
    %99 = arith.subf %89, %98 : vector<8x32xf32>
    %100 = arith.mulf %99, %99 : vector<8x32xf32>
    %cst_43 = arith.constant dense<0.000000e+00> : vector<8xf32>
    %101 = vector.multi_reduction <add>, %100, %cst_43 [1] : vector<8x32xf32> to vector<8xf32>
    %102 = vector.shape_cast %101 : vector<8xf32> to vector<8x1xf32>
    %cst_44 = arith.constant 3.200000e+01 : f32
    %103 = vector.broadcast %cst_44 : f32 to vector<8x1xf32>
    %104 = arith.divf %102, %103 : vector<8x1xf32>
    %cst_45 = arith.constant 9.99999996E-13 : f32
    %105 = vector.broadcast %cst_45 : f32 to vector<8x1xf32>
    %106 = arith.addf %104, %105 : vector<8x1xf32>
    %107 = math.rsqrt %106 : vector<8x1xf32>
    %108 = vector.broadcast %107 : vector<8x1xf32> to vector<8x32xf32>
    %109 = arith.mulf %99, %108 : vector<8x32xf32>
    %110 = vector.broadcast %92 : vector<1x32xf32> to vector<8x32xf32>
    %111 = arith.mulf %109, %110 : vector<8x32xf32>
    %112 = vector.broadcast %93 : vector<1x32xf32> to vector<8x32xf32>
    %113 = arith.addf %111, %112 : vector<8x32xf32>
    %c0_46 = arith.constant 0 : index
    %c0_47 = arith.constant 0 : index
    %c0_48 = arith.constant 0 : index
    %114 = vector.load %arg9[%c0_46, %c0_47, %c0_48] : memref<2x32x64xf32, #tpu.memory_space<vmem>>, vector<1x32x64xf32>
    %115 = vector.shape_cast %114 : vector<1x32x64xf32> to vector<32x64xf32>
    %cst_49 = arith.constant dense<0.000000e+00> : vector<8x64xf32>
    %116 = tpu.matmul %113, %115, %cst_49 {dimension_numbers = #tpu.dot_dimension_numbers<[1], [0], [0], [1], [0, 0, 1, 1], [], []>} : vector<8x32xf32>, vector<32x64xf32>, vector<8x64xf32> -> vector<8x64xf32>
    %c0_50 = arith.constant 0 : index
    %c0_51 = arith.constant 0 : index
    %c0_52 = arith.constant 0 : index
    %117 = vector.load %arg10[%c0_50, %c0_51, %c0_52] : memref<2x1x64xf32, #tpu.memory_space<vmem>>, vector<1x1x64xf32>
    %118 = vector.shape_cast %117 : vector<1x1x64xf32> to vector<1x64xf32>
    %119 = vector.broadcast %118 : vector<1x64xf32> to vector<8x64xf32>
    %120 = arith.addf %116, %119 : vector<8x64xf32>
    %cst_53 = arith.constant 5.000000e-01 : f32
    %121 = vector.broadcast %cst_53 : f32 to vector<8x64xf32>
    %122 = arith.mulf %121, %120 : vector<8x64xf32>
    %cst_54 = arith.constant 4.471500e-02 : f32
    %123 = vector.broadcast %cst_54 : f32 to vector<8x64xf32>
    %124 = arith.mulf %123, %120 : vector<8x64xf32>
    %125 = arith.mulf %124, %120 : vector<8x64xf32>
    %126 = arith.mulf %125, %120 : vector<8x64xf32>
    %127 = arith.addf %120, %126 : vector<8x64xf32>
    %cst_55 = arith.constant 0.797884583 : f32
    %128 = vector.broadcast %cst_55 : f32 to vector<8x64xf32>
    %129 = arith.mulf %128, %127 : vector<8x64xf32>
    %130 = math.tanh %129 : vector<8x64xf32>
    %cst_56 = arith.constant 1.000000e+00 : f32
    %131 = vector.broadcast %cst_56 : f32 to vector<8x64xf32>
    %132 = arith.addf %131, %130 : vector<8x64xf32>
    %133 = arith.mulf %122, %132 : vector<8x64xf32>
    %c0_57 = arith.constant 0 : index
    %c0_58 = arith.constant 0 : index
    %c0_59 = arith.constant 0 : index
    %134 = vector.load %arg11[%c0_57, %c0_58, %c0_59] : memref<2x64x32xf32, #tpu.memory_space<vmem>>, vector<1x64x32xf32>
    %135 = vector.shape_cast %134 : vector<1x64x32xf32> to vector<64x32xf32>
    %cst_60 = arith.constant dense<0.000000e+00> : vector<8x32xf32>
    %136 = tpu.matmul %133, %135, %cst_60 {dimension_numbers = #tpu.dot_dimension_numbers<[1], [0], [0], [1], [0, 0, 1, 1], [], []>} : vector<8x64xf32>, vector<64x32xf32>, vector<8x32xf32> -> vector<8x32xf32>
    %c0_61 = arith.constant 0 : index
    %c0_62 = arith.constant 0 : index
    %c0_63 = arith.constant 0 : index
    %137 = vector.load %arg12[%c0_61, %c0_62, %c0_63] : memref<2x1x32xf32, #tpu.memory_space<vmem>>, vector<1x1x32xf32>
    %138 = vector.shape_cast %137 : vector<1x1x32xf32> to vector<1x32xf32>
    %139 = vector.broadcast %138 : vector<1x32xf32> to vector<8x32xf32>
    %140 = arith.addf %136, %139 : vector<8x32xf32>
    %141 = arith.addf %140, %113 : vector<8x32xf32>
    %c0_64 = arith.constant 0 : index
    %c0_65 = arith.constant 0 : index
    %c0_66 = arith.constant 0 : index
    %142 = vector.load %arg13[%c0_64, %c0_65, %c0_66] : memref<2x2x32xf32, #tpu.memory_space<vmem>>, vector<1x2x32xf32>
    %143 = vector.shape_cast %142 : vector<1x2x32xf32> to vector<2x32xf32>
    %144 = vector.extract_strided_slice %143 {offsets = [0, 0], sizes = [1, 32], strides = [1, 1]} : vector<2x32xf32> to vector<1x32xf32>
    %145 = vector.extract_strided_slice %143 {offsets = [1, 0], sizes = [1, 32], strides = [1, 1]} : vector<2x32xf32> to vector<1x32xf32>
    %cst_67 = arith.constant dense<0.000000e+00> : vector<8xf32>
    %146 = vector.multi_reduction <add>, %141, %cst_67 [1] : vector<8x32xf32> to vector<8xf32>
    %147 = vector.shape_cast %146 : vector<8xf32> to vector<8x1xf32>
    %cst_68 = arith.constant 3.200000e+01 : f32
    %148 = vector.broadcast %cst_68 : f32 to vector<8x1xf32>
    %149 = arith.divf %147, %148 : vector<8x1xf32>
    %150 = vector.broadcast %149 : vector<8x1xf32> to vector<8x32xf32>
    %151 = arith.subf %141, %150 : vector<8x32xf32>
    %152 = arith.mulf %151, %151 : vector<8x32xf32>
    %cst_69 = arith.constant dense<0.000000e+00> : vector<8xf32>
    %153 = vector.multi_reduction <add>, %152, %cst_69 [1] : vector<8x32xf32> to vector<8xf32>
    %154 = vector.shape_cast %153 : vector<8xf32> to vector<8x1xf32>
    %cst_70 = arith.constant 3.200000e+01 : f32
    %155 = vector.broadcast %cst_70 : f32 to vector<8x1xf32>
    %156 = arith.divf %154, %155 : vector<8x1xf32>
    %cst_71 = arith.constant 9.99999996E-13 : f32
    %157 = vector.broadcast %cst_71 : f32 to vector<8x1xf32>
    %158 = arith.addf %156, %157 : vector<8x1xf32>
    %159 = math.rsqrt %158 : vector<8x1xf32>
    %160 = vector.broadcast %159 : vector<8x1xf32> to vector<8x32xf32>
    %161 = arith.mulf %151, %160 : vector<8x32xf32>
    %162 = vector.broadcast %144 : vector<1x32xf32> to vector<8x32xf32>
    %163 = arith.mulf %161, %162 : vector<8x32xf32>
    %164 = vector.broadcast %145 : vector<1x32xf32> to vector<8x32xf32>
    %165 = arith.addf %163, %164 : vector<8x32xf32>
    %c1 = arith.constant 1 : index
    %c0_72 = arith.constant 0 : index
    %c0_73 = arith.constant 0 : index
    %166 = vector.load %arg4[%c1, %c0_72, %c0_73] : memref<2x32x96xf32, #tpu.memory_space<vmem>>, vector<1x32x96xf32>
    %167 = vector.shape_cast %166 : vector<1x32x96xf32> to vector<32x96xf32>
    %cst_74 = arith.constant dense<0.000000e+00> : vector<8x96xf32>
    %168 = tpu.matmul %165, %167, %cst_74 {dimension_numbers = #tpu.dot_dimension_numbers<[1], [0], [0], [1], [0, 0, 1, 1], [], []>} : vector<8x32xf32>, vector<32x96xf32>, vector<8x96xf32> -> vector<8x96xf32>
    %c1_75 = arith.constant 1 : index
    %c0_76 = arith.constant 0 : index
    %c0_77 = arith.constant 0 : index
    %169 = vector.load %arg5[%c1_75, %c0_76, %c0_77] : memref<2x1x96xf32, #tpu.memory_space<vmem>>, vector<1x1x96xf32>
    %170 = vector.shape_cast %169 : vector<1x1x96xf32> to vector<1x96xf32>
    %171 = vector.broadcast %170 : vector<1x96xf32> to vector<8x96xf32>
    %172 = arith.addf %168, %171 : vector<8x96xf32>
    %c1_78 = arith.constant 1 : index
    %c0_79 = arith.constant 0 : index
    %c0_80 = arith.constant 0 : index
    %173 = vector.load %arg6[%c1_78, %c0_79, %c0_80] : memref<2x32x32xf32, #tpu.memory_space<vmem>>, vector<1x32x32xf32>
    %174 = vector.shape_cast %173 : vector<1x32x32xf32> to vector<32x32xf32>
    %175 = vector.extract_strided_slice %172 {offsets = [0, 0], sizes = [8, 16], strides = [1, 1]} : vector<8x96xf32> to vector<8x16xf32>
    %176 = vector.extract_strided_slice %172 {offsets = [0, 32], sizes = [8, 16], strides = [1, 1]} : vector<8x96xf32> to vector<8x16xf32>
    %177 = vector.extract_strided_slice %172 {offsets = [0, 64], sizes = [8, 16], strides = [1, 1]} : vector<8x96xf32> to vector<8x16xf32>
    %178 = tpu.transpose %176, [1, 0] : vector<8x16xf32> -> vector<16x8xf32>
    %cst_81 = arith.constant dense<0.000000e+00> : vector<8x8xf32>
    %179 = tpu.matmul %175, %178, %cst_81 {dimension_numbers = #tpu.dot_dimension_numbers<[1], [0], [0], [1], [0, 0, 1, 1], [], []>} : vector<8x16xf32>, vector<16x8xf32>, vector<8x8xf32> -> vector<8x8xf32>
    %cst_82 = arith.constant 2.500000e-01 : f32
    %180 = vector.broadcast %cst_82 : f32 to vector<8x8xf32>
    %181 = arith.mulf %179, %180 : vector<8x8xf32>
    %182 = vector.broadcast %7 : vector<1x8xf32> to vector<8x8xf32>
    %183 = arith.addf %181, %182 : vector<8x8xf32>
    %cst_83 = arith.constant dense<0xFF800000> : vector<8xf32>
    %184 = vector.multi_reduction <maximumf>, %183, %cst_83 [1] : vector<8x8xf32> to vector<8xf32>
    %185 = vector.shape_cast %184 : vector<8xf32> to vector<8x1xf32>
    %186 = vector.broadcast %185 : vector<8x1xf32> to vector<8x8xf32>
    %187 = arith.subf %183, %186 : vector<8x8xf32>
    %188 = math.exp %187 : vector<8x8xf32>
    %cst_84 = arith.constant dense<0.000000e+00> : vector<8xf32>
    %189 = vector.multi_reduction <add>, %188, %cst_84 [1] : vector<8x8xf32> to vector<8xf32>
    %190 = vector.shape_cast %189 : vector<8xf32> to vector<8x1xf32>
    %191 = tpu.reciprocal %190 {approx = true} : vector<8x1xf32> -> vector<8x1xf32>
    %192 = vector.broadcast %191 : vector<8x1xf32> to vector<8x8xf32>
    %193 = arith.mulf %188, %192 : vector<8x8xf32>
    %cst_85 = arith.constant dense<0.000000e+00> : vector<8x16xf32>
    %194 = tpu.matmul %193, %177, %cst_85 {dimension_numbers = #tpu.dot_dimension_numbers<[1], [0], [0], [1], [0, 0, 1, 1], [], []>} : vector<8x8xf32>, vector<8x16xf32>, vector<8x16xf32> -> vector<8x16xf32>
    %195 = vector.extract_strided_slice %174 {offsets = [0, 0], sizes = [16, 32], strides = [1, 1]} : vector<32x32xf32> to vector<16x32xf32>
    %cst_86 = arith.constant dense<0.000000e+00> : vector<8x32xf32>
    %196 = tpu.matmul %194, %195, %cst_86 {dimension_numbers = #tpu.dot_dimension_numbers<[1], [0], [0], [1], [0, 0, 1, 1], [], []>} : vector<8x16xf32>, vector<16x32xf32>, vector<8x32xf32> -> vector<8x32xf32>
    %197 = vector.extract_strided_slice %172 {offsets = [0, 16], sizes = [8, 16], strides = [1, 1]} : vector<8x96xf32> to vector<8x16xf32>
    %198 = vector.extract_strided_slice %172 {offsets = [0, 48], sizes = [8, 16], strides = [1, 1]} : vector<8x96xf32> to vector<8x16xf32>
    %199 = vector.extract_strided_slice %172 {offsets = [0, 80], sizes = [8, 16], strides = [1, 1]} : vector<8x96xf32> to vector<8x16xf32>
    %200 = tpu.transpose %198, [1, 0] : vector<8x16xf32> -> vector<16x8xf32>
    %cst_87 = arith.constant dense<0.000000e+00> : vector<8x8xf32>
    %201 = tpu.matmul %197, %200, %cst_87 {dimension_numbers = #tpu.dot_dimension_numbers<[1], [0], [0], [1], [0, 0, 1, 1], [], []>} : vector<8x16xf32>, vector<16x8xf32>, vector<8x8xf32> -> vector<8x8xf32>
    %cst_88 = arith.constant 2.500000e-01 : f32
    %202 = vector.broadcast %cst_88 : f32 to vector<8x8xf32>
    %203 = arith.mulf %201, %202 : vector<8x8xf32>
    %204 = vector.broadcast %7 : vector<1x8xf32> to vector<8x8xf32>
    %205 = arith.addf %203, %204 : vector<8x8xf32>
    %cst_89 = arith.constant dense<0xFF800000> : vector<8xf32>
    %206 = vector.multi_reduction <maximumf>, %205, %cst_89 [1] : vector<8x8xf32> to vector<8xf32>
    %207 = vector.shape_cast %206 : vector<8xf32> to vector<8x1xf32>
    %208 = vector.broadcast %207 : vector<8x1xf32> to vector<8x8xf32>
    %209 = arith.subf %205, %208 : vector<8x8xf32>
    %210 = math.exp %209 : vector<8x8xf32>
    %cst_90 = arith.constant dense<0.000000e+00> : vector<8xf32>
    %211 = vector.multi_reduction <add>, %210, %cst_90 [1] : vector<8x8xf32> to vector<8xf32>
    %212 = vector.shape_cast %211 : vector<8xf32> to vector<8x1xf32>
    %213 = tpu.reciprocal %212 {approx = true} : vector<8x1xf32> -> vector<8x1xf32>
    %214 = vector.broadcast %213 : vector<8x1xf32> to vector<8x8xf32>
    %215 = arith.mulf %210, %214 : vector<8x8xf32>
    %cst_91 = arith.constant dense<0.000000e+00> : vector<8x16xf32>
    %216 = tpu.matmul %215, %199, %cst_91 {dimension_numbers = #tpu.dot_dimension_numbers<[1], [0], [0], [1], [0, 0, 1, 1], [], []>} : vector<8x8xf32>, vector<8x16xf32>, vector<8x16xf32> -> vector<8x16xf32>
    %217 = vector.extract_strided_slice %174 {offsets = [16, 0], sizes = [16, 32], strides = [1, 1]} : vector<32x32xf32> to vector<16x32xf32>
    %cst_92 = arith.constant dense<0.000000e+00> : vector<8x32xf32>
    %218 = tpu.matmul %216, %217, %cst_92 {dimension_numbers = #tpu.dot_dimension_numbers<[1], [0], [0], [1], [0, 0, 1, 1], [], []>} : vector<8x16xf32>, vector<16x32xf32>, vector<8x32xf32> -> vector<8x32xf32>
    %219 = arith.addf %196, %218 : vector<8x32xf32>
    %c1_93 = arith.constant 1 : index
    %c0_94 = arith.constant 0 : index
    %c0_95 = arith.constant 0 : index
    %220 = vector.load %arg7[%c1_93, %c0_94, %c0_95] : memref<2x1x32xf32, #tpu.memory_space<vmem>>, vector<1x1x32xf32>
    %221 = vector.shape_cast %220 : vector<1x1x32xf32> to vector<1x32xf32>
    %222 = vector.broadcast %221 : vector<1x32xf32> to vector<8x32xf32>
    %223 = arith.addf %219, %222 : vector<8x32xf32>
    %224 = arith.addf %223, %165 : vector<8x32xf32>
    %c1_96 = arith.constant 1 : index
    %c0_97 = arith.constant 0 : index
    %c0_98 = arith.constant 0 : index
    %225 = vector.load %arg8[%c1_96, %c0_97, %c0_98] : memref<2x2x32xf32, #tpu.memory_space<vmem>>, vector<1x2x32xf32>
    %226 = vector.shape_cast %225 : vector<1x2x32xf32> to vector<2x32xf32>
    %227 = vector.extract_strided_slice %226 {offsets = [0, 0], sizes = [1, 32], strides = [1, 1]} : vector<2x32xf32> to vector<1x32xf32>
    %228 = vector.extract_strided_slice %226 {offsets = [1, 0], sizes = [1, 32], strides = [1, 1]} : vector<2x32xf32> to vector<1x32xf32>
    %cst_99 = arith.constant dense<0.000000e+00> : vector<8xf32>
    %229 = vector.multi_reduction <add>, %224, %cst_99 [1] : vector<8x32xf32> to vector<8xf32>
    %230 = vector.shape_cast %229 : vector<8xf32> to vector<8x1xf32>
    %cst_100 = arith.constant 3.200000e+01 : f32
    %231 = vector.broadcast %cst_100 : f32 to vector<8x1xf32>
    %232 = arith.divf %230, %231 : vector<8x1xf32>
    %233 = vector.broadcast %232 : vector<8x1xf32> to vector<8x32xf32>
    %234 = arith.subf %224, %233 : vector<8x32xf32>
    %235 = arith.mulf %234, %234 : vector<8x32xf32>
    %cst_101 = arith.constant dense<0.000000e+00> : vector<8xf32>
    %236 = vector.multi_reduction <add>, %235, %cst_101 [1] : vector<8x32xf32> to vector<8xf32>
    %237 = vector.shape_cast %236 : vector<8xf32> to vector<8x1xf32>
    %cst_102 = arith.constant 3.200000e+01 : f32
    %238 = vector.broadcast %cst_102 : f32 to vector<8x1xf32>
    %239 = arith.divf %237, %238 : vector<8x1xf32>
    %cst_103 = arith.constant 9.99999996E-13 : f32
    %240 = vector.broadcast %cst_103 : f32 to vector<8x1xf32>
    %241 = arith.addf %239, %240 : vector<8x1xf32>
    %242 = math.rsqrt %241 : vector<8x1xf32>
    %243 = vector.broadcast %242 : vector<8x1xf32> to vector<8x32xf32>
    %244 = arith.mulf %234, %243 : vector<8x32xf32>
    %245 = vector.broadcast %227 : vector<1x32xf32> to vector<8x32xf32>
    %246 = arith.mulf %244, %245 : vector<8x32xf32>
    %247 = vector.broadcast %228 : vector<1x32xf32> to vector<8x32xf32>
    %248 = arith.addf %246, %247 : vector<8x32xf32>
    %c1_104 = arith.constant 1 : index
    %c0_105 = arith.constant 0 : index
    %c0_106 = arith.constant 0 : index
    %249 = vector.load %arg9[%c1_104, %c0_105, %c0_106] : memref<2x32x64xf32, #tpu.memory_space<vmem>>, vector<1x32x64xf32>
    %250 = vector.shape_cast %249 : vector<1x32x64xf32> to vector<32x64xf32>
    %cst_107 = arith.constant dense<0.000000e+00> : vector<8x64xf32>
    %251 = tpu.matmul %248, %250, %cst_107 {dimension_numbers = #tpu.dot_dimension_numbers<[1], [0], [0], [1], [0, 0, 1, 1], [], []>} : vector<8x32xf32>, vector<32x64xf32>, vector<8x64xf32> -> vector<8x64xf32>
    %c1_108 = arith.constant 1 : index
    %c0_109 = arith.constant 0 : index
    %c0_110 = arith.constant 0 : index
    %252 = vector.load %arg10[%c1_108, %c0_109, %c0_110] : memref<2x1x64xf32, #tpu.memory_space<vmem>>, vector<1x1x64xf32>
    %253 = vector.shape_cast %252 : vector<1x1x64xf32> to vector<1x64xf32>
    %254 = vector.broadcast %253 : vector<1x64xf32> to vector<8x64xf32>
    %255 = arith.addf %251, %254 : vector<8x64xf32>
    %cst_111 = arith.constant 5.000000e-01 : f32
    %256 = vector.broadcast %cst_111 : f32 to vector<8x64xf32>
    %257 = arith.mulf %256, %255 : vector<8x64xf32>
    %cst_112 = arith.constant 4.471500e-02 : f32
    %258 = vector.broadcast %cst_112 : f32 to vector<8x64xf32>
    %259 = arith.mulf %258, %255 : vector<8x64xf32>
    %260 = arith.mulf %259, %255 : vector<8x64xf32>
    %261 = arith.mulf %260, %255 : vector<8x64xf32>
    %262 = arith.addf %255, %261 : vector<8x64xf32>
    %cst_113 = arith.constant 0.797884583 : f32
    %263 = vector.broadcast %cst_113 : f32 to vector<8x64xf32>
    %264 = arith.mulf %263, %262 : vector<8x64xf32>
    %265 = math.tanh %264 : vector<8x64xf32>
    %cst_114 = arith.constant 1.000000e+00 : f32
    %266 = vector.broadcast %cst_114 : f32 to vector<8x64xf32>
    %267 = arith.addf %266, %265 : vector<8x64xf32>
    %268 = arith.mulf %257, %267 : vector<8x64xf32>
    %c1_115 = arith.constant 1 : index
    %c0_116 = arith.constant 0 : index
    %c0_117 = arith.constant 0 : index
    %269 = vector.load %arg11[%c1_115, %c0_116, %c0_117] : memref<2x64x32xf32, #tpu.memory_space<vmem>>, vector<1x64x32xf32>
    %270 = vector.shape_cast %269 : vector<1x64x32xf32> to vector<64x32xf32>
    %cst_118 = arith.constant dense<0.000000e+00> : vector<8x32xf32>
    %271 = tpu.matmul %268, %270, %cst_118 {dimension_numbers = #tpu.dot_dimension_numbers<[1], [0], [0], [1], [0, 0, 1, 1], [], []>} : vector<8x64xf32>, vector<64x32xf32>, vector<8x32xf32> -> vector<8x32xf32>
    %c1_119 = arith.constant 1 : index
    %c0_120 = arith.constant 0 : index
    %c0_121 = arith.constant 0 : index
    %272 = vector.load %arg12[%c1_119, %c0_120, %c0_121] : memref<2x1x32xf32, #tpu.memory_space<vmem>>, vector<1x1x32xf32>
    %273 = vector.shape_cast %272 : vector<1x1x32xf32> to vector<1x32xf32>
    %274 = vector.broadcast %273 : vector<1x32xf32> to vector<8x32xf32>
    %275 = arith.addf %271, %274 : vector<8x32xf32>
    %276 = arith.addf %275, %248 : vector<8x32xf32>
    %c1_122 = arith.constant 1 : index
    %c0_123 = arith.constant 0 : index
    %c0_124 = arith.constant 0 : index
    %277 = vector.load %arg13[%c1_122, %c0_123, %c0_124] : memref<2x2x32xf32, #tpu.memory_space<vmem>>, vector<1x2x32xf32>
    %278 = vector.shape_cast %277 : vector<1x2x32xf32> to vector<2x32xf32>
    %279 = vector.extract_strided_slice %278 {offsets = [0, 0], sizes = [1, 32], strides = [1, 1]} : vector<2x32xf32> to vector<1x32xf32>
    %280 = vector.extract_strided_slice %278 {offsets = [1, 0], sizes = [1, 32], strides = [1, 1]} : vector<2x32xf32> to vector<1x32xf32>
    %cst_125 = arith.constant dense<0.000000e+00> : vector<8xf32>
    %281 = vector.multi_reduction <add>, %276, %cst_125 [1] : vector<8x32xf32> to vector<8xf32>
    %282 = vector.shape_cast %281 : vector<8xf32> to vector<8x1xf32>
    %cst_126 = arith.constant 3.200000e+01 : f32
    %283 = vector.broadcast %cst_126 : f32 to vector<8x1xf32>
    %284 = arith.divf %282, %283 : vector<8x1xf32>
    %285 = vector.broadcast %284 : vector<8x1xf32> to vector<8x32xf32>
    %286 = arith.subf %276, %285 : vector<8x32xf32>
    %287 = arith.mulf %286, %286 : vector<8x32xf32>
    %cst_127 = arith.constant dense<0.000000e+00> : vector<8xf32>
    %288 = vector.multi_reduction <add>, %287, %cst_127 [1] : vector<8x32xf32> to vector<8xf32>
    %289 = vector.shape_cast %288 : vector<8xf32> to vector<8x1xf32>
    %cst_128 = arith.constant 3.200000e+01 : f32
    %290 = vector.broadcast %cst_128 : f32 to vector<8x1xf32>
    %291 = arith.divf %289, %290 : vector<8x1xf32>
    %cst_129 = arith.constant 9.99999996E-13 : f32
    %292 = vector.broadcast %cst_129 : f32 to vector<8x1xf32>
    %293 = arith.addf %291, %292 : vector<8x1xf32>
    %294 = math.rsqrt %293 : vector<8x1xf32>
    %295 = vector.broadcast %294 : vector<8x1xf32> to vector<8x32xf32>
    %296 = arith.mulf %286, %295 : vector<8x32xf32>
    %297 = vector.broadcast %279 : vector<1x32xf32> to vector<8x32xf32>
    %298 = arith.mulf %296, %297 : vector<8x32xf32>
    %299 = vector.broadcast %280 : vector<1x32xf32> to vector<8x32xf32>
    %300 = arith.addf %298, %299 : vector<8x32xf32>
    %301 = vector.extract_strided_slice %300 {offsets = [0, 0], sizes = [1, 32], strides = [1, 1]} : vector<8x32xf32> to vector<1x32xf32>
    %c0_130 = arith.constant 0 : index
    %c0_131 = arith.constant 0 : index
    %302 = vector.load %arg14[%c0_130, %c0_131] : memref<32x32xf32, #tpu.memory_space<vmem>>, vector<32x32xf32>
    %cst_132 = arith.constant dense<0.000000e+00> : vector<1x32xf32>
    %303 = tpu.matmul %301, %302, %cst_132 {dimension_numbers = #tpu.dot_dimension_numbers<[1], [0], [0], [1], [0, 0, 1, 1], [], []>} : vector<1x32xf32>, vector<32x32xf32>, vector<1x32xf32> -> vector<1x32xf32>
    %c0_133 = arith.constant 0 : index
    %c0_134 = arith.constant 0 : index
    %304 = vector.load %arg15[%c0_133, %c0_134] : memref<1x32xf32, #tpu.memory_space<vmem>>, vector<1x32xf32>
    %305 = arith.addf %303, %304 : vector<1x32xf32>
    %306 = math.tanh %305 : vector<1x32xf32>
    %c0_135 = arith.constant 0 : index
    %c0_136 = arith.constant 0 : index
    %307 = vector.load %arg16[%c0_135, %c0_136] : memref<4x32xf32, #tpu.memory_space<vmem>>, vector<4x32xf32>
    %308 = vector.extract_strided_slice %307 {offsets = [0, 0], sizes = [1, 32], strides = [1, 1]} : vector<4x32xf32> to vector<1x32xf32>
    %309 = arith.subf %306, %308 : vector<1x32xf32>
    %310 = vector.extract_strided_slice %307 {offsets = [1, 0], sizes = [1, 32], strides = [1, 1]} : vector<4x32xf32> to vector<1x32xf32>
    %cst_137 = arith.constant 9.99999974E-6 : f32
    %311 = vector.broadcast %cst_137 : f32 to vector<1x32xf32>
    %312 = arith.addf %310, %311 : vector<1x32xf32>
    %313 = math.rsqrt %312 : vector<1x32xf32>
    %314 = arith.mulf %309, %313 : vector<1x32xf32>
    %315 = vector.extract_strided_slice %307 {offsets = [2, 0], sizes = [1, 32], strides = [1, 1]} : vector<4x32xf32> to vector<1x32xf32>
    %316 = arith.mulf %314, %315 : vector<1x32xf32>
    %317 = vector.extract_strided_slice %307 {offsets = [3, 0], sizes = [1, 32], strides = [1, 1]} : vector<4x32xf32> to vector<1x32xf32>
    %318 = arith.addf %316, %317 : vector<1x32xf32>
    %c0_138 = arith.constant 0 : index
    %c0_139 = arith.constant 0 : index
    %319 = vector.load %arg17[%c0_138, %c0_139] : memref<32x128xf32, #tpu.memory_space<vmem>>, vector<32x128xf32>
    %cst_140 = arith.constant dense<0.000000e+00> : vector<1x128xf32>
    %320 = tpu.matmul %318, %319, %cst_140 {dimension_numbers = #tpu.dot_dimension_numbers<[1], [0], [0], [1], [0, 0, 1, 1], [], []>} : vector<1x32xf32>, vector<32x128xf32>, vector<1x128xf32> -> vector<1x128xf32>
    %c0_141 = arith.constant 0 : index
    %c0_142 = arith.constant 0 : index
    %321 = vector.load %arg18[%c0_141, %c0_142] : memref<1x128xf32, #tpu.memory_space<vmem>>, vector<1x128xf32>
    %322 = arith.addf %320, %321 : vector<1x128xf32>
    %c0_143 = arith.constant 0 : index
    %c0_144 = arith.constant 0 : index
    %c0_145 = arith.constant 0 : index
    %323 = vector.load %arg19[%c0_143, %c0_144, %c0_145] : memref<1x1x128xf32, #tpu.memory_space<vmem>>, vector<1x1x128xf32>
    %324 = vector.shape_cast %323 : vector<1x1x128xf32> to vector<1x128xf32>
    %325 = vector.shape_cast %322 : vector<1x128xf32> to vector<1x1x128xf32>
    tpu.vector_store %arg19[%c0_143, %c0_144, %c0_145], %325 {strides = array<i32>} : memref<1x1x128xf32, #tpu.memory_space<vmem>>, vector<1x1x128xf32>,
    return
  }
  func.func @transform_0(%arg0: i32) -> (i32, i32, i32) {
    %c0_i32 = arith.constant 0 : i32
    %c0_i32_0 = arith.constant 0 : i32
    %c0_i32_1 = arith.constant 0 : i32
    return %arg0, %c0_i32, %c0_i32_0 : i32, i32, i32
  }
  func.func @transform_1(%arg0: i32) -> (i32, i32, i32) {
    %c0_i32 = arith.constant 0 : i32
    %c0_i32_0 = arith.constant 0 : i32
    %c0_i32_1 = arith.constant 0 : i32
    return %arg0, %c0_i32, %c0_i32_0 : i32, i32, i32
  }
  func.func @transform_2(%arg0: i32) -> (i32, i32) {
    %c0_i32 = arith.constant 0 : i32
    %c0_i32_0 = arith.constant 0 : i32
    %c0_i32_1 = arith.constant 0 : i32
    return %c0_i32, %c0_i32_0 : i32, i32
  }
  func.func @transform_3(%arg0: i32) -> (i32, i32, i32) {
    %c0_i32 = arith.constant 0 : i32
    %c0_i32_0 = arith.constant 0 : i32
    %c0_i32_1 = arith.constant 0 : i32
    %c0_i32_2 = arith.constant 0 : i32
    return %c0_i32, %c0_i32_0, %c0_i32_1 : i32, i32, i32
  }
  func.func @transform_4(%arg0: i32) -> (i32, i32, i32) {
    %c0_i32 = arith.constant 0 : i32
    %c0_i32_0 = arith.constant 0 : i32
    %c0_i32_1 = arith.constant 0 : i32
    %c0_i32_2 = arith.constant 0 : i32
    return %c0_i32, %c0_i32_0, %c0_i32_1 : i32, i32, i32
  }
  func.func @transform_5(%arg0: i32) -> (i32, i32, i32) {
    %c0_i32 = arith.constant 0 : i32
    %c0_i32_0 = arith.constant 0 : i32
    %c0_i32_1 = arith.constant 0 : i32
    %c0_i32_2 = arith.constant 0 : i32
    return %c0_i32, %c0_i32_0, %c0_i32_1 : i32, i32, i32
  }
  func.func @transform_6(%arg0: i32) -> (i32, i32, i32) {
    %c0_i32 = arith.constant 0 : i32
    %c0_i32_0 = arith.constant 0 : i32
    %c0_i32_1 = arith.constant 0 : i32
    %c0_i32_2 = arith.constant 0 : i32
    return %c0_i32, %c0_i32_0, %c0_i32_1 : i32, i32, i32
  }
  func.func @transform_7(%arg0: i32) -> (i32, i32, i32) {
    %c0_i32 = arith.constant 0 : i32
    %c0_i32_0 = arith.constant 0 : i32
    %c0_i32_1 = arith.constant 0 : i32
    %c0_i32_2 = arith.constant 0 : i32
    return %c0_i32, %c0_i32_0, %c0_i32_1 : i32, i32, i32
  }
  func.func @transform_8(%arg0: i32) -> (i32, i32, i32) {
    %c0_i32 = arith.constant 0 : i32
    %c0_i32_0 = arith.constant 0 : i32
    %c0_i32_1 = arith.constant 0 : i32
    %c0_i32_2 = arith.constant 0 : i32
    return %c0_i32, %c0_i32_0, %c0_i32_1 : i32, i32, i32
  }
  func.func @transform_9(%arg0: i32) -> (i32, i32, i32) {
    %c0_i32 = arith.constant 0 : i32
    %c0_i32_0 = arith.constant 0 : i32
    %c0_i32_1 = arith.constant 0 : i32
    %c0_i32_2 = arith.constant 0 : i32
    return %c0_i32, %c0_i32_0, %c0_i32_1 : i32, i32, i32
  }
  func.func @transform_10(%arg0: i32) -> (i32, i32, i32) {
    %c0_i32 = arith.constant 0 : i32
    %c0_i32_0 = arith.constant 0 : i32
    %c0_i32_1 = arith.constant 0 : i32
    %c0_i32_2 = arith.constant 0 : i32
    return %c0_i32, %c0_i32_0, %c0_i32_1 : i32, i32, i32
  }
  func.func @transform_11(%arg0: i32) -> (i32, i32, i32) {
    %c0_i32 = arith.constant 0 : i32
    %c0_i32_0 = arith.constant 0 : i32
    %c0_i32_1 = arith.constant 0 : i32
    %c0_i32_2 = arith.constant 0 : i32
    return %c0_i32, %c0_i32_0, %c0_i32_1 : i32, i32, i32
  }
  func.func @transform_12(%arg0: i32) -> (i32, i32, i32) {
    %c0_i32 = arith.constant 0 : i32
    %c0_i32_0 = arith.constant 0 : i32
    %c0_i32_1 = arith.constant 0 : i32
    %c0_i32_2 = arith.constant 0 : i32
    return %c0_i32, %c0_i32_0, %c0_i32_1 : i32, i32, i32
  }
  func.func @transform_13(%arg0: i32) -> (i32, i32) {
    %c0_i32 = arith.constant 0 : i32
    %c0_i32_0 = arith.constant 0 : i32
    %c0_i32_1 = arith.constant 0 : i32
    return %c0_i32, %c0_i32_0 : i32, i32
  }
  func.func @transform_14(%arg0: i32) -> (i32, i32) {
    %c0_i32 = arith.constant 0 : i32
    %c0_i32_0 = arith.constant 0 : i32
    %c0_i32_1 = arith.constant 0 : i32
    return %c0_i32, %c0_i32_0 : i32, i32
  }
  func.func @transform_15(%arg0: i32) -> (i32, i32) {
    %c0_i32 = arith.constant 0 : i32
    %c0_i32_0 = arith.constant 0 : i32
    %c0_i32_1 = arith.constant 0 : i32
    return %c0_i32, %c0_i32_0 : i32, i32
  }
  func.func @transform_16(%arg0: i32) -> (i32, i32) {
    %c0_i32 = arith.constant 0 : i32
    %c0_i32_0 = arith.constant 0 : i32
    %c0_i32_1 = arith.constant 0 : i32
    return %c0_i32, %c0_i32_0 : i32, i32
  }
  func.func @transform_17(%arg0: i32) -> (i32, i32) {
    %c0_i32 = arith.constant 0 : i32
    %c0_i32_0 = arith.constant 0 : i32
    %c0_i32_1 = arith.constant 0 : i32
    return %c0_i32, %c0_i32_0 : i32, i32
  }
  func.func @transform_18(%arg0: i32) -> (i32, i32, i32) {
    %c0_i32 = arith.constant 0 : i32
    %c0_i32_0 = arith.constant 0 : i32
    %c0_i32_1 = arith.constant 0 : i32
    return %arg0, %c0_i32, %c0_i32_0 : i32, i32, i32
  }
}

</mosaic_0001>

<llo_original>
// kernel: model_forward.1
$region0: #{model_forward.1}
  #allocation0 [shape = 'u32[]', space=smem, size = 0x4, offset = 0x4, fixed_abs, tag = 'smem constant byte address 0x4 - core index']
  #allocation1 [shape = 'u32[144,128]{1,0:T(1,128)}', space=vmem, size = 0x12000, scoped, tag = 'internal scratch']
  %s0 = inlined_call_operand.vmem [shape: f32[2,8,32], index: 0, kind: input, shape index: {}]
  %s1 = inlined_call_operand.vmem [shape: f32[2,1,8], index: 1, kind: input, shape index: {}]
  %s2 = inlined_call_operand.vmem [shape: f32[2,32], index: 2, kind: input, shape index: {}]
  %s3 = inlined_call_operand.vmem [shape: f32[2,32,96], index: 3, kind: input, shape index: {}]
  %s4 = inlined_call_operand.vmem [shape: f32[2,1,96], index: 4, kind: input, shape index: {}]
  %s5 = inlined_call_operand.vmem [shape: f32[2,32,32], index: 5, kind: input, shape index: {}]
  %s6 = inlined_call_operand.vmem [shape: f32[2,1,32], index: 6, kind: input, shape index: {}]
  %s7 = inlined_call_operand.vmem [shape: f32[2,2,32], index: 7, kind: input, shape index: {}]
  %s8 = inlined_call_operand.vmem [shape: f32[2,32,64], index: 8, kind: input, shape index: {}]
  %s9 = inlined_call_operand.vmem [shape: f32[2,1,64], index: 9, kind: input, shape index: {}]
  %s10 = inlined_call_operand.vmem [shape: f32[2,64,32], index: 10, kind: input, shape index: {}]
  %s11 = inlined_call_operand.vmem [shape: f32[2,1,32], index: 11, kind: input, shape index: {}]
  %s12 = inlined_call_operand.vmem [shape: f32[2,2,32], index: 12, kind: input, shape index: {}]
  %s13 = inlined_call_operand.vmem [shape: f32[32,32], index: 13, kind: input, shape index: {}]
  %s14 = inlined_call_operand.vmem [shape: f32[1,32], index: 14, kind: input, shape index: {}]
  %s15 = inlined_call_operand.vmem [shape: f32[4,32], index: 15, kind: input, shape index: {}]
  %s16 = inlined_call_operand.vmem [shape: f32[32,128], index: 16, kind: input, shape index: {}]
  %s17 = inlined_call_operand.vmem [shape: f32[1,128], index: 17, kind: input, shape index: {}]
  %s18 = inlined_call_operand.hbm [shape: f32[2,1,128], index: 18, kind: output, shape index: {}]
  %s19 = sld [smem:[#allocation0]]
  $region105: #{model_forward.1} parent=0
    _
  %s21 = ssub.s32 1, %s19
  %s22 = scalar_select 0, %s21, %s19
  $region1: #{model_forward.1} parent=0
    #allocation2 [shape = 'u8[1024]{0}', space=vmem, size = 0x400, scoped, tag = 'output window, operand 0']
    #allocation3 [shape = 's32[2]{0}', space=sflag, size = 0x8, scoped, tag = 'scoped memory for model_forward.1']
    %23 = vsyncpa [#allocation3], 0
    %s24 = scalar_lea.sflag [#allocation3], 1
    %25 = vsyncpa %s24, 0
    loop: start=0, step=1, limit=4
    $region2: #{model_forward.1} parent=1 // loop_pre_header
      _
    $region3: #{model_forward.1} parent=1 // loop_header
      %s27 = sphi 0, %s31
      %p28 = scmp.ge.s32.totalorder %s27, 4
      %s37 = sphi 0, %s39
      %s40 = sphi 0, %s37
      %s41 = sphi 0, %s40
      %s57 = sphi 0, %s41
      %s63 = sphi 0, %s65
      %s66 = sphi 0, %s63
      %s67 = sphi 0, %s66
      %s83 = sphi 0, %s67
      %s87 = sphi 0, %s87
      %s89 = sphi 0, %s87
      %s90 = sphi 0, %s89
      %s104 = sphi 0, %s90
      %s108 = sphi 0, %s108
      %s110 = sphi 0, %s108
      %s111 = sphi 0, %s110
      %s125 = sphi 0, %s111
      %s129 = sphi 0, %s129
      %s131 = sphi 0, %s129
      %s132 = sphi 0, %s131
      %s146 = sphi 0, %s132
      %s150 = sphi 0, %s150
      %s152 = sphi 0, %s150
      %s153 = sphi 0, %s152
      %s167 = sphi 0, %s153
      %s171 = sphi 0, %s171
      %s173 = sphi 0, %s171
      %s174 = sphi 0, %s173
      %s188 = sphi 0, %s174
      %s192 = sphi 0, %s192
      %s194 = sphi 0, %s192
      %s195 = sphi 0, %s194
      %s209 = sphi 0, %s195
      %s213 = sphi 0, %s213
      %s215 = sphi 0, %s213
      %s216 = sphi 0, %s215
      %s230 = sphi 0, %s216
      %s234 = sphi 0, %s234
      %s236 = sphi 0, %s234
      %s237 = sphi 0, %s236
      %s251 = sphi 0, %s237
      %s255 = sphi 0, %s255
      %s257 = sphi 0, %s255
      %s258 = sphi 0, %s257
      %s272 = sphi 0, %s258
      %s276 = sphi 0, %s276
      %s278 = sphi 0, %s276
      %s279 = sphi 0, %s278
      %s293 = sphi 0, %s279
      %s297 = sphi 0, %s297
      %s299 = sphi 0, %s297
      %s300 = sphi 0, %s299
      %s314 = sphi 0, %s300
      %s318 = sphi 0, %s318
      %s320 = sphi 0, %s318
      %s321 = sphi 0, %s320
      %s335 = sphi 0, %s321
      %s339 = sphi 0, %s339
      %s341 = sphi 0, %s339
      %s342 = sphi 0, %s341
      %s356 = sphi 0, %s342
      %s360 = sphi 0, %s360
      %s362 = sphi 0, %s360
      %s363 = sphi 0, %s362
      %s377 = sphi 0, %s363
      %s381 = sphi 0, %s381
      %s383 = sphi 0, %s381
      %s384 = sphi 0, %s383
      %s398 = sphi 0, %s384
      %s402 = sphi 0, %s402
      %s404 = sphi 0, %s402
      %s405 = sphi 0, %s404
      %s419 = sphi 0, %s405
      %s425 = sphi 0, %s427
      %s428 = sphi 0, %s425
      %s429 = sphi 0, %s428
      %s445 = sphi 0, %s429
    $region4: #{model_forward.1} parent=1 // loop_header_branch
      %30 = sbr.rel (%p28) target = $region8
    $region5: #{model_forward.1} parent=1 // loop_body
      %s32 = ssub.s32 %s27, 1
      %s33 = ssub.s32 %s27, 2
      %s34 = sadd.s32 %s27, 1
      %s35 = ssub.s32 %s27, %s34
      %p36 = scmp.eq.s32.totalorder %s35, 0
      %s38 = sadd.s32 %s37, 1
      %s39 = scalar_select %p36, %s37, %s38
      %p42 = pneg %p36
      %p43 = scmp.eq.s32.totalorder %s27, 1
      %p44 = por %p42, %p43
      %p45 = scmp.ne.s32.totalorder %s37, %s40
      %p46 = scmp.eq.s32.totalorder %s27, 0
      %p47 = por %p45, %p46
      %p48 = scmp.ne.s32.totalorder %s37, %s40
      %p49 = scmp.eq.s32.totalorder %s32, 1
      %p50 = por %p48, %p49
      %p51 = scmp.ne.s32.totalorder %s40, %s41
      %p52 = scmp.eq.s32.totalorder %s32, 0
      %p53 = por %p51, %p52
      %p54 = scmp.ne.s32.totalorder %s40, %s41
      %p55 = scmp.eq.s32.totalorder %s33, 1
      %p56 = por %p54, %p55
      %p58 = scmp.ne.s32.totalorder %s41, %s57
      %p59 = scmp.eq.s32.totalorder %s33, 0
      %p60 = por %p58, %p59
      %s61 = ssub.s32 %s27, %s34
      %p62 = scmp.eq.s32.totalorder %s61, 0
      %s64 = sadd.s32 %s63, 1
      %s65 = scalar_select %p62, %s63, %s64
      %p68 = pneg %p62
      %p69 = scmp.eq.s32.totalorder %s27, 1
      %p70 = por %p68, %p69
      %p71 = scmp.ne.s32.totalorder %s63, %s66
      %p72 = scmp.eq.s32.totalorder %s27, 0
      %p73 = por %p71, %p72
      %p74 = scmp.ne.s32.totalorder %s63, %s66
      %p75 = scmp.eq.s32.totalorder %s32, 1
      %p76 = por %p74, %p75
      %p77 = scmp.ne.s32.totalorder %s66, %s67
      %p78 = scmp.eq.s32.totalorder %s32, 0
      %p79 = por %p77, %p78
      %p80 = scmp.ne.s32.totalorder %s66, %s67
      %p81 = scmp.eq.s32.totalorder %s33, 1
      %p82 = por %p80, %p81
      %p84 = scmp.ne.s32.totalorder %s67, %s83
      %p85 = scmp.eq.s32.totalorder %s33, 0
      %p86 = por %p84, %p85
      %s88 = sadd.s32 %s87, 1
      %p91 = scmp.eq.s32.totalorder %s27, 1
      %p92 = scmp.ne.s32.totalorder %s87, %s89
      %p93 = scmp.eq.s32.totalorder %s27, 0
      %p94 = por %p92, %p93
      %p95 = scmp.ne.s32.totalorder %s87, %s89
      %p96 = scmp.eq.s32.totalorder %s32, 1
      %p97 = por %p95, %p96
      %p98 = scmp.ne.s32.totalorder %s89, %s90
      %p99 = scmp.eq.s32.totalorder %s32, 0
      %p100 = por %p98, %p99
      %p101 = scmp.ne.s32.totalorder %s89, %s90
      %p102 = scmp.eq.s32.totalorder %s33, 1
      %p103 = por %p101, %p102
      %p105 = scmp.ne.s32.totalorder %s90, %s104
      %p106 = scmp.eq.s32.totalorder %s33, 0
      %p107 = por %p105, %p106
      %s109 = sadd.s32 %s108, 1
      %p112 = scmp.eq.s32.totalorder %s27, 1
      %p113 = scmp.ne.s32.totalorder %s108, %s110
      %p114 = scmp.eq.s32.totalorder %s27, 0
      %p115 = por %p113, %p114
      %p116 = scmp.ne.s32.totalorder %s108, %s110
      %p117 = scmp.eq.s32.totalorder %s32, 1
      %p118 = por %p116, %p117
      %p119 = scmp.ne.s32.totalorder %s110, %s111
      %p120 = scmp.eq.s32.totalorder %s32, 0
      %p121 = por %p119, %p120
      %p122 = scmp.ne.s32.totalorder %s110, %s111
      %p123 = scmp.eq.s32.totalorder %s33, 1
      %p124 = por %p122, %p123
      %p126 = scmp.ne.s32.totalorder %s111, %s125
      %p127 = scmp.eq.s32.totalorder %s33, 0
      %p128 = por %p126, %p127
      %s130 = sadd.s32 %s129, 1
      %p133 = scmp.eq.s32.totalorder %s27, 1
      %p134 = scmp.ne.s32.totalorder %s129, %s131
      %p135 = scmp.eq.s32.totalorder %s27, 0
      %p136 = por %p134, %p135
      %p137 = scmp.ne.s32.totalorder %s129, %s131
      %p138 = scmp.eq.s32.totalorder %s32, 1
      %p139 = por %p137, %p138
      %p140 = scmp.ne.s32.totalorder %s131, %s132
      %p141 = scmp.eq.s32.totalorder %s32, 0
      %p142 = por %p140, %p141
      %p143 = scmp.ne.s32.totalorder %s131, %s132
      %p144 = scmp.eq.s32.totalorder %s33, 1
      %p145 = por %p143, %p144
      %p147 = scmp.ne.s32.totalorder %s132, %s146
      %p148 = scmp.eq.s32.totalorder %s33, 0
      %p149 = por %p147, %p148
      %s151 = sadd.s32 %s150, 1
      %p154 = scmp.eq.s32.totalorder %s27, 1
      %p155 = scmp.ne.s32.totalorder %s150, %s152
      %p156 = scmp.eq.s32.totalorder %s27, 0
      %p157 = por %p155, %p156
      %p158 = scmp.ne.s32.totalorder %s150, %s152
      %p159 = scmp.eq.s32.totalorder %s32, 1
      %p160 = por %p158, %p159
      %p161 = scmp.ne.s32.totalorder %s152, %s153
      %p162 = scmp.eq.s32.totalorder %s32, 0
      %p163 = por %p161, %p162
      %p164 = scmp.ne.s32.totalorder %s152, %s153
      %p165 = scmp.eq.s32.totalorder %s33, 1
      %p166 = por %p164, %p165
      %p168 = scmp.ne.s32.totalorder %s153, %s167
      %p169 = scmp.eq.s32.totalorder %s33, 0
      %p170 = por %p168, %p169
      %s172 = sadd.s32 %s171, 1
      %p175 = scmp.eq.s32.totalorder %s27, 1
      %p176 = scmp.ne.s32.totalorder %s171, %s173
      %p177 = scmp.eq.s32.totalorder %s27, 0
      %p178 = por %p176, %p177
      %p179 = scmp.ne.s32.totalorder %s171, %s173
      %p180 = scmp.eq.s32.totalorder %s32, 1
      %p181 = por %p179, %p180
      %p182 = scmp.ne.s32.totalorder %s173, %s174
      %p183 = scmp.eq.s32.totalorder %s32, 0
      %p184 = por %p182, %p183
      %p185 = scmp.ne.s32.totalorder %s173, %s174
      %p186 = scmp.eq.s32.totalorder %s33, 1
      %p187 = por %p185, %p186
      %p189 = scmp.ne.s32.totalorder %s174, %s188
      %p190 = scmp.eq.s32.totalorder %s33, 0
      %p191 = por %p189, %p190
      %s193 = sadd.s32 %s192, 1
      %p196 = scmp.eq.s32.totalorder %s27, 1
      %p197 = scmp.ne.s32.totalorder %s192, %s194
      %p198 = scmp.eq.s32.totalorder %s27, 0
      %p199 = por %p197, %p198
      %p200 = scmp.ne.s32.totalorder %s192, %s194
      %p201 = scmp.eq.s32.totalorder %s32, 1
      %p202 = por %p200, %p201
      %p203 = scmp.ne.s32.totalorder %s194, %s195
      %p204 = scmp.eq.s32.totalorder %s32, 0
      %p205 = por %p203, %p204
      %p206 = scmp.ne.s32.totalorder %s194, %s195
      %p207 = scmp.eq.s32.totalorder %s33, 1
      %p208 = por %p206, %p207
      %p210 = scmp.ne.s32.totalorder %s195, %s209
      %p211 = scmp.eq.s32.totalorder %s33, 0
      %p212 = por %p210, %p211
      %s214 = sadd.s32 %s213, 1
      %p217 = scmp.eq.s32.totalorder %s27, 1
      %p218 = scmp.ne.s32.totalorder %s213, %s215
      %p219 = scmp.eq.s32.totalorder %s27, 0
      %p220 = por %p218, %p219
      %p221 = scmp.ne.s32.totalorder %s213, %s215
      %p222 = scmp.eq.s32.totalorder %s32, 1
      %p223 = por %p221, %p222
      %p224 = scmp.ne.s32.totalorder %s215, %s216
      %p225 = scmp.eq.s32.totalorder %s32, 0
      %p226 = por %p224, %p225
      %p227 = scmp.ne.s32.totalorder %s215, %s216
      %p228 = scmp.eq.s32.totalorder %s33, 1
      %p229 = por %p227, %p228
      %p231 = scmp.ne.s32.totalorder %s216, %s230
      %p232 = scmp.eq.s32.totalorder %s33, 0
      %p233 = por %p231, %p232
      %s235 = sadd.s32 %s234, 1
      %p238 = scmp.eq.s32.totalorder %s27, 1
      %p239 = scmp.ne.s32.totalorder %s234, %s236
      %p240 = scmp.eq.s32.totalorder %s27, 0
      %p241 = por %p239, %p240
      %p242 = scmp.ne.s32.totalorder %s234, %s236
      %p243 = scmp.eq.s32.totalorder %s32, 1
      %p244 = por %p242, %p243
      %p245 = scmp.ne.s32.totalorder %s236, %s237
      %p246 = scmp.eq.s32.totalorder %s32, 0
      %p247 = por %p245, %p246
      %p248 = scmp.ne.s32.totalorder %s236, %s237
      %p249 = scmp.eq.s32.totalorder %s33, 1
      %p250 = por %p248, %p249
      %p252 = scmp.ne.s32.totalorder %s237, %s251
      %p253 = scmp.eq.s32.totalorder %s33, 0
      %p254 = por %p252, %p253
      %s256 = sadd.s32 %s255, 1
      %p259 = scmp.eq.s32.totalorder %s27, 1
      %p260 = scmp.ne.s32.totalorder %s255, %s257
      %p261 = scmp.eq.s32.totalorder %s27, 0
      %p262 = por %p260, %p261
      %p263 = scmp.ne.s32.totalorder %s255, %s257
      %p264 = scmp.eq.s32.totalorder %s32, 1
      %p265 = por %p263, %p264
      %p266 = scmp.ne.s32.totalorder %s257, %s258
      %p267 = scmp.eq.s32.totalorder %s32, 0
      %p268 = por %p266, %p267
      %p269 = scmp.ne.s32.totalorder %s257, %s258
      %p270 = scmp.eq.s32.totalorder %s33, 1
      %p271 = por %p269, %p270
      %p273 = scmp.ne.s32.totalorder %s258, %s272
      %p274 = scmp.eq.s32.totalorder %s33, 0
      %p275 = por %p273, %p274
      %s277 = sadd.s32 %s276, 1
      %p280 = scmp.eq.s32.totalorder %s27, 1
      %p281 = scmp.ne.s32.totalorder %s276, %s278
      %p282 = scmp.eq.s32.totalorder %s27, 0
      %p283 = por %p281, %p282
      %p284 = scmp.ne.s32.totalorder %s276, %s278
      %p285 = scmp.eq.s32.totalorder %s32, 1
      %p286 = por %p284, %p285
      %p287 = scmp.ne.s32.totalorder %s278, %s279
      %p288 = scmp.eq.s32.totalorder %s32, 0
      %p289 = por %p287, %p288
      %p290 = scmp.ne.s32.totalorder %s278, %s279
      %p291 = scmp.eq.s32.totalorder %s33, 1
      %p292 = por %p290, %p291
      %p294 = scmp.ne.s32.totalorder %s279, %s293
      %p295 = scmp.eq.s32.totalorder %s33, 0
      %p296 = por %p294, %p295
      %s298 = sadd.s32 %s297, 1
      %p301 = scmp.eq.s32.totalorder %s27, 1
      %p302 = scmp.ne.s32.totalorder %s297, %s299
      %p303 = scmp.eq.s32.totalorder %s27, 0
      %p304 = por %p302, %p303
      %p305 = scmp.ne.s32.totalorder %s297, %s299
      %p306 = scmp.eq.s32.totalorder %s32, 1
      %p307 = por %p305, %p306
      %p308 = scmp.ne.s32.totalorder %s299, %s300
      %p309 = scmp.eq.s32.totalorder %s32, 0
      %p310 = por %p308, %p309
      %p311 = scmp.ne.s32.totalorder %s299, %s300
      %p312 = scmp.eq.s32.totalorder %s33, 1
      %p313 = por %p311, %p312
      %p315 = scmp.ne.s32.totalorder %s300, %s314
      %p316 = scmp.eq.s32.totalorder %s33, 0
      %p317 = por %p315, %p316
      %s319 = sadd.s32 %s318, 1
      %p322 = scmp.eq.s32.totalorder %s27, 1
      %p323 = scmp.ne.s32.totalorder %s318, %s320
      %p324 = scmp.eq.s32.totalorder %s27, 0
      %p325 = por %p323, %p324
      %p326 = scmp.ne.s32.totalorder %s318, %s320
      %p327 = scmp.eq.s32.totalorder %s32, 1
      %p328 = por %p326, %p327
      %p329 = scmp.ne.s32.totalorder %s320, %s321
      %p330 = scmp.eq.s32.totalorder %s32, 0
      %p331 = por %p329, %p330
      %p332 = scmp.ne.s32.totalorder %s320, %s321
      %p333 = scmp.eq.s32.totalorder %s33, 1
      %p334 = por %p332, %p333
      %p336 = scmp.ne.s32.totalorder %s321, %s335
      %p337 = scmp.eq.s32.totalorder %s33, 0
      %p338 = por %p336, %p337
      %s340 = sadd.s32 %s339, 1
      %p343 = scmp.eq.s32.totalorder %s27, 1
      %p344 = scmp.ne.s32.totalorder %s339, %s341
      %p345 = scmp.eq.s32.totalorder %s27, 0
      %p346 = por %p344, %p345
      %p347 = scmp.ne.s32.totalorder %s339, %s341
      %p348 = scmp.eq.s32.totalorder %s32, 1
      %p349 = por %p347, %p348
      %p350 = scmp.ne.s32.totalorder %s341, %s342
      %p351 = scmp.eq.s32.totalorder %s32, 0
      %p352 = por %p350, %p351
      %p353 = scmp.ne.s32.totalorder %s341, %s342
      %p354 = scmp.eq.s32.totalorder %s33, 1
      %p355 = por %p353, %p354
      %p357 = scmp.ne.s32.totalorder %s342, %s356
      %p358 = scmp.eq.s32.totalorder %s33, 0
      %p359 = por %p357, %p358
      %s361 = sadd.s32 %s360, 1
      %p364 = scmp.eq.s32.totalorder %s27, 1
      %p365 = scmp.ne.s32.totalorder %s360, %s362
      %p366 = scmp.eq.s32.totalorder %s27, 0
      %p367 = por %p365, %p366
      %p368 = scmp.ne.s32.totalorder %s360, %s362
      %p369 = scmp.eq.s32.totalorder %s32, 1
      %p370 = por %p368, %p369
      %p371 = scmp.ne.s32.totalorder %s362, %s363
      %p372 = scmp.eq.s32.totalorder %s32, 0
      %p373 = por %p371, %p372
      %p374 = scmp.ne.s32.totalorder %s362, %s363
      %p375 = scmp.eq.s32.totalorder %s33, 1
      %p376 = por %p374, %p375
      %p378 = scmp.ne.s32.totalorder %s363, %s377
      %p379 = scmp.eq.s32.totalorder %s33, 0
      %p380 = por %p378, %p379
      %s382 = sadd.s32 %s381, 1
      %p385 = scmp.eq.s32.totalorder %s27, 1
      %p386 = scmp.ne.s32.totalorder %s381, %s383
      %p387 = scmp.eq.s32.totalorder %s27, 0
      %p388 = por %p386, %p387
      %p389 = scmp.ne.s32.totalorder %s381, %s383
      %p390 = scmp.eq.s32.totalorder %s32, 1
      %p391 = por %p389, %p390
      %p392 = scmp.ne.s32.totalorder %s383, %s384
      %p393 = scmp.eq.s32.totalorder %s32, 0
      %p394 = por %p392, %p393
      %p395 = scmp.ne.s32.totalorder %s383, %s384
      %p396 = scmp.eq.s32.totalorder %s33, 1
      %p397 = por %p395, %p396
      %p399 = scmp.ne.s32.totalorder %s384, %s398
      %p400 = scmp.eq.s32.totalorder %s33, 0
      %p401 = por %p399, %p400
      %s403 = sadd.s32 %s402, 1
      %p406 = scmp.eq.s32.totalorder %s27, 1
      %p407 = scmp.ne.s32.totalorder %s402, %s404
      %p408 = scmp.eq.s32.totalorder %s27, 0
      %p409 = por %p407, %p408
      %p410 = scmp.ne.s32.totalorder %s402, %s404
      %p411 = scmp.eq.s32.totalorder %s32, 1
      %p412 = por %p410, %p411
      %p413 = scmp.ne.s32.totalorder %s404, %s405
      %p414 = scmp.eq.s32.totalorder %s32, 0
      %p415 = por %p413, %p414
      %p416 = scmp.ne.s32.totalorder %s404, %s405
      %p417 = scmp.eq.s32.totalorder %s33, 1
      %p418 = por %p416, %p417
      %p420 = scmp.ne.s32.totalorder %s405, %s419
      %p421 = scmp.eq.s32.totalorder %s33, 0
      %p422 = por %p420, %p421
      %s423 = ssub.s32 %s27, %s34
      %p424 = scmp.eq.s32.totalorder %s423, 0
      %s426 = sadd.s32 %s425, 1
      %s427 = scalar_select %p424, %s425, %s426
      %p430 = pneg %p424
      %p431 = scmp.eq.s32.totalorder %s27, 1
      %p432 = por %p430, %p431
      %p433 = scmp.ne.s32.totalorder %s425, %s428
      %p434 = scmp.eq.s32.totalorder %s27, 0
      %p435 = por %p433, %p434
      %p436 = scmp.ne.s32.totalorder %s425, %s428
      %p437 = scmp.eq.s32.totalorder %s32, 1
      %p438 = por %p436, %p437
      %p439 = scmp.ne.s32.totalorder %s428, %s429
      %p440 = scmp.eq.s32.totalorder %s32, 0
      %p441 = por %p439, %p440
      %p442 = scmp.ne.s32.totalorder %s428, %s429
      %p443 = scmp.eq.s32.totalorder %s33, 1
      %p444 = por %p442, %p443
      %p446 = scmp.ne.s32.totalorder %s429, %s445
      %p447 = scmp.eq.s32.totalorder %s33, 0
      %p448 = por %p446, %p447
      %p449 = scmp.le.s32.totalorder 1, %s27
      %p450 = scmp.lt.s32.totalorder %s27, 3
      %p451 = pnand %p449, %p450
      %p452 = pneg %p451
      // Predicated region
      $region9: #{model_forward.1} parent=5 // pred_check
        _
      $region10: #{model_forward.1} parent=5 // pred_check_branch
        %454 = sbr.rel (%p451) target = $region12
      $region11: #{model_forward.1} parent=5 // pred_region
        %s455 = ssub.s32 %s27, 1
        // Predicated region
        $region13: #{model_forward.1} parent=11 // pred_check
          %p456 = pneg %p100
        $region14: #{model_forward.1} parent=11 // pred_check_branch
          %458 = sbr.rel (%p456) target = $region16
        $region15: #{model_forward.1} parent=11 // pred_region
          _
        $region16: #{model_forward.1} parent=11 // pred_fallthru
          _
        // Predicated region
        $region17: #{model_forward.1} parent=11 // pred_check
          %p459 = pneg %p121
        $region18: #{model_forward.1} parent=11 // pred_check_branch
          %461 = sbr.rel (%p459) target = $region20
        $region19: #{model_forward.1} parent=11 // pred_region
          _
        $region20: #{model_forward.1} parent=11 // pred_fallthru
          _
        // Predicated region
        $region21: #{model_forward.1} parent=11 // pred_check
          %p462 = pneg %p142
        $region22: #{model_forward.1} parent=11 // pred_check_branch
          %464 = sbr.rel (%p462) target = $region24
        $region23: #{model_forward.1} parent=11 // pred_region
          _
        $region24: #{model_forward.1} parent=11 // pred_fallthru
          _
        // Predicated region
        $region25: #{model_forward.1} parent=11 // pred_check
          %p465 = pneg %p163
        $region26: #{model_forward.1} parent=11 // pred_check_branch
          %467 = sbr.rel (%p465) target = $region28
        $region27: #{model_forward.1} parent=11 // pred_region
          _
        $region28: #{model_forward.1} parent=11 // pred_fallthru
          _
        // Predicated region
        $region29: #{model_forward.1} parent=11 // pred_check
          %p468 = pneg %p184
        $region30: #{model_forward.1} parent=11 // pred_check_branch
          %470 = sbr.rel (%p468) target = $region32
        $region31: #{model_forward.1} parent=11 // pred_region
          _
        $region32: #{model_forward.1} parent=11 // pred_fallthru
          _
        // Predicated region
        $region33: #{model_forward.1} parent=11 // pred_check
          %p471 = pneg %p205
        $region34: #{model_forward.1} parent=11 // pred_check_branch
          %473 = sbr.rel (%p471) target = $region36
        $region35: #{model_forward.1} parent=11 // pred_region
          _
        $region36: #{model_forward.1} parent=11 // pred_fallthru
          _
        // Predicated region
        $region37: #{model_forward.1} parent=11 // pred_check
          %p474 = pneg %p226
        $region38: #{model_forward.1} parent=11 // pred_check_branch
          %476 = sbr.rel (%p474) target = $region40
        $region39: #{model_forward.1} parent=11 // pred_region
          _
        $region40: #{model_forward.1} parent=11 // pred_fallthru
          _
        // Predicated region
        $region41: #{model_forward.1} parent=11 // pred_check
          %p477 = pneg %p247
        $region42: #{model_forward.1} parent=11 // pred_check_branch
          %479 = sbr.rel (%p477) target = $region44
        $region43: #{model_forward.1} parent=11 // pred_region
          _
        $region44: #{model_forward.1} parent=11 // pred_fallthru
          _
        // Predicated region
        $region45: #{model_forward.1} parent=11 // pred_check
          %p480 = pneg %p268
        $region46: #{model_forward.1} parent=11 // pred_check_branch
          %482 = sbr.rel (%p480) target = $region48
        $region47: #{model_forward.1} parent=11 // pred_region
          _
        $region48: #{model_forward.1} parent=11 // pred_fallthru
          _
        // Predicated region
        $region49: #{model_forward.1} parent=11 // pred_check
          %p483 = pneg %p289
        $region50: #{model_forward.1} parent=11 // pred_check_branch
          %485 = sbr.rel (%p483) target = $region52
        $region51: #{model_forward.1} parent=11 // pred_region
          _
        $region52: #{model_forward.1} parent=11 // pred_fallthru
          _
        // Predicated region
        $region53: #{model_forward.1} parent=11 // pred_check
          %p486 = pneg %p310
        $region54: #{model_forward.1} parent=11 // pred_check_branch
          %488 = sbr.rel (%p486) target = $region56
        $region55: #{model_forward.1} parent=11 // pred_region
          _
        $region56: #{model_forward.1} parent=11 // pred_fallthru
          _
        // Predicated region
        $region57: #{model_forward.1} parent=11 // pred_check
          %p489 = pneg %p331
        $region58: #{model_forward.1} parent=11 // pred_check_branch
          %491 = sbr.rel (%p489) target = $region60
        $region59: #{model_forward.1} parent=11 // pred_region
          _
        $region60: #{model_forward.1} parent=11 // pred_fallthru
          _
        // Predicated region
        $region61: #{model_forward.1} parent=11 // pred_check
          %p492 = pneg %p352
        $region62: #{model_forward.1} parent=11 // pred_check_branch
          %494 = sbr.rel (%p492) target = $region64
        $region63: #{model_forward.1} parent=11 // pred_region
          _
        $region64: #{model_forward.1} parent=11 // pred_fallthru
          _
        // Predicated region
        $region65: #{model_forward.1} parent=11 // pred_check
          %p495 = pneg %p373
        $region66: #{model_forward.1} parent=11 // pred_check_branch
          %497 = sbr.rel (%p495) target = $region68
        $region67: #{model_forward.1} parent=11 // pred_region
          _
        $region68: #{model_forward.1} parent=11 // pred_fallthru
          _
        // Predicated region
        $region69: #{model_forward.1} parent=11 // pred_check
          %p498 = pneg %p394
        $region70: #{model_forward.1} parent=11 // pred_check_branch
          %500 = sbr.rel (%p498) target = $region72
        $region71: #{model_forward.1} parent=11 // pred_region
          _
        $region72: #{model_forward.1} parent=11 // pred_fallthru
          _
        // Predicated region
        $region73: #{model_forward.1} parent=11 // pred_check
          %p501 = pneg %p415
        $region74: #{model_forward.1} parent=11 // pred_check_branch
          %503 = sbr.rel (%p501) target = $region76
        $region75: #{model_forward.1} parent=11 // pred_region
          _
        $region76: #{model_forward.1} parent=11 // pred_fallthru
          _
      $region12: #{model_forward.1} parent=5 // pred_fallthru
        _
      %p504 = scmp.lt.s32.totalorder %s27, 2
      // Predicated region
      $region77: #{model_forward.1} parent=5 // pred_check
        %p505 = pneg %p504
      $region78: #{model_forward.1} parent=5 // pred_check_branch
        %507 = sbr.rel (%p505) target = $region80
      $region79: #{model_forward.1} parent=5 // pred_region
        // Predicated region
        $region81: #{model_forward.1} parent=79 // pred_check
          %p508 = pneg %p47
        $region82: #{model_forward.1} parent=79 // pred_check_branch
          %510 = sbr.rel (%p508) target = $region84
        $region83: #{model_forward.1} parent=79 // pred_region
          %p511 = scmp.lt.s32.totalorder %s27, 1
          %s512 = scalar_select %p511, %s27, 1
          %s513 = smul.addr %s512, 8
          %s514 = scalar_lea.vmem %s0, %s513
        $region84: #{model_forward.1} parent=79 // pred_fallthru
          _
        // Predicated region
        $region85: #{model_forward.1} parent=79 // pred_check
          %p515 = pneg %p73
        $region86: #{model_forward.1} parent=79 // pred_check_branch
          %517 = sbr.rel (%p515) target = $region88
        $region87: #{model_forward.1} parent=79 // pred_region
          %p518 = scmp.lt.s32.totalorder %s27, 1
          %s519 = scalar_select %p518, %s27, 1
          %s520 = scalar_lea.vmem %s1, %s519
        $region88: #{model_forward.1} parent=79 // pred_fallthru
          _
      $region80: #{model_forward.1} parent=5 // pred_fallthru
        _
      %p521 = scmp.le.s32.totalorder 1, %s27
      %p522 = scmp.lt.s32.totalorder %s27, 3
      %p523 = pnand %p521, %p522
      %p524 = pneg %p523
      // Predicated region
      $region89: #{model_forward.1} parent=5 // pred_check
        _
      $region90: #{model_forward.1} parent=5 // pred_check_branch
        %526 = sbr.rel (%p523) target = $region92
      $region91: #{model_forward.1} parent=5 // pred_region
        %s527 = ssub.s32 %s27, 1
        %p528 = scmp.lt.s32.totalorder %s32, 1
        %s529 = scalar_select %p528, %s32, 1
        %s530 = smul.addr %s529, 8
        %s531 = scalar_lea.vmem %s0, %s530
        %p532 = pneg %p53
        %p533 = pneg %p50
        %p534 = scmp.lt.s32.totalorder %s32, 1
        %s535 = scalar_select %p534, %s32, 1
        %s536 = scalar_lea.vmem %s1, %s535
        %p537 = pneg %p79
        %p538 = pneg %p76
        %p539 = pneg %p100
        %p540 = pneg %p97
        %p541 = pneg %p121
        %p542 = pneg %p118
        %p543 = pneg %p142
        %p544 = pneg %p139
        %p545 = pneg %p163
        %p546 = pneg %p160
        %p547 = pneg %p184
        %p548 = pneg %p181
        %p549 = pneg %p205
        %p550 = pneg %p202
        %p551 = pneg %p226
        %p552 = pneg %p223
        %p553 = pneg %p247
        %p554 = pneg %p244
        %p555 = pneg %p268
        %p556 = pneg %p265
        %p557 = pneg %p289
        %p558 = pneg %p286
        %p559 = pneg %p310
        %p560 = pneg %p307
        %p561 = pneg %p331
        %p562 = pneg %p328
        %p563 = pneg %p352
        %p564 = pneg %p349
        %p565 = pneg %p373
        %p566 = pneg %p370
        %p567 = pneg %p394
        %p568 = pneg %p391
        %p569 = pneg %p415
        %p570 = pneg %p412
        %p571 = pneg %p441
        %p572 = pneg %p438
        %s573 = sand.u32 %s428, 1
        %s574 = scalar_lea.sflag [#allocation3], %s573
        %s575 = sand.u32 %s428, 1
        %s576 = scalar_lea.vmem [#allocation2], %s575
        %p577 = scmp.lt.s32.totalorder %s32, 1
        %s578 = scalar_select %p577, %s32, 1
        %s579 = smul.addr %s578, 8
        %s580 = scalar_lea.vmem %s0, %s579
        %p581 = scmp.lt.s32.totalorder %s32, 1
        %s582 = scalar_select %p581, %s32, 1
        %s583 = scalar_lea.vmem %s1, %s582
        %v584 = vld [vmem:[%s580] sm:$0xff]
        %v585 = vld [vmem:[%s583] sm:$0x1]
        %v586 = vsub.f32 1.0, %v585
        %v587 = vmul.f32 %v586, -10000.0
        %v588 = vld [vmem:[%s2] sm:$0x3]
        %vm589 = vcmask 261120
        %v590 = vsel %vm589, %v584, 0.0
        %591 = vadd.xlane.f32.xlu0 %v590
        %v592 = vpop.xlane.xlu0 %591
        %v593 = vrcp.pop 32.0
        %v594 = vmul.f32 %v592, %v593
        %v595 = vsub.f32 %v584, %v594
        %v596 = vmul.f32 %v595, %v595
        %v597 = vsel %vm589, %v596, 0.0
        %598 = vadd.xlane.f32.xlu0 %v597
        %v599 = vpop.xlane.xlu0 %598
        %v600 = vmul.f32 %v599, %v593
        %v601 = vadd.f32 %v600, 1e-12
        %v602 = vrsqrt.pop %v601
        %v603 = vmul.f32 %v595, %v602
        %v604 = vlaneseq
        %v605 = vshrl.u32 %v604, 7
        %v606 = vsub.s32 0, %v605
        %v607 = vrot.slane %v588, %v606
        %v608 = vmul.f32 %v603, %v607
        %v609 = vlaneseq
        %v610 = vshrl.u32 %v609, 7
        %v611 = vsub.s32 1, %v610
        %v612 = vrot.slane %v588, %v611
        %v613 = vadd.f32 %v608, %v612
        %v614 = vld [vmem:[%s3] sm:$0xff]
        %v615 = vld [vmem:[%s3 + $0x8] sm:$0xff]
        %v616 = vld [vmem:[%s3 + $0x10] sm:$0xff]
        %v617 = vld [vmem:[%s3 + $0x18] sm:$0xff]
        %v618 = vld [vmem:[%s4] sm:$0x1]
        %v620 = vlaneseq
        %v621 = vshrl.u32 %v620, 7
        %v622 = vsub.s32 0, %v621
        %v623 = vrot.slane %v618, %v622
        %v626 = vsel %vm589, %v613, 0
        %628 = vmatprep.subr.mxu0 0.0
        %629 = vmatpush1.msra.mxu0 %v614
        %630 = vmatprep.subr.mxu0 0.0
        %631 = vmatpush1.msra.mxu0 %v615
        %632 = vmatprep.subr.mxu0 0.0
        %633 = vmatpush1.msra.mxu0 %v616
        %634 = vmatprep.subr.mxu0 0.0
        %635 = vmatpush1.msra.mxu0 %v617
        %636 = vmatprep.subr.mxu0 0.0
        %637 = vmatpush1.msra.mxu0 0.0
        %638 = vmatprep.subr.mxu0 0.0
        %639 = vmatpush1.msra.mxu0 0.0
        %640 = vmatprep.subr.mxu0 0.0
        %641 = vmatpush1.msra.mxu0 0.0
        %642 = vmatprep.subr.mxu0 0.0
        %643 = vmatpush1.msra.mxu0 0.0
        %644 = vmatprep.subr.mxu0 0.0
        %645 = vmatpush1.msra.mxu0 0.0
        %646 = vmatprep.subr.mxu0 0.0
        %647 = vmatpush1.msra.mxu0 0.0
        %648 = vmatprep.subr.mxu0 0.0
        %649 = vmatpush1.msra.mxu0 0.0
        %650 = vmatprep.subr.mxu0 0.0
        %651 = vmatpush1.msra.mxu0 0.0
        %652 = vmatprep.subr.mxu0 0.0
        %653 = vmatpush1.msra.mxu0 0.0
        %654 = vmatprep.subr.mxu0 0.0
        %655 = vmatpush1.msra.mxu0 0.0
        %656 = vmatprep.subr.mxu0 0.0
        %657 = vmatpush1.msra.mxu0 0.0
        %658 = vmatprep.subr.mxu0 0.0
        %659 = vmatpush1.msra.mxu0 0.0
        %660 = vmatprep.subr.mxu0 0.0
        %661 = vmatpush1.msra.mxu0 0.0
        %662 = vmatprep.subr.mxu0 0.0
        %663 = vmatpush1.msra.mxu0 0.0
        %664 = vmatprep.subr.mxu0 0.0
        %665 = vmatpush1.msra.mxu0 0.0
        %666 = vmatprep.subr.mxu0 0.0
        %667 = vmatpush1.msra.mxu0 0.0
        %668 = vmatprep.subr.mxu0 0.0
        %669 = vmatpush1.msra.mxu0 0.0
        %670 = vmatprep.subr.mxu0 0.0
        %671 = vmatpush1.msra.mxu0 0.0
        %672 = vmatprep.subr.mxu0 0.0
        %673 = vmatpush1.msra.mxu0 0.0
        %674 = vmatprep.subr.mxu0 0.0
        %675 = vmatpush1.msra.mxu0 0.0
        %676 = vmatprep.subr.mxu0 0.0
        %677 = vmatpush1.msra.mxu0 0.0
        %678 = vmatprep.subr.mxu0 0.0
        %679 = vmatpush1.msra.mxu0 0.0
        %680 = vmatprep.subr.mxu0 0.0
        %681 = vmatpush1.msra.mxu0 0.0
        %682 = vmatprep.subr.mxu0 0.0
        %683 = vmatpush1.msra.mxu0 0.0
        %684 = vmatprep.subr.mxu0 0.0
        %685 = vmatpush1.msra.mxu0 0.0
        %686 = vmatprep.subr.mxu0 0.0
        %687 = vmatpush1.msra.mxu0 0.0
        %688 = vmatprep.subr.mxu0 0.0
        %689 = vmatpush1.msra.mxu0 0.0
        %690 = vmatprep.subr.mxu0 0.0
        %691 = vmatpush1.msra.mxu0 0.0
        %692 = vmatprep.mubr.f32.mxu0 0.0
        %693 = vmatmul.mubr.f32.gmra.mrb[0].mxu0 %v626
        %v694 = vpop.f32.mrb[0].mxu0
        %v695 = vadd.f32 %v623, %v694
        %v696 = vpop.f32.mrb[0].mxu0
        %697 = vdwg.mxu0
        %v698 = vld [vmem:[%s5] sm:$0xff]
        %v699 = vld [vmem:[%s5 + $0x8] sm:$0xff]
        %v700 = vld [vmem:[%s5 + $0x10] sm:$0xff]
        %v701 = vld [vmem:[%s5 + $0x18] sm:$0xff]
        %703 = vrot.lane.b32.xlu0 %v695, 96
        %v704 = vpop.permute.xlu0 %703
        %vm705 = vcmask 130048
        %v706 = vsel %vm705, %v695, 0
        %v708 = vsel %vm705, %v704, 0
        %710 = vmatprep.subr.mxu0 0.0
        %711 = vmatpush1.xpose.msra.mxu0 %v708
        %712 = vmatprep.subr.mxu0 0.0
        %713 = vmatpush1.xpose.msra.mxu0 0.0
        %714 = vmatprep.subr.mxu0 0.0
        %715 = vmatpush1.xpose.msra.mxu0 0.0
        %716 = vmatprep.subr.mxu0 0.0
        %717 = vmatpush1.xpose.msra.mxu0 0.0
        %718 = vmatprep.subr.mxu0 0.0
        %719 = vmatpush1.xpose.msra.mxu0 0.0
        %720 = vmatprep.subr.mxu0 0.0
        %721 = vmatpush1.xpose.msra.mxu0 0.0
        %722 = vmatprep.subr.mxu0 0.0
        %723 = vmatpush1.xpose.msra.mxu0 0.0
        %724 = vmatprep.subr.mxu0 0.0
        %725 = vmatpush1.xpose.msra.mxu0 0.0
        %726 = vmatprep.subr.mxu0 0.0
        %727 = vmatpush1.xpose.msra.mxu0 0.0
        %728 = vmatprep.subr.mxu0 0.0
        %729 = vmatpush1.xpose.msra.mxu0 0.0
        %730 = vmatprep.subr.mxu0 0.0
        %731 = vmatpush1.xpose.msra.mxu0 0.0
        %732 = vmatprep.subr.mxu0 0.0
        %733 = vmatpush1.xpose.msra.mxu0 0.0
        %734 = vmatprep.subr.mxu0 0.0
        %735 = vmatpush1.xpose.msra.mxu0 0.0
        %736 = vmatprep.subr.mxu0 0.0
        %737 = vmatpush1.xpose.msra.mxu0 0.0
        %738 = vmatprep.subr.mxu0 0.0
        %739 = vmatpush1.xpose.msra.mxu0 0.0
        %740 = vmatprep.subr.mxu0 0.0
        %741 = vmatpush1.xpose.msra.mxu0 0.0
        %742 = vmatprep.subr.mxu0 0.0
        %743 = vmatpush1.xpose.msra.mxu0 0.0
        %744 = vmatprep.subr.mxu0 0.0
        %745 = vmatpush1.xpose.msra.mxu0 0.0
        %746 = vmatprep.subr.mxu0 0.0
        %747 = vmatpush1.xpose.msra.mxu0 0.0
        %748 = vmatprep.subr.mxu0 0.0
        %749 = vmatpush1.xpose.msra.mxu0 0.0
        %750 = vmatprep.subr.mxu0 0.0
        %751 = vmatpush1.xpose.msra.mxu0 0.0
        %752 = vmatprep.subr.mxu0 0.0
        %753 = vmatpush1.xpose.msra.mxu0 0.0
        %754 = vmatprep.subr.mxu0 0.0
        %755 = vmatpush1.xpose.msra.mxu0 0.0
        %756 = vmatprep.subr.mxu0 0.0
        %757 = vmatpush1.xpose.msra.mxu0 0.0
        %758 = vmatprep.subr.mxu0 0.0
        %759 = vmatpush1.xpose.msra.mxu0 0.0
        %760 = vmatprep.subr.mxu0 0.0
        %761 = vmatpush1.xpose.msra.mxu0 0.0
        %762 = vmatprep.subr.mxu0 0.0
        %763 = vmatpush1.xpose.msra.mxu0 0.0
        %764 = vmatprep.subr.mxu0 0.0
        %765 = vmatpush1.xpose.msra.mxu0 0.0
        %766 = vmatprep.subr.mxu0 0.0
        %767 = vmatpush1.xpose.msra.mxu0 0.0
        %768 = vmatprep.subr.mxu0 0.0
        %769 = vmatpush1.xpose.msra.mxu0 0.0
        %770 = vmatprep.subr.mxu0 0.0
        %771 = vmatpush1.xpose.msra.mxu0 0.0
        %772 = vmatprep.subr.mxu0 0.0
        %773 = vmatpush1.xpose.msra.mxu0 0.0
        %774 = vmatprep.mubr.f32.mxu0 0.0
        %775 = vmatmul.mubr.f32.gmra.mrb[0].mxu0 %v706
        %v776 = vpop.f32.mrb[0].mxu0
        %v777 = vadd.f32 0.0, %v776
        %v778 = vpop.f32.mrb[0].mxu0
        %779 = vdwg.mxu0
        %v780 = vmul.f32 %v777, 0.25
        %v782 = vlaneseq
        %v783 = vshrl.u32 %v782, 7
        %v784 = vsub.s32 0, %v783
        %v785 = vrot.slane %v587, %v784
        %v787 = vadd.f32 %v780, %v785
        %vm788 = vcmask 64512
        %v789 = vsel %vm788, %v787, -inf
        %790 = vmax.xlane.f32.xlu0 %v789
        %v791 = vpop.xlane.xlu0 %790
        %v792 = vsub.f32 %v787, %v791
        %v793 = vmul.f32 %v792, 1.442695
        %v794 = vpow.pop %v793
        %v795 = vsel %vm788, %v794, 0.0
        %796 = vadd.xlane.f32.xlu0 %v795
        %v797 = vpop.xlane.xlu0 %796
        %v798 = vrcp.pop %v797
        %v799 = vmul.f32 %v794, %v798
        %800 = vrot.lane.b32.xlu0 %v695, 64
        %v801 = vpop.permute.xlu0 %800
        %v804 = vsel %vm788, %v799, 0
        %806 = vmatprep.subr.mxu0 0.0
        %807 = vmatpush1.msra.mxu0 %v801
        %808 = vmatprep.subr.mxu0 0.0
        %809 = vmatpush1.msra.mxu0 0.0
        %810 = vmatprep.subr.mxu0 0.0
        %811 = vmatpush1.msra.mxu0 0.0
        %812 = vmatprep.subr.mxu0 0.0
        %813 = vmatpush1.msra.mxu0 0.0
        %814 = vmatprep.subr.mxu0 0.0
        %815 = vmatpush1.msra.mxu0 0.0
        %816 = vmatprep.subr.mxu0 0.0
        %817 = vmatpush1.msra.mxu0 0.0
        %818 = vmatprep.subr.mxu0 0.0
        %819 = vmatpush1.msra.mxu0 0.0
        %820 = vmatprep.subr.mxu0 0.0
        %821 = vmatpush1.msra.mxu0 0.0
        %822 = vmatprep.subr.mxu0 0.0
        %823 = vmatpush1.msra.mxu0 0.0
        %824 = vmatprep.subr.mxu0 0.0
        %825 = vmatpush1.msra.mxu0 0.0
        %826 = vmatprep.subr.mxu0 0.0
        %827 = vmatpush1.msra.mxu0 0.0
        %828 = vmatprep.subr.mxu0 0.0
        %829 = vmatpush1.msra.mxu0 0.0
        %830 = vmatprep.subr.mxu0 0.0
        %831 = vmatpush1.msra.mxu0 0.0
        %832 = vmatprep.subr.mxu0 0.0
        %833 = vmatpush1.msra.mxu0 0.0
        %834 = vmatprep.subr.mxu0 0.0
        %835 = vmatpush1.msra.mxu0 0.0
        %836 = vmatprep.subr.mxu0 0.0
        %837 = vmatpush1.msra.mxu0 0.0
        %838 = vmatprep.subr.mxu0 0.0
        %839 = vmatpush1.msra.mxu0 0.0
        %840 = vmatprep.subr.mxu0 0.0
        %841 = vmatpush1.msra.mxu0 0.0
        %842 = vmatprep.subr.mxu0 0.0
        %843 = vmatpush1.msra.mxu0 0.0
        %844 = vmatprep.subr.mxu0 0.0
        %845 = vmatpush1.msra.mxu0 0.0
        %846 = vmatprep.subr.mxu0 0.0
        %847 = vmatpush1.msra.mxu0 0.0
        %848 = vmatprep.subr.mxu0 0.0
        %849 = vmatpush1.msra.mxu0 0.0
        %850 = vmatprep.subr.mxu0 0.0
        %851 = vmatpush1.msra.mxu0 0.0
        %852 = vmatprep.subr.mxu0 0.0
        %853 = vmatpush1.msra.mxu0 0.0
        %854 = vmatprep.subr.mxu0 0.0
        %855 = vmatpush1.msra.mxu0 0.0
        %856 = vmatprep.subr.mxu0 0.0
        %857 = vmatpush1.msra.mxu0 0.0
        %858 = vmatprep.subr.mxu0 0.0
        %859 = vmatpush1.msra.mxu0 0.0
        %860 = vmatprep.subr.mxu0 0.0
        %861 = vmatpush1.msra.mxu0 0.0
        %862 = vmatprep.subr.mxu0 0.0
        %863 = vmatpush1.msra.mxu0 0.0
        %864 = vmatprep.subr.mxu0 0.0
        %865 = vmatpush1.msra.mxu0 0.0
        %866 = vmatprep.subr.mxu0 0.0
        %867 = vmatpush1.msra.mxu0 0.0
        %868 = vmatprep.subr.mxu0 0.0
        %869 = vmatpush1.msra.mxu0 0.0
        %870 = vmatprep.mubr.f32.mxu0 0.0
        %871 = vmatmul.mubr.f32.gmra.mrb[0].mxu0 %v804
        %v872 = vpop.f32.mrb[0].mxu0
        %v873 = vadd.f32 0.0, %v872
        %v874 = vpop.f32.mrb[0].mxu0
        %875 = vdwg.mxu0
        %876 = vrot.lane.b32.xlu0 %v695, 112
        %v877 = vpop.permute.xlu0 %876
        %878 = vrot.lane.b32.xlu0 %v695, 80
        %v879 = vpop.permute.xlu0 %878
        %v880 = vsel %vm705, %v877, 0
        %v882 = vsel %vm705, %v879, 0
        %884 = vmatprep.subr.mxu0 0.0
        %885 = vmatpush1.xpose.msra.mxu0 %v882
        %886 = vmatprep.subr.mxu0 0.0
        %887 = vmatpush1.xpose.msra.mxu0 0.0
        %888 = vmatprep.subr.mxu0 0.0
        %889 = vmatpush1.xpose.msra.mxu0 0.0
        %890 = vmatprep.subr.mxu0 0.0
        %891 = vmatpush1.xpose.msra.mxu0 0.0
        %892 = vmatprep.subr.mxu0 0.0
        %893 = vmatpush1.xpose.msra.mxu0 0.0
        %894 = vmatprep.subr.mxu0 0.0
        %895 = vmatpush1.xpose.msra.mxu0 0.0
        %896 = vmatprep.subr.mxu0 0.0
        %897 = vmatpush1.xpose.msra.mxu0 0.0
        %898 = vmatprep.subr.mxu0 0.0
        %899 = vmatpush1.xpose.msra.mxu0 0.0
        %900 = vmatprep.subr.mxu0 0.0
        %901 = vmatpush1.xpose.msra.mxu0 0.0
        %902 = vmatprep.subr.mxu0 0.0
        %903 = vmatpush1.xpose.msra.mxu0 0.0
        %904 = vmatprep.subr.mxu0 0.0
        %905 = vmatpush1.xpose.msra.mxu0 0.0
        %906 = vmatprep.subr.mxu0 0.0
        %907 = vmatpush1.xpose.msra.mxu0 0.0
        %908 = vmatprep.subr.mxu0 0.0
        %909 = vmatpush1.xpose.msra.mxu0 0.0
        %910 = vmatprep.subr.mxu0 0.0
        %911 = vmatpush1.xpose.msra.mxu0 0.0
        %912 = vmatprep.subr.mxu0 0.0
        %913 = vmatpush1.xpose.msra.mxu0 0.0
        %914 = vmatprep.subr.mxu0 0.0
        %915 = vmatpush1.xpose.msra.mxu0 0.0
        %916 = vmatprep.subr.mxu0 0.0
        %917 = vmatpush1.xpose.msra.mxu0 0.0
        %918 = vmatprep.subr.mxu0 0.0
        %919 = vmatpush1.xpose.msra.mxu0 0.0
        %920 = vmatprep.subr.mxu0 0.0
        %921 = vmatpush1.xpose.msra.mxu0 0.0
        %922 = vmatprep.subr.mxu0 0.0
        %923 = vmatpush1.xpose.msra.mxu0 0.0
        %924 = vmatprep.subr.mxu0 0.0
        %925 = vmatpush1.xpose.msra.mxu0 0.0
        %926 = vmatprep.subr.mxu0 0.0
        %927 = vmatpush1.xpose.msra.mxu0 0.0
        %928 = vmatprep.subr.mxu0 0.0
        %929 = vmatpush1.xpose.msra.mxu0 0.0
        %930 = vmatprep.subr.mxu0 0.0
        %931 = vmatpush1.xpose.msra.mxu0 0.0
        %932 = vmatprep.subr.mxu0 0.0
        %933 = vmatpush1.xpose.msra.mxu0 0.0
        %934 = vmatprep.subr.mxu0 0.0
        %935 = vmatpush1.xpose.msra.mxu0 0.0
        %936 = vmatprep.subr.mxu0 0.0
        %937 = vmatpush1.xpose.msra.mxu0 0.0
        %938 = vmatprep.subr.mxu0 0.0
        %939 = vmatpush1.xpose.msra.mxu0 0.0
        %940 = vmatprep.subr.mxu0 0.0
        %941 = vmatpush1.xpose.msra.mxu0 0.0
        %942 = vmatprep.subr.mxu0 0.0
        %943 = vmatpush1.xpose.msra.mxu0 0.0
        %944 = vmatprep.subr.mxu0 0.0
        %945 = vmatpush1.xpose.msra.mxu0 0.0
        %946 = vmatprep.subr.mxu0 0.0
        %947 = vmatpush1.xpose.msra.mxu0 0.0
        %948 = vmatprep.mubr.f32.mxu0 0.0
        %949 = vmatmul.mubr.f32.gmra.mrb[0].mxu0 %v880
        %v950 = vpop.f32.mrb[0].mxu0
        %v951 = vadd.f32 0.0, %v950
        %v952 = vpop.f32.mrb[0].mxu0
        %953 = vdwg.mxu0
        %v954 = vmul.f32 %v951, 0.25
        %v955 = vadd.f32 %v954, %v785
        %v956 = vsel %vm788, %v955, -inf
        %957 = vmax.xlane.f32.xlu0 %v956
        %v958 = vpop.xlane.xlu0 %957
        %v959 = vsub.f32 %v955, %v958
        %v960 = vmul.f32 %v959, 1.442695
        %v961 = vpow.pop %v960
        %v962 = vsel %vm788, %v961, 0.0
        %963 = vadd.xlane.f32.xlu0 %v962
        %v964 = vpop.xlane.xlu0 %963
        %v965 = vrcp.pop %v964
        %v966 = vmul.f32 %v961, %v965
        %967 = vrot.lane.b32.xlu0 %v695, 48
        %v968 = vpop.permute.xlu0 %967
        %v971 = vsel %vm788, %v966, 0
        %973 = vmatprep.subr.mxu0 0.0
        %974 = vmatpush1.msra.mxu0 %v968
        %975 = vmatprep.subr.mxu0 0.0
        %976 = vmatpush1.msra.mxu0 0.0
        %977 = vmatprep.subr.mxu0 0.0
        %978 = vmatpush1.msra.mxu0 0.0
        %979 = vmatprep.subr.mxu0 0.0
        %980 = vmatpush1.msra.mxu0 0.0
        %981 = vmatprep.subr.mxu0 0.0
        %982 = vmatpush1.msra.mxu0 0.0
        %983 = vmatprep.subr.mxu0 0.0
        %984 = vmatpush1.msra.mxu0 0.0
        %985 = vmatprep.subr.mxu0 0.0
        %986 = vmatpush1.msra.mxu0 0.0
        %987 = vmatprep.subr.mxu0 0.0
        %988 = vmatpush1.msra.mxu0 0.0
        %989 = vmatprep.subr.mxu0 0.0
        %990 = vmatpush1.msra.mxu0 0.0
        %991 = vmatprep.subr.mxu0 0.0
        %992 = vmatpush1.msra.mxu0 0.0
        %993 = vmatprep.subr.mxu0 0.0
        %994 = vmatpush1.msra.mxu0 0.0
        %995 = vmatprep.subr.mxu0 0.0
        %996 = vmatpush1.msra.mxu0 0.0
        %997 = vmatprep.subr.mxu0 0.0
        %998 = vmatpush1.msra.mxu0 0.0
        %999 = vmatprep.subr.mxu0 0.0
        %1000 = vmatpush1.msra.mxu0 0.0
        %1001 = vmatprep.subr.mxu0 0.0
        %1002 = vmatpush1.msra.mxu0 0.0
        %1003 = vmatprep.subr.mxu0 0.0
        %1004 = vmatpush1.msra.mxu0 0.0
        %1005 = vmatprep.subr.mxu0 0.0
        %1006 = vmatpush1.msra.mxu0 0.0
        %1007 = vmatprep.subr.mxu0 0.0
        %1008 = vmatpush1.msra.mxu0 0.0
        %1009 = vmatprep.subr.mxu0 0.0
        %1010 = vmatpush1.msra.mxu0 0.0
        %1011 = vmatprep.subr.mxu0 0.0
        %1012 = vmatpush1.msra.mxu0 0.0
        %1013 = vmatprep.subr.mxu0 0.0
        %1014 = vmatpush1.msra.mxu0 0.0
        %1015 = vmatprep.subr.mxu0 0.0
        %1016 = vmatpush1.msra.mxu0 0.0
        %1017 = vmatprep.subr.mxu0 0.0
        %1018 = vmatpush1.msra.mxu0 0.0
        %1019 = vmatprep.subr.mxu0 0.0
        %1020 = vmatpush1.msra.mxu0 0.0
        %1021 = vmatprep.subr.mxu0 0.0
        %1022 = vmatpush1.msra.mxu0 0.0
        %1023 = vmatprep.subr.mxu0 0.0
        %1024 = vmatpush1.msra.mxu0 0.0
        %1025 = vmatprep.subr.mxu0 0.0
        %1026 = vmatpush1.msra.mxu0 0.0
        %1027 = vmatprep.subr.mxu0 0.0
        %1028 = vmatpush1.msra.mxu0 0.0
        %1029 = vmatprep.subr.mxu0 0.0
        %1030 = vmatpush1.msra.mxu0 0.0
        %1031 = vmatprep.subr.mxu0 0.0
        %1032 = vmatpush1.msra.mxu0 0.0
        %1033 = vmatprep.subr.mxu0 0.0
        %1034 = vmatpush1.msra.mxu0 0.0
        %1035 = vmatprep.subr.mxu0 0.0
        %1036 = vmatpush1.msra.mxu0 0.0
        %1037 = vmatprep.mubr.f32.mxu0 0.0
        %1038 = vmatmul.mubr.f32.gmra.mrb[0].mxu0 %v971
        %v1039 = vpop.f32.mrb[0].mxu0
        %v1040 = vadd.f32 0.0, %v1039
        %v1041 = vpop.f32.mrb[0].mxu0
        %1042 = vdwg.mxu0
        %v1044 = vsel %vm705, %v1040, 0
        %1046 = vmatprep.subr.mxu0 0.0
        %1047 = vmatpush1.msra.mxu0 %v700
        %1048 = vmatprep.subr.mxu0 0.0
        %1049 = vmatpush1.msra.mxu0 %v701
        %1050 = vmatprep.subr.mxu0 0.0
        %1051 = vmatpush1.msra.mxu0 0.0
        %1052 = vmatprep.subr.mxu0 0.0
        %1053 = vmatpush1.msra.mxu0 0.0
        %1054 = vmatprep.subr.mxu0 0.0
        %1055 = vmatpush1.msra.mxu0 0.0
        %1056 = vmatprep.subr.mxu0 0.0
        %1057 = vmatpush1.msra.mxu0 0.0
        %1058 = vmatprep.subr.mxu0 0.0
        %1059 = vmatpush1.msra.mxu0 0.0
        %1060 = vmatprep.subr.mxu0 0.0
        %1061 = vmatpush1.msra.mxu0 0.0
        %1062 = vmatprep.subr.mxu0 0.0
        %1063 = vmatpush1.msra.mxu0 0.0
        %1064 = vmatprep.subr.mxu0 0.0
        %1065 = vmatpush1.msra.mxu0 0.0
        %1066 = vmatprep.subr.mxu0 0.0
        %1067 = vmatpush1.msra.mxu0 0.0
        %1068 = vmatprep.subr.mxu0 0.0
        %1069 = vmatpush1.msra.mxu0 0.0
        %1070 = vmatprep.subr.mxu0 0.0
        %1071 = vmatpush1.msra.mxu0 0.0
        %1072 = vmatprep.subr.mxu0 0.0
        %1073 = vmatpush1.msra.mxu0 0.0
        %1074 = vmatprep.subr.mxu0 0.0
        %1075 = vmatpush1.msra.mxu0 0.0
        %1076 = vmatprep.subr.mxu0 0.0
        %1077 = vmatpush1.msra.mxu0 0.0
        %1078 = vmatprep.subr.mxu0 0.0
        %1079 = vmatpush1.msra.mxu0 0.0
        %1080 = vmatprep.subr.mxu0 0.0
        %1081 = vmatpush1.msra.mxu0 0.0
        %1082 = vmatprep.subr.mxu0 0.0
        %1083 = vmatpush1.msra.mxu0 0.0
        %1084 = vmatprep.subr.mxu0 0.0
        %1085 = vmatpush1.msra.mxu0 0.0
        %1086 = vmatprep.subr.mxu0 0.0
        %1087 = vmatpush1.msra.mxu0 0.0
        %1088 = vmatprep.subr.mxu0 0.0
        %1089 = vmatpush1.msra.mxu0 0.0
        %1090 = vmatprep.subr.mxu0 0.0
        %1091 = vmatpush1.msra.mxu0 0.0
        %1092 = vmatprep.subr.mxu0 0.0
        %1093 = vmatpush1.msra.mxu0 0.0
        %1094 = vmatprep.subr.mxu0 0.0
        %1095 = vmatpush1.msra.mxu0 0.0
        %1096 = vmatprep.subr.mxu0 0.0
        %1097 = vmatpush1.msra.mxu0 0.0
        %1098 = vmatprep.subr.mxu0 0.0
        %1099 = vmatpush1.msra.mxu0 0.0
        %1100 = vmatprep.subr.mxu0 0.0
        %1101 = vmatpush1.msra.mxu0 0.0
        %1102 = vmatprep.subr.mxu0 0.0
        %1103 = vmatpush1.msra.mxu0 0.0
        %1104 = vmatprep.subr.mxu0 0.0
        %1105 = vmatpush1.msra.mxu0 0.0
        %1106 = vmatprep.subr.mxu0 0.0
        %1107 = vmatpush1.msra.mxu0 0.0
        %1108 = vmatprep.subr.mxu0 0.0
        %1109 = vmatpush1.msra.mxu0 0.0
        %1110 = vmatprep.mubr.f32.mxu0 0.0
        %1111 = vmatmul.mubr.f32.gmra.mrb[0].mxu0 %v1044
        %v1112 = vpop.f32.mrb[0].mxu0
        %v1113 = vadd.f32 0.0, %v1112
        %v1114 = vpop.f32.mrb[0].mxu0
        %1115 = vdwg.mxu0
        %v1117 = vsel %vm705, %v873, 0
        %1119 = vmatprep.subr.mxu0 0.0
        %1120 = vmatpush1.msra.mxu0 %v698
        %1121 = vmatprep.subr.mxu0 0.0
        %1122 = vmatpush1.msra.mxu0 %v699
        %1123 = vmatprep.subr.mxu0 0.0
        %1124 = vmatpush1.msra.mxu0 0.0
        %1125 = vmatprep.subr.mxu0 0.0
        %1126 = vmatpush1.msra.mxu0 0.0
        %1127 = vmatprep.subr.mxu0 0.0
        %1128 = vmatpush1.msra.mxu0 0.0
        %1129 = vmatprep.subr.mxu0 0.0
        %1130 = vmatpush1.msra.mxu0 0.0
        %1131 = vmatprep.subr.mxu0 0.0
        %1132 = vmatpush1.msra.mxu0 0.0
        %1133 = vmatprep.subr.mxu0 0.0
        %1134 = vmatpush1.msra.mxu0 0.0
        %1135 = vmatprep.subr.mxu0 0.0
        %1136 = vmatpush1.msra.mxu0 0.0
        %1137 = vmatprep.subr.mxu0 0.0
        %1138 = vmatpush1.msra.mxu0 0.0
        %1139 = vmatprep.subr.mxu0 0.0
        %1140 = vmatpush1.msra.mxu0 0.0
        %1141 = vmatprep.subr.mxu0 0.0
        %1142 = vmatpush1.msra.mxu0 0.0
        %1143 = vmatprep.subr.mxu0 0.0
        %1144 = vmatpush1.msra.mxu0 0.0
        %1145 = vmatprep.subr.mxu0 0.0
        %1146 = vmatpush1.msra.mxu0 0.0
        %1147 = vmatprep.subr.mxu0 0.0
        %1148 = vmatpush1.msra.mxu0 0.0
        %1149 = vmatprep.subr.mxu0 0.0
        %1150 = vmatpush1.msra.mxu0 0.0
        %1151 = vmatprep.subr.mxu0 0.0
        %1152 = vmatpush1.msra.mxu0 0.0
        %1153 = vmatprep.subr.mxu0 0.0
        %1154 = vmatpush1.msra.mxu0 0.0
        %1155 = vmatprep.subr.mxu0 0.0
        %1156 = vmatpush1.msra.mxu0 0.0
        %1157 = vmatprep.subr.mxu0 0.0
        %1158 = vmatpush1.msra.mxu0 0.0
        %1159 = vmatprep.subr.mxu0 0.0
        %1160 = vmatpush1.msra.mxu0 0.0
        %1161 = vmatprep.subr.mxu0 0.0
        %1162 = vmatpush1.msra.mxu0 0.0
        %1163 = vmatprep.subr.mxu0 0.0
        %1164 = vmatpush1.msra.mxu0 0.0
        %1165 = vmatprep.subr.mxu0 0.0
        %1166 = vmatpush1.msra.mxu0 0.0
        %1167 = vmatprep.subr.mxu0 0.0
        %1168 = vmatpush1.msra.mxu0 0.0
        %1169 = vmatprep.subr.mxu0 0.0
        %1170 = vmatpush1.msra.mxu0 0.0
        %1171 = vmatprep.subr.mxu0 0.0
        %1172 = vmatpush1.msra.mxu0 0.0
        %1173 = vmatprep.subr.mxu0 0.0
        %1174 = vmatpush1.msra.mxu0 0.0
        %1175 = vmatprep.subr.mxu0 0.0
        %1176 = vmatpush1.msra.mxu0 0.0
        %1177 = vmatprep.subr.mxu0 0.0
        %1178 = vmatpush1.msra.mxu0 0.0
        %1179 = vmatprep.subr.mxu0 0.0
        %1180 = vmatpush1.msra.mxu0 0.0
        %1181 = vmatprep.subr.mxu0 0.0
        %1182 = vmatpush1.msra.mxu0 0.0
        %1183 = vmatprep.mubr.f32.mxu0 0.0
        %1184 = vmatmul.mubr.f32.gmra.mrb[0].mxu0 %v1117
        %v1185 = vpop.f32.mrb[0].mxu0
        %v1186 = vadd.f32 %v1113, %v1185
        %v1187 = vpop.f32.mrb[0].mxu0
        %1188 = vdwg.mxu0
        %v1189 = vld [vmem:[%s6] sm:$0x1]
        %v1191 = vlaneseq
        %v1192 = vshrl.u32 %v1191, 7
        %v1193 = vsub.s32 0, %v1192
        %v1194 = vrot.slane %v1189, %v1193
        %v1196 = vadd.f32 %v1186, %v1194
        %v1197 = vadd.f32 %v1196, %v613
        %v1198 = vld [vmem:[%s7] sm:$0x3]
        %v1199 = vsel %vm589, %v1197, 0.0
        %1200 = vadd.xlane.f32.xlu0 %v1199
        %v1201 = vpop.xlane.xlu0 %1200
        %v1202 = vmul.f32 %v1201, %v593
        %v1203 = vsub.f32 %v1197, %v1202
        %v1204 = vmul.f32 %v1203, %v1203
        %v1205 = vsel %vm589, %v1204, 0.0
        %1206 = vadd.xlane.f32.xlu0 %v1205
        %v1207 = vpop.xlane.xlu0 %1206
        %v1208 = vmul.f32 %v1207, %v593
        %v1209 = vadd.f32 %v1208, 1e-12
        %v1210 = vrsqrt.pop %v1209
        %v1211 = vmul.f32 %v1203, %v1210
        %v1212 = vlaneseq
        %v1213 = vshrl.u32 %v1212, 7
        %v1214 = vsub.s32 0, %v1213
        %v1215 = vrot.slane %v1198, %v1214
        %v1216 = vmul.f32 %v1211, %v1215
        %v1217 = vlaneseq
        %v1218 = vshrl.u32 %v1217, 7
        %v1219 = vsub.s32 1, %v1218
        %v1220 = vrot.slane %v1198, %v1219
        %v1221 = vadd.f32 %v1216, %v1220
        %v1222 = vld [vmem:[%s8] sm:$0xff]
        %v1223 = vld [vmem:[%s8 + $0x8] sm:$0xff]
        %v1224 = vld [vmem:[%s8 + $0x10] sm:$0xff]
        %v1225 = vld [vmem:[%s8 + $0x18] sm:$0xff]
        %v1226 = vld [vmem:[%s9] sm:$0x1]
        %v1228 = vlaneseq
        %v1229 = vshrl.u32 %v1228, 7
        %v1230 = vsub.s32 0, %v1229
        %v1231 = vrot.slane %v1226, %v1230
        %v1234 = vsel %vm589, %v1221, 0
        %1236 = vmatprep.subr.mxu0 0.0
        %1237 = vmatpush1.msra.mxu0 %v1222
        %1238 = vmatprep.subr.mxu0 0.0
        %1239 = vmatpush1.msra.mxu0 %v1223
        %1240 = vmatprep.subr.mxu0 0.0
        %1241 = vmatpush1.msra.mxu0 %v1224
        %1242 = vmatprep.subr.mxu0 0.0
        %1243 = vmatpush1.msra.mxu0 %v1225
        %1244 = vmatprep.subr.mxu0 0.0
        %1245 = vmatpush1.msra.mxu0 0.0
        %1246 = vmatprep.subr.mxu0 0.0
        %1247 = vmatpush1.msra.mxu0 0.0
        %1248 = vmatprep.subr.mxu0 0.0
        %1249 = vmatpush1.msra.mxu0 0.0
        %1250 = vmatprep.subr.mxu0 0.0
        %1251 = vmatpush1.msra.mxu0 0.0
        %1252 = vmatprep.subr.mxu0 0.0
        %1253 = vmatpush1.msra.mxu0 0.0
        %1254 = vmatprep.subr.mxu0 0.0
        %1255 = vmatpush1.msra.mxu0 0.0
        %1256 = vmatprep.subr.mxu0 0.0
        %1257 = vmatpush1.msra.mxu0 0.0
        %1258 = vmatprep.subr.mxu0 0.0
        %1259 = vmatpush1.msra.mxu0 0.0
        %1260 = vmatprep.subr.mxu0 0.0
        %1261 = vmatpush1.msra.mxu0 0.0
        %1262 = vmatprep.subr.mxu0 0.0
        %1263 = vmatpush1.msra.mxu0 0.0
        %1264 = vmatprep.subr.mxu0 0.0
        %1265 = vmatpush1.msra.mxu0 0.0
        %1266 = vmatprep.subr.mxu0 0.0
        %1267 = vmatpush1.msra.mxu0 0.0
        %1268 = vmatprep.subr.mxu0 0.0
        %1269 = vmatpush1.msra.mxu0 0.0
        %1270 = vmatprep.subr.mxu0 0.0
        %1271 = vmatpush1.msra.mxu0 0.0
        %1272 = vmatprep.subr.mxu0 0.0
        %1273 = vmatpush1.msra.mxu0 0.0
        %1274 = vmatprep.subr.mxu0 0.0
        %1275 = vmatpush1.msra.mxu0 0.0
        %1276 = vmatprep.subr.mxu0 0.0
        %1277 = vmatpush1.msra.mxu0 0.0
        %1278 = vmatprep.subr.mxu0 0.0
        %1279 = vmatpush1.msra.mxu0 0.0
        %1280 = vmatprep.subr.mxu0 0.0
        %1281 = vmatpush1.msra.mxu0 0.0
        %1282 = vmatprep.subr.mxu0 0.0
        %1283 = vmatpush1.msra.mxu0 0.0
        %1284 = vmatprep.subr.mxu0 0.0
        %1285 = vmatpush1.msra.mxu0 0.0
        %1286 = vmatprep.subr.mxu0 0.0
        %1287 = vmatpush1.msra.mxu0 0.0
        %1288 = vmatprep.subr.mxu0 0.0
        %1289 = vmatpush1.msra.mxu0 0.0
        %1290 = vmatprep.subr.mxu0 0.0
        %1291 = vmatpush1.msra.mxu0 0.0
        %1292 = vmatprep.subr.mxu0 0.0
        %1293 = vmatpush1.msra.mxu0 0.0
        %1294 = vmatprep.subr.mxu0 0.0
        %1295 = vmatpush1.msra.mxu0 0.0
        %1296 = vmatprep.subr.mxu0 0.0
        %1297 = vmatpush1.msra.mxu0 0.0
        %1298 = vmatprep.subr.mxu0 0.0
        %1299 = vmatpush1.msra.mxu0 0.0
        %1300 = vmatprep.mubr.f32.mxu0 0.0
        %1301 = vmatmul.mubr.f32.gmra.mrb[0].mxu0 %v1234
        %v1302 = vpop.f32.mrb[0].mxu0
        %v1303 = vadd.f32 %v1231, %v1302
        %v1304 = vpop.f32.mrb[0].mxu0
        %1305 = vdwg.mxu0
        %v1306 = vmul.f32 %v1303, 0.5
        %v1307 = vmul.f32 %v1303, 0.044715
        %v1308 = vmul.f32 %v1307, %v1303
        %v1309 = vmul.f32 %v1308, %v1303
        %v1310 = vadd.f32 %v1303, %v1309
        %v1311 = vmul.f32 %v1310, 0.7978846
        %v1312 = vtanh.pop %v1311
        %v1313 = vadd.f32 %v1312, 1.0
        %v1314 = vmul.f32 %v1306, %v1313
        %v1315 = vld [vmem:[%s10] sm:$0xff]
        %v1316 = vld [vmem:[%s10 + $0x8] sm:$0xff]
        %v1317 = vld [vmem:[%s10 + $0x10] sm:$0xff]
        %v1318 = vld [vmem:[%s10 + $0x18] sm:$0xff]
        %v1319 = vld [vmem:[%s10 + $0x20] sm:$0xff]
        %v1320 = vld [vmem:[%s10 + $0x28] sm:$0xff]
        %v1321 = vld [vmem:[%s10 + $0x30] sm:$0xff]
        %v1322 = vld [vmem:[%s10 + $0x38] sm:$0xff]
        %v1323 = vld [vmem:[%s11] sm:$0x1]
        %v1325 = vlaneseq
        %v1326 = vshrl.u32 %v1325, 7
        %v1327 = vsub.s32 0, %v1326
        %v1328 = vrot.slane %v1323, %v1327
        %vm1330 = vcmask 523264
        %v1332 = vsel %vm1330, %v1314, 0
        %1334 = vmatprep.subr.mxu0 0.0
        %1335 = vmatpush1.msra.mxu0 %v1315
        %1336 = vmatprep.subr.mxu0 0.0
        %1337 = vmatpush1.msra.mxu0 %v1316
        %1338 = vmatprep.subr.mxu0 0.0
        %1339 = vmatpush1.msra.mxu0 %v1317
        %1340 = vmatprep.subr.mxu0 0.0
        %1341 = vmatpush1.msra.mxu0 %v1318
        %1342 = vmatprep.subr.mxu0 0.0
        %1343 = vmatpush1.msra.mxu0 %v1319
        %1344 = vmatprep.subr.mxu0 0.0
        %1345 = vmatpush1.msra.mxu0 %v1320
        %1346 = vmatprep.subr.mxu0 0.0
        %1347 = vmatpush1.msra.mxu0 %v1321
        %1348 = vmatprep.subr.mxu0 0.0
        %1349 = vmatpush1.msra.mxu0 %v1322
        %1350 = vmatprep.subr.mxu0 0.0
        %1351 = vmatpush1.msra.mxu0 0.0
        %1352 = vmatprep.subr.mxu0 0.0
        %1353 = vmatpush1.msra.mxu0 0.0
        %1354 = vmatprep.subr.mxu0 0.0
        %1355 = vmatpush1.msra.mxu0 0.0
        %1356 = vmatprep.subr.mxu0 0.0
        %1357 = vmatpush1.msra.mxu0 0.0
        %1358 = vmatprep.subr.mxu0 0.0
        %1359 = vmatpush1.msra.mxu0 0.0
        %1360 = vmatprep.subr.mxu0 0.0
        %1361 = vmatpush1.msra.mxu0 0.0
        %1362 = vmatprep.subr.mxu0 0.0
        %1363 = vmatpush1.msra.mxu0 0.0
        %1364 = vmatprep.subr.mxu0 0.0
        %1365 = vmatpush1.msra.mxu0 0.0
        %1366 = vmatprep.subr.mxu0 0.0
        %1367 = vmatpush1.msra.mxu0 0.0
        %1368 = vmatprep.subr.mxu0 0.0
        %1369 = vmatpush1.msra.mxu0 0.0
        %1370 = vmatprep.subr.mxu0 0.0
        %1371 = vmatpush1.msra.mxu0 0.0
        %1372 = vmatprep.subr.mxu0 0.0
        %1373 = vmatpush1.msra.mxu0 0.0
        %1374 = vmatprep.subr.mxu0 0.0
        %1375 = vmatpush1.msra.mxu0 0.0
        %1376 = vmatprep.subr.mxu0 0.0
        %1377 = vmatpush1.msra.mxu0 0.0
        %1378 = vmatprep.subr.mxu0 0.0
        %1379 = vmatpush1.msra.mxu0 0.0
        %1380 = vmatprep.subr.mxu0 0.0
        %1381 = vmatpush1.msra.mxu0 0.0
        %1382 = vmatprep.subr.mxu0 0.0
        %1383 = vmatpush1.msra.mxu0 0.0
        %1384 = vmatprep.subr.mxu0 0.0
        %1385 = vmatpush1.msra.mxu0 0.0
        %1386 = vmatprep.subr.mxu0 0.0
        %1387 = vmatpush1.msra.mxu0 0.0
        %1388 = vmatprep.subr.mxu0 0.0
        %1389 = vmatpush1.msra.mxu0 0.0
        %1390 = vmatprep.subr.mxu0 0.0
        %1391 = vmatpush1.msra.mxu0 0.0
        %1392 = vmatprep.subr.mxu0 0.0
        %1393 = vmatpush1.msra.mxu0 0.0
        %1394 = vmatprep.subr.mxu0 0.0
        %1395 = vmatpush1.msra.mxu0 0.0
        %1396 = vmatprep.subr.mxu0 0.0
        %1397 = vmatpush1.msra.mxu0 0.0
        %1398 = vmatprep.mubr.f32.mxu0 0.0
        %1399 = vmatmul.mubr.f32.gmra.mrb[0].mxu0 %v1332
        %v1400 = vpop.f32.mrb[0].mxu0
        %v1401 = vadd.f32 %v1328, %v1400
        %v1402 = vpop.f32.mrb[0].mxu0
        %1403 = vdwg.mxu0
        %v1404 = vadd.f32 %v1401, %v1221
        %v1405 = vld [vmem:[%s12] sm:$0x3]
        %v1406 = vsel %vm589, %v1404, 0.0
        %1407 = vadd.xlane.f32.xlu0 %v1406
        %v1408 = vpop.xlane.xlu0 %1407
        %v1409 = vmul.f32 %v1408, %v593
        %v1410 = vsub.f32 %v1404, %v1409
        %v1411 = vmul.f32 %v1410, %v1410
        %v1412 = vsel %vm589, %v1411, 0.0
        %1413 = vadd.xlane.f32.xlu0 %v1412
        %v1414 = vpop.xlane.xlu0 %1413
        %v1415 = vmul.f32 %v1414, %v593
        %v1416 = vadd.f32 %v1415, 1e-12
        %v1417 = vrsqrt.pop %v1416
        %v1418 = vmul.f32 %v1410, %v1417
        %v1419 = vlaneseq
        %v1420 = vshrl.u32 %v1419, 7
        %v1421 = vsub.s32 0, %v1420
        %v1422 = vrot.slane %v1405, %v1421
        %v1423 = vmul.f32 %v1418, %v1422
        %v1424 = vlaneseq
        %v1425 = vshrl.u32 %v1424, 7
        %v1426 = vsub.s32 1, %v1425
        %v1427 = vrot.slane %v1405, %v1426
        %v1428 = vadd.f32 %v1423, %v1427
        %s1429 = scalar_lea.vmem %s3, 32
        %v1430 = vld [vmem:[%s1429] sm:$0xff]
        %v1431 = vld [vmem:[%s1429 + $0x8] sm:$0xff]
        %v1432 = vld [vmem:[%s1429 + $0x10] sm:$0xff]
        %v1433 = vld [vmem:[%s1429 + $0x18] sm:$0xff]
        %s1434 = scalar_lea.vmem %s4, 1
        %v1435 = vld [vmem:[%s1434] sm:$0x1]
        %v1437 = vlaneseq
        %v1438 = vshrl.u32 %v1437, 7
        %v1439 = vsub.s32 0, %v1438
        %v1440 = vrot.slane %v1435, %v1439
        %v1443 = vsel %vm589, %v1428, 0
        %1445 = vmatprep.subr.mxu0 0.0
        %1446 = vmatpush1.msra.mxu0 %v1430
        %1447 = vmatprep.subr.mxu0 0.0
        %1448 = vmatpush1.msra.mxu0 %v1431
        %1449 = vmatprep.subr.mxu0 0.0
        %1450 = vmatpush1.msra.mxu0 %v1432
        %1451 = vmatprep.subr.mxu0 0.0
        %1452 = vmatpush1.msra.mxu0 %v1433
        %1453 = vmatprep.subr.mxu0 0.0
        %1454 = vmatpush1.msra.mxu0 0.0
        %1455 = vmatprep.subr.mxu0 0.0
        %1456 = vmatpush1.msra.mxu0 0.0
        %1457 = vmatprep.subr.mxu0 0.0
        %1458 = vmatpush1.msra.mxu0 0.0
        %1459 = vmatprep.subr.mxu0 0.0
        %1460 = vmatpush1.msra.mxu0 0.0
        %1461 = vmatprep.subr.mxu0 0.0
        %1462 = vmatpush1.msra.mxu0 0.0
        %1463 = vmatprep.subr.mxu0 0.0
        %1464 = vmatpush1.msra.mxu0 0.0
        %1465 = vmatprep.subr.mxu0 0.0
        %1466 = vmatpush1.msra.mxu0 0.0
        %1467 = vmatprep.subr.mxu0 0.0
        %1468 = vmatpush1.msra.mxu0 0.0
        %1469 = vmatprep.subr.mxu0 0.0
        %1470 = vmatpush1.msra.mxu0 0.0
        %1471 = vmatprep.subr.mxu0 0.0
        %1472 = vmatpush1.msra.mxu0 0.0
        %1473 = vmatprep.subr.mxu0 0.0
        %1474 = vmatpush1.msra.mxu0 0.0
        %1475 = vmatprep.subr.mxu0 0.0
        %1476 = vmatpush1.msra.mxu0 0.0
        %1477 = vmatprep.subr.mxu0 0.0
        %1478 = vmatpush1.msra.mxu0 0.0
        %1479 = vmatprep.subr.mxu0 0.0
        %1480 = vmatpush1.msra.mxu0 0.0
        %1481 = vmatprep.subr.mxu0 0.0
        %1482 = vmatpush1.msra.mxu0 0.0
        %1483 = vmatprep.subr.mxu0 0.0
        %1484 = vmatpush1.msra.mxu0 0.0
        %1485 = vmatprep.subr.mxu0 0.0
        %1486 = vmatpush1.msra.mxu0 0.0
        %1487 = vmatprep.subr.mxu0 0.0
        %1488 = vmatpush1.msra.mxu0 0.0
        %1489 = vmatprep.subr.mxu0 0.0
        %1490 = vmatpush1.msra.mxu0 0.0
        %1491 = vmatprep.subr.mxu0 0.0
        %1492 = vmatpush1.msra.mxu0 0.0
        %1493 = vmatprep.subr.mxu0 0.0
        %1494 = vmatpush1.msra.mxu0 0.0
        %1495 = vmatprep.subr.mxu0 0.0
        %1496 = vmatpush1.msra.mxu0 0.0
        %1497 = vmatprep.subr.mxu0 0.0
        %1498 = vmatpush1.msra.mxu0 0.0
        %1499 = vmatprep.subr.mxu0 0.0
        %1500 = vmatpush1.msra.mxu0 0.0
        %1501 = vmatprep.subr.mxu0 0.0
        %1502 = vmatpush1.msra.mxu0 0.0
        %1503 = vmatprep.subr.mxu0 0.0
        %1504 = vmatpush1.msra.mxu0 0.0
        %1505 = vmatprep.subr.mxu0 0.0
        %1506 = vmatpush1.msra.mxu0 0.0
        %1507 = vmatprep.subr.mxu0 0.0
        %1508 = vmatpush1.msra.mxu0 0.0
        %1509 = vmatprep.mubr.f32.mxu0 0.0
        %1510 = vmatmul.mubr.f32.gmra.mrb[0].mxu0 %v1443
        %v1511 = vpop.f32.mrb[0].mxu0
        %v1512 = vadd.f32 %v1440, %v1511
        %v1513 = vpop.f32.mrb[0].mxu0
        %1514 = vdwg.mxu0
        %s1515 = scalar_lea.vmem %s5, 32
        %v1516 = vld [vmem:[%s1515] sm:$0xff]
        %v1517 = vld [vmem:[%s1515 + $0x8] sm:$0xff]
        %v1518 = vld [vmem:[%s1515 + $0x10] sm:$0xff]
        %v1519 = vld [vmem:[%s1515 + $0x18] sm:$0xff]
        %1521 = vrot.lane.b32.xlu0 %v1512, 96
        %v1522 = vpop.permute.xlu0 %1521
        %v1523 = vsel %vm705, %v1512, 0
        %v1525 = vsel %vm705, %v1522, 0
        %1527 = vmatprep.subr.mxu0 0.0
        %1528 = vmatpush1.xpose.msra.mxu0 %v1525
        %1529 = vmatprep.subr.mxu0 0.0
        %1530 = vmatpush1.xpose.msra.mxu0 0.0
        %1531 = vmatprep.subr.mxu0 0.0
        %1532 = vmatpush1.xpose.msra.mxu0 0.0
        %1533 = vmatprep.subr.mxu0 0.0
        %1534 = vmatpush1.xpose.msra.mxu0 0.0
        %1535 = vmatprep.subr.mxu0 0.0
        %1536 = vmatpush1.xpose.msra.mxu0 0.0
        %1537 = vmatprep.subr.mxu0 0.0
        %1538 = vmatpush1.xpose.msra.mxu0 0.0
        %1539 = vmatprep.subr.mxu0 0.0
        %1540 = vmatpush1.xpose.msra.mxu0 0.0
        %1541 = vmatprep.subr.mxu0 0.0
        %1542 = vmatpush1.xpose.msra.mxu0 0.0
        %1543 = vmatprep.subr.mxu0 0.0
        %1544 = vmatpush1.xpose.msra.mxu0 0.0
        %1545 = vmatprep.subr.mxu0 0.0
        %1546 = vmatpush1.xpose.msra.mxu0 0.0
        %1547 = vmatprep.subr.mxu0 0.0
        %1548 = vmatpush1.xpose.msra.mxu0 0.0
        %1549 = vmatprep.subr.mxu0 0.0
        %1550 = vmatpush1.xpose.msra.mxu0 0.0
        %1551 = vmatprep.subr.mxu0 0.0
        %1552 = vmatpush1.xpose.msra.mxu0 0.0
        %1553 = vmatprep.subr.mxu0 0.0
        %1554 = vmatpush1.xpose.msra.mxu0 0.0
        %1555 = vmatprep.subr.mxu0 0.0
        %1556 = vmatpush1.xpose.msra.mxu0 0.0
        %1557 = vmatprep.subr.mxu0 0.0
        %1558 = vmatpush1.xpose.msra.mxu0 0.0
        %1559 = vmatprep.subr.mxu0 0.0
        %1560 = vmatpush1.xpose.msra.mxu0 0.0
        %1561 = vmatprep.subr.mxu0 0.0
        %1562 = vmatpush1.xpose.msra.mxu0 0.0
        %1563 = vmatprep.subr.mxu0 0.0
        %1564 = vmatpush1.xpose.msra.mxu0 0.0
        %1565 = vmatprep.subr.mxu0 0.0
        %1566 = vmatpush1.xpose.msra.mxu0 0.0
        %1567 = vmatprep.subr.mxu0 0.0
        %1568 = vmatpush1.xpose.msra.mxu0 0.0
        %1569 = vmatprep.subr.mxu0 0.0
        %1570 = vmatpush1.xpose.msra.mxu0 0.0
        %1571 = vmatprep.subr.mxu0 0.0
        %1572 = vmatpush1.xpose.msra.mxu0 0.0
        %1573 = vmatprep.subr.mxu0 0.0
        %1574 = vmatpush1.xpose.msra.mxu0 0.0
        %1575 = vmatprep.subr.mxu0 0.0
        %1576 = vmatpush1.xpose.msra.mxu0 0.0
        %1577 = vmatprep.subr.mxu0 0.0
        %1578 = vmatpush1.xpose.msra.mxu0 0.0
        %1579 = vmatprep.subr.mxu0 0.0
        %1580 = vmatpush1.xpose.msra.mxu0 0.0
        %1581 = vmatprep.subr.mxu0 0.0
        %1582 = vmatpush1.xpose.msra.mxu0 0.0
        %1583 = vmatprep.subr.mxu0 0.0
        %1584 = vmatpush1.xpose.msra.mxu0 0.0
        %1585 = vmatprep.subr.mxu0 0.0
        %1586 = vmatpush1.xpose.msra.mxu0 0.0
        %1587 = vmatprep.subr.mxu0 0.0
        %1588 = vmatpush1.xpose.msra.mxu0 0.0
        %1589 = vmatprep.subr.mxu0 0.0
        %1590 = vmatpush1.xpose.msra.mxu0 0.0
        %1591 = vmatprep.mubr.f32.mxu0 0.0
        %1592 = vmatmul.mubr.f32.gmra.mrb[0].mxu0 %v1523
        %v1593 = vpop.f32.mrb[0].mxu0
        %v1594 = vadd.f32 0.0, %v1593
        %v1595 = vpop.f32.mrb[0].mxu0
        %1596 = vdwg.mxu0
        %v1597 = vmul.f32 %v1594, 0.25
        %v1598 = vadd.f32 %v1597, %v785
        %v1599 = vsel %vm788, %v1598, -inf
        %1600 = vmax.xlane.f32.xlu0 %v1599
        %v1601 = vpop.xlane.xlu0 %1600
        %v1602 = vsub.f32 %v1598, %v1601
        %v1603 = vmul.f32 %v1602, 1.442695
        %v1604 = vpow.pop %v1603
        %v1605 = vsel %vm788, %v1604, 0.0
        %1606 = vadd.xlane.f32.xlu0 %v1605
        %v1607 = vpop.xlane.xlu0 %1606
        %v1608 = vrcp.pop %v1607
        %v1609 = vmul.f32 %v1604, %v1608
        %1610 = vrot.lane.b32.xlu0 %v1512, 64
        %v1611 = vpop.permute.xlu0 %1610
        %v1614 = vsel %vm788, %v1609, 0
        %1616 = vmatprep.subr.mxu0 0.0
        %1617 = vmatpush1.msra.mxu0 %v1611
        %1618 = vmatprep.subr.mxu0 0.0
        %1619 = vmatpush1.msra.mxu0 0.0
        %1620 = vmatprep.subr.mxu0 0.0
        %1621 = vmatpush1.msra.mxu0 0.0
        %1622 = vmatprep.subr.mxu0 0.0
        %1623 = vmatpush1.msra.mxu0 0.0
        %1624 = vmatprep.subr.mxu0 0.0
        %1625 = vmatpush1.msra.mxu0 0.0
        %1626 = vmatprep.subr.mxu0 0.0
        %1627 = vmatpush1.msra.mxu0 0.0
        %1628 = vmatprep.subr.mxu0 0.0
        %1629 = vmatpush1.msra.mxu0 0.0
        %1630 = vmatprep.subr.mxu0 0.0
        %1631 = vmatpush1.msra.mxu0 0.0
        %1632 = vmatprep.subr.mxu0 0.0
        %1633 = vmatpush1.msra.mxu0 0.0
        %1634 = vmatprep.subr.mxu0 0.0
        %1635 = vmatpush1.msra.mxu0 0.0
        %1636 = vmatprep.subr.mxu0 0.0
        %1637 = vmatpush1.msra.mxu0 0.0
        %1638 = vmatprep.subr.mxu0 0.0
        %1639 = vmatpush1.msra.mxu0 0.0
        %1640 = vmatprep.subr.mxu0 0.0
        %1641 = vmatpush1.msra.mxu0 0.0
        %1642 = vmatprep.subr.mxu0 0.0
        %1643 = vmatpush1.msra.mxu0 0.0
        %1644 = vmatprep.subr.mxu0 0.0
        %1645 = vmatpush1.msra.mxu0 0.0
        %1646 = vmatprep.subr.mxu0 0.0
        %1647 = vmatpush1.msra.mxu0 0.0
        %1648 = vmatprep.subr.mxu0 0.0
        %1649 = vmatpush1.msra.mxu0 0.0
        %1650 = vmatprep.subr.mxu0 0.0
        %1651 = vmatpush1.msra.mxu0 0.0
        %1652 = vmatprep.subr.mxu0 0.0
        %1653 = vmatpush1.msra.mxu0 0.0
        %1654 = vmatprep.subr.mxu0 0.0
        %1655 = vmatpush1.msra.mxu0 0.0
        %1656 = vmatprep.subr.mxu0 0.0
        %1657 = vmatpush1.msra.mxu0 0.0
        %1658 = vmatprep.subr.mxu0 0.0
        %1659 = vmatpush1.msra.mxu0 0.0
        %1660 = vmatprep.subr.mxu0 0.0
        %1661 = vmatpush1.msra.mxu0 0.0
        %1662 = vmatprep.subr.mxu0 0.0
        %1663 = vmatpush1.msra.mxu0 0.0
        %1664 = vmatprep.subr.mxu0 0.0
        %1665 = vmatpush1.msra.mxu0 0.0
        %1666 = vmatprep.subr.mxu0 0.0
        %1667 = vmatpush1.msra.mxu0 0.0
        %1668 = vmatprep.subr.mxu0 0.0
        %1669 = vmatpush1.msra.mxu0 0.0
        %1670 = vmatprep.subr.mxu0 0.0
        %1671 = vmatpush1.msra.mxu0 0.0
        %1672 = vmatprep.subr.mxu0 0.0
        %1673 = vmatpush1.msra.mxu0 0.0
        %1674 = vmatprep.subr.mxu0 0.0
        %1675 = vmatpush1.msra.mxu0 0.0
        %1676 = vmatprep.subr.mxu0 0.0
        %1677 = vmatpush1.msra.mxu0 0.0
        %1678 = vmatprep.subr.mxu0 0.0
        %1679 = vmatpush1.msra.mxu0 0.0
        %1680 = vmatprep.mubr.f32.mxu0 0.0
        %1681 = vmatmul.mubr.f32.gmra.mrb[0].mxu0 %v1614
        %v1682 = vpop.f32.mrb[0].mxu0
        %v1683 = vadd.f32 0.0, %v1682
        %v1684 = vpop.f32.mrb[0].mxu0
        %1685 = vdwg.mxu0
        %1686 = vrot.lane.b32.xlu0 %v1512, 112
        %v1687 = vpop.permute.xlu0 %1686
        %1688 = vrot.lane.b32.xlu0 %v1512, 80
        %v1689 = vpop.permute.xlu0 %1688
        %v1690 = vsel %vm705, %v1687, 0
        %v1692 = vsel %vm705, %v1689, 0
        %1694 = vmatprep.subr.mxu0 0.0
        %1695 = vmatpush1.xpose.msra.mxu0 %v1692
        %1696 = vmatprep.subr.mxu0 0.0
        %1697 = vmatpush1.xpose.msra.mxu0 0.0
        %1698 = vmatprep.subr.mxu0 0.0
        %1699 = vmatpush1.xpose.msra.mxu0 0.0
        %1700 = vmatprep.subr.mxu0 0.0
        %1701 = vmatpush1.xpose.msra.mxu0 0.0
        %1702 = vmatprep.subr.mxu0 0.0
        %1703 = vmatpush1.xpose.msra.mxu0 0.0
        %1704 = vmatprep.subr.mxu0 0.0
        %1705 = vmatpush1.xpose.msra.mxu0 0.0
        %1706 = vmatprep.subr.mxu0 0.0
        %1707 = vmatpush1.xpose.msra.mxu0 0.0
        %1708 = vmatprep.subr.mxu0 0.0
        %1709 = vmatpush1.xpose.msra.mxu0 0.0
        %1710 = vmatprep.subr.mxu0 0.0
        %1711 = vmatpush1.xpose.msra.mxu0 0.0
        %1712 = vmatprep.subr.mxu0 0.0
        %1713 = vmatpush1.xpose.msra.mxu0 0.0
        %1714 = vmatprep.subr.mxu0 0.0
        %1715 = vmatpush1.xpose.msra.mxu0 0.0
        %1716 = vmatprep.subr.mxu0 0.0
        %1717 = vmatpush1.xpose.msra.mxu0 0.0
        %1718 = vmatprep.subr.mxu0 0.0
        %1719 = vmatpush1.xpose.msra.mxu0 0.0
        %1720 = vmatprep.subr.mxu0 0.0
        %1721 = vmatpush1.xpose.msra.mxu0 0.0
        %1722 = vmatprep.subr.mxu0 0.0
        %1723 = vmatpush1.xpose.msra.mxu0 0.0
        %1724 = vmatprep.subr.mxu0 0.0
        %1725 = vmatpush1.xpose.msra.mxu0 0.0
        %1726 = vmatprep.subr.mxu0 0.0
        %1727 = vmatpush1.xpose.msra.mxu0 0.0
        %1728 = vmatprep.subr.mxu0 0.0
        %1729 = vmatpush1.xpose.msra.mxu0 0.0
        %1730 = vmatprep.subr.mxu0 0.0
        %1731 = vmatpush1.xpose.msra.mxu0 0.0
        %1732 = vmatprep.subr.mxu0 0.0
        %1733 = vmatpush1.xpose.msra.mxu0 0.0
        %1734 = vmatprep.subr.mxu0 0.0
        %1735 = vmatpush1.xpose.msra.mxu0 0.0
        %1736 = vmatprep.subr.mxu0 0.0
        %1737 = vmatpush1.xpose.msra.mxu0 0.0
        %1738 = vmatprep.subr.mxu0 0.0
        %1739 = vmatpush1.xpose.msra.mxu0 0.0
        %1740 = vmatprep.subr.mxu0 0.0
        %1741 = vmatpush1.xpose.msra.mxu0 0.0
        %1742 = vmatprep.subr.mxu0 0.0
        %1743 = vmatpush1.xpose.msra.mxu0 0.0
        %1744 = vmatprep.subr.mxu0 0.0
        %1745 = vmatpush1.xpose.msra.mxu0 0.0
        %1746 = vmatprep.subr.mxu0 0.0
        %1747 = vmatpush1.xpose.msra.mxu0 0.0
        %1748 = vmatprep.subr.mxu0 0.0
        %1749 = vmatpush1.xpose.msra.mxu0 0.0
        %1750 = vmatprep.subr.mxu0 0.0
        %1751 = vmatpush1.xpose.msra.mxu0 0.0
        %1752 = vmatprep.subr.mxu0 0.0
        %1753 = vmatpush1.xpose.msra.mxu0 0.0
        %1754 = vmatprep.subr.mxu0 0.0
        %1755 = vmatpush1.xpose.msra.mxu0 0.0
        %1756 = vmatprep.subr.mxu0 0.0
        %1757 = vmatpush1.xpose.msra.mxu0 0.0
        %1758 = vmatprep.mubr.f32.mxu0 0.0
        %1759 = vmatmul.mubr.f32.gmra.mrb[0].mxu0 %v1690
        %v1760 = vpop.f32.mrb[0].mxu0
        %v1761 = vadd.f32 0.0, %v1760
        %v1762 = vpop.f32.mrb[0].mxu0
        %1763 = vdwg.mxu0
        %v1764 = vmul.f32 %v1761, 0.25
        %v1765 = vadd.f32 %v1764, %v785
        %v1766 = vsel %vm788, %v1765, -inf
        %1767 = vmax.xlane.f32.xlu0 %v1766
        %v1768 = vpop.xlane.xlu0 %1767
        %v1769 = vsub.f32 %v1765, %v1768
        %v1770 = vmul.f32 %v1769, 1.442695
        %v1771 = vpow.pop %v1770
        %v1772 = vsel %vm788, %v1771, 0.0
        %1773 = vadd.xlane.f32.xlu0 %v1772
        %v1774 = vpop.xlane.xlu0 %1773
        %v1775 = vrcp.pop %v1774
        %v1776 = vmul.f32 %v1771, %v1775
        %1777 = vrot.lane.b32.xlu0 %v1512, 48
        %v1778 = vpop.permute.xlu0 %1777
        %v1781 = vsel %vm788, %v1776, 0
        %1783 = vmatprep.subr.mxu0 0.0
        %1784 = vmatpush1.msra.mxu0 %v1778
        %1785 = vmatprep.subr.mxu0 0.0
        %1786 = vmatpush1.msra.mxu0 0.0
        %1787 = vmatprep.subr.mxu0 0.0
        %1788 = vmatpush1.msra.mxu0 0.0
        %1789 = vmatprep.subr.mxu0 0.0
        %1790 = vmatpush1.msra.mxu0 0.0
        %1791 = vmatprep.subr.mxu0 0.0
        %1792 = vmatpush1.msra.mxu0 0.0
        %1793 = vmatprep.subr.mxu0 0.0
        %1794 = vmatpush1.msra.mxu0 0.0
        %1795 = vmatprep.subr.mxu0 0.0
        %1796 = vmatpush1.msra.mxu0 0.0
        %1797 = vmatprep.subr.mxu0 0.0
        %1798 = vmatpush1.msra.mxu0 0.0
        %1799 = vmatprep.subr.mxu0 0.0
        %1800 = vmatpush1.msra.mxu0 0.0
        %1801 = vmatprep.subr.mxu0 0.0
        %1802 = vmatpush1.msra.mxu0 0.0
        %1803 = vmatprep.subr.mxu0 0.0
        %1804 = vmatpush1.msra.mxu0 0.0
        %1805 = vmatprep.subr.mxu0 0.0
        %1806 = vmatpush1.msra.mxu0 0.0
        %1807 = vmatprep.subr.mxu0 0.0
        %1808 = vmatpush1.msra.mxu0 0.0
        %1809 = vmatprep.subr.mxu0 0.0
        %1810 = vmatpush1.msra.mxu0 0.0
        %1811 = vmatprep.subr.mxu0 0.0
        %1812 = vmatpush1.msra.mxu0 0.0
        %1813 = vmatprep.subr.mxu0 0.0
        %1814 = vmatpush1.msra.mxu0 0.0
        %1815 = vmatprep.subr.mxu0 0.0
        %1816 = vmatpush1.msra.mxu0 0.0
        %1817 = vmatprep.subr.mxu0 0.0
        %1818 = vmatpush1.msra.mxu0 0.0
        %1819 = vmatprep.subr.mxu0 0.0
        %1820 = vmatpush1.msra.mxu0 0.0
        %1821 = vmatprep.subr.mxu0 0.0
        %1822 = vmatpush1.msra.mxu0 0.0
        %1823 = vmatprep.subr.mxu0 0.0
        %1824 = vmatpush1.msra.mxu0 0.0
        %1825 = vmatprep.subr.mxu0 0.0
        %1826 = vmatpush1.msra.mxu0 0.0
        %1827 = vmatprep.subr.mxu0 0.0
        %1828 = vmatpush1.msra.mxu0 0.0
        %1829 = vmatprep.subr.mxu0 0.0
        %1830 = vmatpush1.msra.mxu0 0.0
        %1831 = vmatprep.subr.mxu0 0.0
        %1832 = vmatpush1.msra.mxu0 0.0
        %1833 = vmatprep.subr.mxu0 0.0
        %1834 = vmatpush1.msra.mxu0 0.0
        %1835 = vmatprep.subr.mxu0 0.0
        %1836 = vmatpush1.msra.mxu0 0.0
        %1837 = vmatprep.subr.mxu0 0.0
        %1838 = vmatpush1.msra.mxu0 0.0
        %1839 = vmatprep.subr.mxu0 0.0
        %1840 = vmatpush1.msra.mxu0 0.0
        %1841 = vmatprep.subr.mxu0 0.0
        %1842 = vmatpush1.msra.mxu0 0.0
        %1843 = vmatprep.subr.mxu0 0.0
        %1844 = vmatpush1.msra.mxu0 0.0
        %1845 = vmatprep.subr.mxu0 0.0
        %1846 = vmatpush1.msra.mxu0 0.0
        %1847 = vmatprep.mubr.f32.mxu0 0.0
        %1848 = vmatmul.mubr.f32.gmra.mrb[0].mxu0 %v1781
        %v1849 = vpop.f32.mrb[0].mxu0
        %v1850 = vadd.f32 0.0, %v1849
        %v1851 = vpop.f32.mrb[0].mxu0
        %1852 = vdwg.mxu0
        %v1854 = vsel %vm705, %v1850, 0
        %1856 = vmatprep.subr.mxu0 0.0
        %1857 = vmatpush1.msra.mxu0 %v1518
        %1858 = vmatprep.subr.mxu0 0.0
        %1859 = vmatpush1.msra.mxu0 %v1519
        %1860 = vmatprep.subr.mxu0 0.0
        %1861 = vmatpush1.msra.mxu0 0.0
        %1862 = vmatprep.subr.mxu0 0.0
        %1863 = vmatpush1.msra.mxu0 0.0
        %1864 = vmatprep.subr.mxu0 0.0
        %1865 = vmatpush1.msra.mxu0 0.0
        %1866 = vmatprep.subr.mxu0 0.0
        %1867 = vmatpush1.msra.mxu0 0.0
        %1868 = vmatprep.subr.mxu0 0.0
        %1869 = vmatpush1.msra.mxu0 0.0
        %1870 = vmatprep.subr.mxu0 0.0
        %1871 = vmatpush1.msra.mxu0 0.0
        %1872 = vmatprep.subr.mxu0 0.0
        %1873 = vmatpush1.msra.mxu0 0.0
        %1874 = vmatprep.subr.mxu0 0.0
        %1875 = vmatpush1.msra.mxu0 0.0
        %1876 = vmatprep.subr.mxu0 0.0
        %1877 = vmatpush1.msra.mxu0 0.0
        %1878 = vmatprep.subr.mxu0 0.0
        %1879 = vmatpush1.msra.mxu0 0.0
        %1880 = vmatprep.subr.mxu0 0.0
        %1881 = vmatpush1.msra.mxu0 0.0
        %1882 = vmatprep.subr.mxu0 0.0
        %1883 = vmatpush1.msra.mxu0 0.0
        %1884 = vmatprep.subr.mxu0 0.0
        %1885 = vmatpush1.msra.mxu0 0.0
        %1886 = vmatprep.subr.mxu0 0.0
        %1887 = vmatpush1.msra.mxu0 0.0
        %1888 = vmatprep.subr.mxu0 0.0
        %1889 = vmatpush1.msra.mxu0 0.0
        %1890 = vmatprep.subr.mxu0 0.0
        %1891 = vmatpush1.msra.mxu0 0.0
        %1892 = vmatprep.subr.mxu0 0.0
        %1893 = vmatpush1.msra.mxu0 0.0
        %1894 = vmatprep.subr.mxu0 0.0
        %1895 = vmatpush1.msra.mxu0 0.0
        %1896 = vmatprep.subr.mxu0 0.0
        %1897 = vmatpush1.msra.mxu0 0.0
        %1898 = vmatprep.subr.mxu0 0.0
        %1899 = vmatpush1.msra.mxu0 0.0
        %1900 = vmatprep.subr.mxu0 0.0
        %1901 = vmatpush1.msra.mxu0 0.0
        %1902 = vmatprep.subr.mxu0 0.0
        %1903 = vmatpush1.msra.mxu0 0.0
        %1904 = vmatprep.subr.mxu0 0.0
        %1905 = vmatpush1.msra.mxu0 0.0
        %1906 = vmatprep.subr.mxu0 0.0
        %1907 = vmatpush1.msra.mxu0 0.0
        %1908 = vmatprep.subr.mxu0 0.0
        %1909 = vmatpush1.msra.mxu0 0.0
        %1910 = vmatprep.subr.mxu0 0.0
        %1911 = vmatpush1.msra.mxu0 0.0
        %1912 = vmatprep.subr.mxu0 0.0
        %1913 = vmatpush1.msra.mxu0 0.0
        %1914 = vmatprep.subr.mxu0 0.0
        %1915 = vmatpush1.msra.mxu0 0.0
        %1916 = vmatprep.subr.mxu0 0.0
        %1917 = vmatpush1.msra.mxu0 0.0
        %1918 = vmatprep.subr.mxu0 0.0
        %1919 = vmatpush1.msra.mxu0 0.0
        %1920 = vmatprep.mubr.f32.mxu0 0.0
        %1921 = vmatmul.mubr.f32.gmra.mrb[0].mxu0 %v1854
        %v1922 = vpop.f32.mrb[0].mxu0
        %v1923 = vadd.f32 0.0, %v1922
        %v1924 = vpop.f32.mrb[0].mxu0
        %1925 = vdwg.mxu0
        %v1927 = vsel %vm705, %v1683, 0
        %1929 = vmatprep.subr.mxu0 0.0
        %1930 = vmatpush1.msra.mxu0 %v1516
        %1931 = vmatprep.subr.mxu0 0.0
        %1932 = vmatpush1.msra.mxu0 %v1517
        %1933 = vmatprep.subr.mxu0 0.0
        %1934 = vmatpush1.msra.mxu0 0.0
        %1935 = vmatprep.subr.mxu0 0.0
        %1936 = vmatpush1.msra.mxu0 0.0
        %1937 = vmatprep.subr.mxu0 0.0
        %1938 = vmatpush1.msra.mxu0 0.0
        %1939 = vmatprep.subr.mxu0 0.0
        %1940 = vmatpush1.msra.mxu0 0.0
        %1941 = vmatprep.subr.mxu0 0.0
        %1942 = vmatpush1.msra.mxu0 0.0
        %1943 = vmatprep.subr.mxu0 0.0
        %1944 = vmatpush1.msra.mxu0 0.0
        %1945 = vmatprep.subr.mxu0 0.0
        %1946 = vmatpush1.msra.mxu0 0.0
        %1947 = vmatprep.subr.mxu0 0.0
        %1948 = vmatpush1.msra.mxu0 0.0
        %1949 = vmatprep.subr.mxu0 0.0
        %1950 = vmatpush1.msra.mxu0 0.0
        %1951 = vmatprep.subr.mxu0 0.0
        %1952 = vmatpush1.msra.mxu0 0.0
        %1953 = vmatprep.subr.mxu0 0.0
        %1954 = vmatpush1.msra.mxu0 0.0
        %1955 = vmatprep.subr.mxu0 0.0
        %1956 = vmatpush1.msra.mxu0 0.0
        %1957 = vmatprep.subr.mxu0 0.0
        %1958 = vmatpush1.msra.mxu0 0.0
        %1959 = vmatprep.subr.mxu0 0.0
        %1960 = vmatpush1.msra.mxu0 0.0
        %1961 = vmatprep.subr.mxu0 0.0
        %1962 = vmatpush1.msra.mxu0 0.0
        %1963 = vmatprep.subr.mxu0 0.0
        %1964 = vmatpush1.msra.mxu0 0.0
        %1965 = vmatprep.subr.mxu0 0.0
        %1966 = vmatpush1.msra.mxu0 0.0
        %1967 = vmatprep.subr.mxu0 0.0
        %1968 = vmatpush1.msra.mxu0 0.0
        %1969 = vmatprep.subr.mxu0 0.0
        %1970 = vmatpush1.msra.mxu0 0.0
        %1971 = vmatprep.subr.mxu0 0.0
        %1972 = vmatpush1.msra.mxu0 0.0
        %1973 = vmatprep.subr.mxu0 0.0
        %1974 = vmatpush1.msra.mxu0 0.0
        %1975 = vmatprep.subr.mxu0 0.0
        %1976 = vmatpush1.msra.mxu0 0.0
        %1977 = vmatprep.subr.mxu0 0.0
        %1978 = vmatpush1.msra.mxu0 0.0
        %1979 = vmatprep.subr.mxu0 0.0
        %1980 = vmatpush1.msra.mxu0 0.0
        %1981 = vmatprep.subr.mxu0 0.0
        %1982 = vmatpush1.msra.mxu0 0.0
        %1983 = vmatprep.subr.mxu0 0.0
        %1984 = vmatpush1.msra.mxu0 0.0
        %1985 = vmatprep.subr.mxu0 0.0
        %1986 = vmatpush1.msra.mxu0 0.0
        %1987 = vmatprep.subr.mxu0 0.0
        %1988 = vmatpush1.msra.mxu0 0.0
        %1989 = vmatprep.subr.mxu0 0.0
        %1990 = vmatpush1.msra.mxu0 0.0
        %1991 = vmatprep.subr.mxu0 0.0
        %1992 = vmatpush1.msra.mxu0 0.0
        %1993 = vmatprep.mubr.f32.mxu0 0.0
        %1994 = vmatmul.mubr.f32.gmra.mrb[0].mxu0 %v1927
        %v1995 = vpop.f32.mrb[0].mxu0
        %v1996 = vadd.f32 %v1923, %v1995
        %v1997 = vpop.f32.mrb[0].mxu0
        %1998 = vdwg.mxu0
        %s1999 = scalar_lea.vmem %s6, 1
        %v2000 = vld [vmem:[%s1999] sm:$0x1]
        %v2002 = vlaneseq
        %v2003 = vshrl.u32 %v2002, 7
        %v2004 = vsub.s32 0, %v2003
        %v2005 = vrot.slane %v2000, %v2004
        %v2007 = vadd.f32 %v1996, %v2005
        %v2008 = vadd.f32 %v2007, %v1428
        %s2009 = scalar_lea.vmem %s7, 2
        %v2010 = vld [vmem:[%s2009] sm:$0x3]
        %v2011 = vsel %vm589, %v2008, 0.0
        %2012 = vadd.xlane.f32.xlu0 %v2011
        %v2013 = vpop.xlane.xlu0 %2012
        %v2014 = vmul.f32 %v2013, %v593
        %v2015 = vsub.f32 %v2008, %v2014
        %v2016 = vmul.f32 %v2015, %v2015
        %v2017 = vsel %vm589, %v2016, 0.0
        %2018 = vadd.xlane.f32.xlu0 %v2017
        %v2019 = vpop.xlane.xlu0 %2018
        %v2020 = vmul.f32 %v2019, %v593
        %v2021 = vadd.f32 %v2020, 1e-12
        %v2022 = vrsqrt.pop %v2021
        %v2023 = vmul.f32 %v2015, %v2022
        %v2024 = vlaneseq
        %v2025 = vshrl.u32 %v2024, 7
        %v2026 = vsub.s32 0, %v2025
        %v2027 = vrot.slane %v2010, %v2026
        %v2028 = vmul.f32 %v2023, %v2027
        %v2029 = vlaneseq
        %v2030 = vshrl.u32 %v2029, 7
        %v2031 = vsub.s32 1, %v2030
        %v2032 = vrot.slane %v2010, %v2031
        %v2033 = vadd.f32 %v2028, %v2032
        %s2034 = scalar_lea.vmem %s8, 32
        %v2035 = vld [vmem:[%s2034] sm:$0xff]
        %v2036 = vld [vmem:[%s2034 + $0x8] sm:$0xff]
        %v2037 = vld [vmem:[%s2034 + $0x10] sm:$0xff]
        %v2038 = vld [vmem:[%s2034 + $0x18] sm:$0xff]
        %s2039 = scalar_lea.vmem %s9, 1
        %v2040 = vld [vmem:[%s2039] sm:$0x1]
        %v2042 = vlaneseq
        %v2043 = vshrl.u32 %v2042, 7
        %v2044 = vsub.s32 0, %v2043
        %v2045 = vrot.slane %v2040, %v2044
        %v2048 = vsel %vm589, %v2033, 0
        %2050 = vmatprep.subr.mxu0 0.0
        %2051 = vmatpush1.msra.mxu0 %v2035
        %2052 = vmatprep.subr.mxu0 0.0
        %2053 = vmatpush1.msra.mxu0 %v2036
        %2054 = vmatprep.subr.mxu0 0.0
        %2055 = vmatpush1.msra.mxu0 %v2037
        %2056 = vmatprep.subr.mxu0 0.0
        %2057 = vmatpush1.msra.mxu0 %v2038
        %2058 = vmatprep.subr.mxu0 0.0
        %2059 = vmatpush1.msra.mxu0 0.0
        %2060 = vmatprep.subr.mxu0 0.0
        %2061 = vmatpush1.msra.mxu0 0.0
        %2062 = vmatprep.subr.mxu0 0.0
        %2063 = vmatpush1.msra.mxu0 0.0
        %2064 = vmatprep.subr.mxu0 0.0
        %2065 = vmatpush1.msra.mxu0 0.0
        %2066 = vmatprep.subr.mxu0 0.0
        %2067 = vmatpush1.msra.mxu0 0.0
        %2068 = vmatprep.subr.mxu0 0.0
        %2069 = vmatpush1.msra.mxu0 0.0
        %2070 = vmatprep.subr.mxu0 0.0
        %2071 = vmatpush1.msra.mxu0 0.0
        %2072 = vmatprep.subr.mxu0 0.0
        %2073 = vmatpush1.msra.mxu0 0.0
        %2074 = vmatprep.subr.mxu0 0.0
        %2075 = vmatpush1.msra.mxu0 0.0
        %2076 = vmatprep.subr.mxu0 0.0
        %2077 = vmatpush1.msra.mxu0 0.0
        %2078 = vmatprep.subr.mxu0 0.0
        %2079 = vmatpush1.msra.mxu0 0.0
        %2080 = vmatprep.subr.mxu0 0.0
        %2081 = vmatpush1.msra.mxu0 0.0
        %2082 = vmatprep.subr.mxu0 0.0
        %2083 = vmatpush1.msra.mxu0 0.0
        %2084 = vmatprep.subr.mxu0 0.0
        %2085 = vmatpush1.msra.mxu0 0.0
        %2086 = vmatprep.subr.mxu0 0.0
        %2087 = vmatpush1.msra.mxu0 0.0
        %2088 = vmatprep.subr.mxu0 0.0
        %2089 = vmatpush1.msra.mxu0 0.0
        %2090 = vmatprep.subr.mxu0 0.0
        %2091 = vmatpush1.msra.mxu0 0.0
        %2092 = vmatprep.subr.mxu0 0.0
        %2093 = vmatpush1.msra.mxu0 0.0
        %2094 = vmatprep.subr.mxu0 0.0
        %2095 = vmatpush1.msra.mxu0 0.0
        %2096 = vmatprep.subr.mxu0 0.0
        %2097 = vmatpush1.msra.mxu0 0.0
        %2098 = vmatprep.subr.mxu0 0.0
        %2099 = vmatpush1.msra.mxu0 0.0
        %2100 = vmatprep.subr.mxu0 0.0
        %2101 = vmatpush1.msra.mxu0 0.0
        %2102 = vmatprep.subr.mxu0 0.0
        %2103 = vmatpush1.msra.mxu0 0.0
        %2104 = vmatprep.subr.mxu0 0.0
        %2105 = vmatpush1.msra.mxu0 0.0
        %2106 = vmatprep.subr.mxu0 0.0
        %2107 = vmatpush1.msra.mxu0 0.0
        %2108 = vmatprep.subr.mxu0 0.0
        %2109 = vmatpush1.msra.mxu0 0.0
        %2110 = vmatprep.subr.mxu0 0.0
        %2111 = vmatpush1.msra.mxu0 0.0
        %2112 = vmatprep.subr.mxu0 0.0
        %2113 = vmatpush1.msra.mxu0 0.0
        %2114 = vmatprep.mubr.f32.mxu0 0.0
        %2115 = vmatmul.mubr.f32.gmra.mrb[0].mxu0 %v2048
        %v2116 = vpop.f32.mrb[0].mxu0
        %v2117 = vadd.f32 %v2045, %v2116
        %v2118 = vpop.f32.mrb[0].mxu0
        %2119 = vdwg.mxu0
        %v2120 = vmul.f32 %v2117, 0.5
        %v2121 = vmul.f32 %v2117, 0.044715
        %v2122 = vmul.f32 %v2121, %v2117
        %v2123 = vmul.f32 %v2122, %v2117
        %v2124 = vadd.f32 %v2117, %v2123
        %v2125 = vmul.f32 %v2124, 0.7978846
        %v2126 = vtanh.pop %v2125
        %v2127 = vadd.f32 %v2126, 1.0
        %v2128 = vmul.f32 %v2120, %v2127
        %s2129 = scalar_lea.vmem %s10, 64
        %v2130 = vld [vmem:[%s2129] sm:$0xff]
        %v2131 = vld [vmem:[%s2129 + $0x8] sm:$0xff]
        %v2132 = vld [vmem:[%s2129 + $0x10] sm:$0xff]
        %v2133 = vld [vmem:[%s2129 + $0x18] sm:$0xff]
        %v2134 = vld [vmem:[%s2129 + $0x20] sm:$0xff]
        %v2135 = vld [vmem:[%s2129 + $0x28] sm:$0xff]
        %v2136 = vld [vmem:[%s2129 + $0x30] sm:$0xff]
        %v2137 = vld [vmem:[%s2129 + $0x38] sm:$0xff]
        %s2138 = scalar_lea.vmem %s11, 1
        %v2139 = vld [vmem:[%s2138] sm:$0x1]
        %v2141 = vlaneseq
        %v2142 = vshrl.u32 %v2141, 7
        %v2143 = vsub.s32 0, %v2142
        %v2144 = vrot.slane %v2139, %v2143
        %v2147 = vsel %vm1330, %v2128, 0
        %2149 = vmatprep.subr.mxu0 0.0
        %2150 = vmatpush1.msra.mxu0 %v2130
        %2151 = vmatprep.subr.mxu0 0.0
        %2152 = vmatpush1.msra.mxu0 %v2131
        %2153 = vmatprep.subr.mxu0 0.0
        %2154 = vmatpush1.msra.mxu0 %v2132
        %2155 = vmatprep.subr.mxu0 0.0
        %2156 = vmatpush1.msra.mxu0 %v2133
        %2157 = vmatprep.subr.mxu0 0.0
        %2158 = vmatpush1.msra.mxu0 %v2134
        %2159 = vmatprep.subr.mxu0 0.0
        %2160 = vmatpush1.msra.mxu0 %v2135
        %2161 = vmatprep.subr.mxu0 0.0
        %2162 = vmatpush1.msra.mxu0 %v2136
        %2163 = vmatprep.subr.mxu0 0.0
        %2164 = vmatpush1.msra.mxu0 %v2137
        %2165 = vmatprep.subr.mxu0 0.0
        %2166 = vmatpush1.msra.mxu0 0.0
        %2167 = vmatprep.subr.mxu0 0.0
        %2168 = vmatpush1.msra.mxu0 0.0
        %2169 = vmatprep.subr.mxu0 0.0
        %2170 = vmatpush1.msra.mxu0 0.0
        %2171 = vmatprep.subr.mxu0 0.0
        %2172 = vmatpush1.msra.mxu0 0.0
        %2173 = vmatprep.subr.mxu0 0.0
        %2174 = vmatpush1.msra.mxu0 0.0
        %2175 = vmatprep.subr.mxu0 0.0
        %2176 = vmatpush1.msra.mxu0 0.0
        %2177 = vmatprep.subr.mxu0 0.0
        %2178 = vmatpush1.msra.mxu0 0.0
        %2179 = vmatprep.subr.mxu0 0.0
        %2180 = vmatpush1.msra.mxu0 0.0
        %2181 = vmatprep.subr.mxu0 0.0
        %2182 = vmatpush1.msra.mxu0 0.0
        %2183 = vmatprep.subr.mxu0 0.0
        %2184 = vmatpush1.msra.mxu0 0.0
        %2185 = vmatprep.subr.mxu0 0.0
        %2186 = vmatpush1.msra.mxu0 0.0
        %2187 = vmatprep.subr.mxu0 0.0
        %2188 = vmatpush1.msra.mxu0 0.0
        %2189 = vmatprep.subr.mxu0 0.0
        %2190 = vmatpush1.msra.mxu0 0.0
        %2191 = vmatprep.subr.mxu0 0.0
        %2192 = vmatpush1.msra.mxu0 0.0
        %2193 = vmatprep.subr.mxu0 0.0
        %2194 = vmatpush1.msra.mxu0 0.0
        %2195 = vmatprep.subr.mxu0 0.0
        %2196 = vmatpush1.msra.mxu0 0.0
        %2197 = vmatprep.subr.mxu0 0.0
        %2198 = vmatpush1.msra.mxu0 0.0
        %2199 = vmatprep.subr.mxu0 0.0
        %2200 = vmatpush1.msra.mxu0 0.0
        %2201 = vmatprep.subr.mxu0 0.0
        %2202 = vmatpush1.msra.mxu0 0.0
        %2203 = vmatprep.subr.mxu0 0.0
        %2204 = vmatpush1.msra.mxu0 0.0
        %2205 = vmatprep.subr.mxu0 0.0
        %2206 = vmatpush1.msra.mxu0 0.0
        %2207 = vmatprep.subr.mxu0 0.0
        %2208 = vmatpush1.msra.mxu0 0.0
        %2209 = vmatprep.subr.mxu0 0.0
        %2210 = vmatpush1.msra.mxu0 0.0
        %2211 = vmatprep.subr.mxu0 0.0
        %2212 = vmatpush1.msra.mxu0 0.0
        %2213 = vmatprep.mubr.f32.mxu0 0.0
        %2214 = vmatmul.mubr.f32.gmra.mrb[0].mxu0 %v2147
        %v2215 = vpop.f32.mrb[0].mxu0
        %v2216 = vadd.f32 %v2144, %v2215
        %v2217 = vpop.f32.mrb[0].mxu0
        %2218 = vdwg.mxu0
        %v2219 = vadd.f32 %v2216, %v2033
        %s2220 = scalar_lea.vmem %s12, 2
        %v2221 = vld [vmem:[%s2220] sm:$0x3]
        %v2222 = vsel %vm589, %v2219, 0.0
        %2223 = vadd.xlane.f32.xlu0 %v2222
        %v2224 = vpop.xlane.xlu0 %2223
        %v2225 = vmul.f32 %v2224, %v593
        %v2226 = vsub.f32 %v2219, %v2225
        %v2227 = vmul.f32 %v2226, %v2226
        %v2228 = vsel %vm589, %v2227, 0.0
        %2229 = vadd.xlane.f32.xlu0 %v2228
        %v2230 = vpop.xlane.xlu0 %2229
        %v2231 = vmul.f32 %v2230, %v593
        %v2232 = vadd.f32 %v2231, 1e-12
        %v2233 = vrsqrt.pop %v2232
        %v2234 = vmul.f32 %v2226, %v2233
        %v2235 = vlaneseq
        %v2236 = vshrl.u32 %v2235, 7
        %v2237 = vsub.s32 0, %v2236
        %v2238 = vrot.slane %v2221, %v2237
        %v2239 = vmul.f32 %v2234, %v2238
        %v2240 = vlaneseq
        %v2241 = vshrl.u32 %v2240, 7
        %v2242 = vsub.s32 1, %v2241
        %v2243 = vrot.slane %v2221, %v2242
        %v2244 = vadd.f32 %v2239, %v2243
        %v2245 = vld [vmem:[%s13] sm:$0xff]
        %v2246 = vld [vmem:[%s13 + $0x8] sm:$0xff]
        %v2247 = vld [vmem:[%s13 + $0x10] sm:$0xff]
        %v2248 = vld [vmem:[%s13 + $0x18] sm:$0xff]
        %v2249 = vld [vmem:[%s14] sm:$0x1]
        %v2251 = vsel %vm589, %v2244, 0
        %2253 = vmatprep.subr.mxu0 0.0
        %2254 = vmatpush1.msra.mxu0 %v2245
        %2255 = vmatprep.subr.mxu0 0.0
        %2256 = vmatpush1.msra.mxu0 %v2246
        %2257 = vmatprep.subr.mxu0 0.0
        %2258 = vmatpush1.msra.mxu0 %v2247
        %2259 = vmatprep.subr.mxu0 0.0
        %2260 = vmatpush1.msra.mxu0 %v2248
        %2261 = vmatprep.subr.mxu0 0.0
        %2262 = vmatpush1.msra.mxu0 0.0
        %2263 = vmatprep.subr.mxu0 0.0
        %2264 = vmatpush1.msra.mxu0 0.0
        %2265 = vmatprep.subr.mxu0 0.0
        %2266 = vmatpush1.msra.mxu0 0.0
        %2267 = vmatprep.subr.mxu0 0.0
        %2268 = vmatpush1.msra.mxu0 0.0
        %2269 = vmatprep.subr.mxu0 0.0
        %2270 = vmatpush1.msra.mxu0 0.0
        %2271 = vmatprep.subr.mxu0 0.0
        %2272 = vmatpush1.msra.mxu0 0.0
        %2273 = vmatprep.subr.mxu0 0.0
        %2274 = vmatpush1.msra.mxu0 0.0
        %2275 = vmatprep.subr.mxu0 0.0
        %2276 = vmatpush1.msra.mxu0 0.0
        %2277 = vmatprep.subr.mxu0 0.0
        %2278 = vmatpush1.msra.mxu0 0.0
        %2279 = vmatprep.subr.mxu0 0.0
        %2280 = vmatpush1.msra.mxu0 0.0
        %2281 = vmatprep.subr.mxu0 0.0
        %2282 = vmatpush1.msra.mxu0 0.0
        %2283 = vmatprep.subr.mxu0 0.0
        %2284 = vmatpush1.msra.mxu0 0.0
        %2285 = vmatprep.subr.mxu0 0.0
        %2286 = vmatpush1.msra.mxu0 0.0
        %2287 = vmatprep.subr.mxu0 0.0
        %2288 = vmatpush1.msra.mxu0 0.0
        %2289 = vmatprep.subr.mxu0 0.0
        %2290 = vmatpush1.msra.mxu0 0.0
        %2291 = vmatprep.subr.mxu0 0.0
        %2292 = vmatpush1.msra.mxu0 0.0
        %2293 = vmatprep.subr.mxu0 0.0
        %2294 = vmatpush1.msra.mxu0 0.0
        %2295 = vmatprep.subr.mxu0 0.0
        %2296 = vmatpush1.msra.mxu0 0.0
        %2297 = vmatprep.subr.mxu0 0.0
        %2298 = vmatpush1.msra.mxu0 0.0
        %2299 = vmatprep.subr.mxu0 0.0
        %2300 = vmatpush1.msra.mxu0 0.0
        %2301 = vmatprep.subr.mxu0 0.0
        %2302 = vmatpush1.msra.mxu0 0.0
        %2303 = vmatprep.subr.mxu0 0.0
        %2304 = vmatpush1.msra.mxu0 0.0
        %2305 = vmatprep.subr.mxu0 0.0
        %2306 = vmatpush1.msra.mxu0 0.0
        %2307 = vmatprep.subr.mxu0 0.0
        %2308 = vmatpush1.msra.mxu0 0.0
        %2309 = vmatprep.subr.mxu0 0.0
        %2310 = vmatpush1.msra.mxu0 0.0
        %2311 = vmatprep.subr.mxu0 0.0
        %2312 = vmatpush1.msra.mxu0 0.0
        %2313 = vmatprep.subr.mxu0 0.0
        %2314 = vmatpush1.msra.mxu0 0.0
        %2315 = vmatprep.subr.mxu0 0.0
        %2316 = vmatpush1.msra.mxu0 0.0
        %2317 = vmatprep.mubr.f32.mxu0 0.0
        %2318 = vmatmul.mubr.f32.gmra.mrb[0].mxu0 %v2251
        %v2319 = vpop.f32.mrb[0].mxu0
        %v2320 = vadd.f32 %v2249, %v2319
        %v2321 = vpop.f32.mrb[0].mxu0
        %2322 = vdwg.mxu0
        %v2323 = vtanh.pop %v2320
        %v2324 = vld [vmem:[%s15] sm:$0xf]
        %v2325 = vsub.f32 %v2323, %v2324
        %v2326 = vadd.f32 %v2324, 1e-05
        %v2327 = vrsqrt.pop %v2326
        %v2329 = vrot.slane %v2327, 1
        %v2331 = vmul.f32 %v2325, %v2329
        %v2333 = vrot.slane %v2324, 2
        %v2335 = vmul.f32 %v2331, %v2333
        %v2336 = vrot.slane %v2324, 3
        %v2338 = vadd.f32 %v2335, %v2336
        %v2339 = vld [vmem:[%s16] sm:$0xff]
        %v2340 = vld [vmem:[%s16 + $0x8] sm:$0xff]
        %v2341 = vld [vmem:[%s16 + $0x10] sm:$0xff]
        %v2342 = vld [vmem:[%s16 + $0x18] sm:$0xff]
        %v2343 = vld [vmem:[%s17] sm:$0x1]
        %v2345 = vsel %vm589, %v2338, 0
        %2347 = vmatprep.subr.mxu0 0.0
        %2348 = vmatpush1.msra.mxu0 %v2339
        %2349 = vmatprep.subr.mxu0 0.0
        %2350 = vmatpush1.msra.mxu0 %v2340
        %2351 = vmatprep.subr.mxu0 0.0
        %2352 = vmatpush1.msra.mxu0 %v2341
        %2353 = vmatprep.subr.mxu0 0.0
        %2354 = vmatpush1.msra.mxu0 %v2342
        %2355 = vmatprep.subr.mxu0 0.0
        %2356 = vmatpush1.msra.mxu0 0.0
        %2357 = vmatprep.subr.mxu0 0.0
        %2358 = vmatpush1.msra.mxu0 0.0
        %2359 = vmatprep.subr.mxu0 0.0
        %2360 = vmatpush1.msra.mxu0 0.0
        %2361 = vmatprep.subr.mxu0 0.0
        %2362 = vmatpush1.msra.mxu0 0.0
        %2363 = vmatprep.subr.mxu0 0.0
        %2364 = vmatpush1.msra.mxu0 0.0
        %2365 = vmatprep.subr.mxu0 0.0
        %2366 = vmatpush1.msra.mxu0 0.0
        %2367 = vmatprep.subr.mxu0 0.0
        %2368 = vmatpush1.msra.mxu0 0.0
        %2369 = vmatprep.subr.mxu0 0.0
        %2370 = vmatpush1.msra.mxu0 0.0
        %2371 = vmatprep.subr.mxu0 0.0
        %2372 = vmatpush1.msra.mxu0 0.0
        %2373 = vmatprep.subr.mxu0 0.0
        %2374 = vmatpush1.msra.mxu0 0.0
        %2375 = vmatprep.subr.mxu0 0.0
        %2376 = vmatpush1.msra.mxu0 0.0
        %2377 = vmatprep.subr.mxu0 0.0
        %2378 = vmatpush1.msra.mxu0 0.0
        %2379 = vmatprep.subr.mxu0 0.0
        %2380 = vmatpush1.msra.mxu0 0.0
        %2381 = vmatprep.subr.mxu0 0.0
        %2382 = vmatpush1.msra.mxu0 0.0
        %2383 = vmatprep.subr.mxu0 0.0
        %2384 = vmatpush1.msra.mxu0 0.0
        %2385 = vmatprep.subr.mxu0 0.0
        %2386 = vmatpush1.msra.mxu0 0.0
        %2387 = vmatprep.subr.mxu0 0.0
        %2388 = vmatpush1.msra.mxu0 0.0
        %2389 = vmatprep.subr.mxu0 0.0
        %2390 = vmatpush1.msra.mxu0 0.0
        %2391 = vmatprep.subr.mxu0 0.0
        %2392 = vmatpush1.msra.mxu0 0.0
        %2393 = vmatprep.subr.mxu0 0.0
        %2394 = vmatpush1.msra.mxu0 0.0
        %2395 = vmatprep.subr.mxu0 0.0
        %2396 = vmatpush1.msra.mxu0 0.0
        %2397 = vmatprep.subr.mxu0 0.0
        %2398 = vmatpush1.msra.mxu0 0.0
        %2399 = vmatprep.subr.mxu0 0.0
        %2400 = vmatpush1.msra.mxu0 0.0
        %2401 = vmatprep.subr.mxu0 0.0
        %2402 = vmatpush1.msra.mxu0 0.0
        %2403 = vmatprep.subr.mxu0 0.0
        %2404 = vmatpush1.msra.mxu0 0.0
        %2405 = vmatprep.subr.mxu0 0.0
        %2406 = vmatpush1.msra.mxu0 0.0
        %2407 = vmatprep.subr.mxu0 0.0
        %2408 = vmatpush1.msra.mxu0 0.0
        %2409 = vmatprep.subr.mxu0 0.0
        %2410 = vmatpush1.msra.mxu0 0.0
        %2411 = vmatprep.mubr.f32.mxu0 0.0
        %2412 = vmatmul.mubr.f32.gmra.mrb[0].mxu0 %v2345
        %v2413 = vpop.f32.mrb[0].mxu0
        %v2414 = vadd.f32 %v2343, %v2413
        %v2415 = vpop.f32.mrb[0].mxu0
        %2416 = vdwg.mxu0
        %2417 = vst [vmem:[%s576] sm:$0x1] %v2414
        %s2418 = sand.u32 %s428, 1
        %s2419 = scalar_lea.sflag [#allocation3], %s2418
        %s2420 = sand.u32 %s428, 1
        %s2421 = scalar_lea.vmem [#allocation2], %s2420
        // Predicated region
        $region93: #{model_forward.1} parent=91 // pred_check
          %p2422 = pneg %p438
        $region94: #{model_forward.1} parent=91 // pred_check_branch
          %2424 = sbr.rel (%p2422) target = $region96
        $region95: #{model_forward.1} parent=91 // pred_region
          %s2426 = ssub.s32 16, 16
          %2427 = vsyncadd %s2419, %s2426
          %s2428 = smul.addr %s32, 16
          %s2429 = scalar_lea.hbm %s18, %s2428
          %s2431 = sshll.u32 %s2421, 4
          %s2432 = int_to_ptr.vmem [resolvable:$true] %s2431
          %2434 = dma.vmem_to_hbm [thread:$0]  %s2432, 16, %s2429, %s2419
        $region96: #{model_forward.1} parent=91 // pred_fallthru
          _
      $region92: #{model_forward.1} parent=5 // pred_fallthru
        _
      %p2435 = scmp.le.s32.totalorder 2, %s27
      // Predicated region
      $region97: #{model_forward.1} parent=5 // pred_check
        %p2436 = pneg %p2435
      $region98: #{model_forward.1} parent=5 // pred_check_branch
        %2438 = sbr.rel (%p2436) target = $region100
      $region99: #{model_forward.1} parent=5 // pred_region
        %s2439 = ssub.s32 %s27, 2
        // Predicated region
        $region101: #{model_forward.1} parent=99 // pred_check
          %p2440 = pneg %p444
        $region102: #{model_forward.1} parent=99 // pred_check_branch
          %2442 = sbr.rel (%p2440) target = $region104
        $region103: #{model_forward.1} parent=99 // pred_region
          %s2443 = sand.u32 %s429, 1
          %s2444 = scalar_lea.sflag [#allocation3], %s2443
          %s2445 = sand.u32 %s429, 1
          %s2446 = scalar_lea.vmem [#allocation2], %s2445
          %2447 = dma.done %s2444, 16
        $region104: #{model_forward.1} parent=99 // pred_fallthru
          _
      $region100: #{model_forward.1} parent=5 // pred_fallthru
        _
    $region6: #{model_forward.1} parent=1 // loop_footer
      %s31 = sadd.s32 1, %s27
    $region7: #{model_forward.1} parent=1 // loop_footer_branch
      %26 = sbr.rel target = $region3
    $region8: #{model_forward.1} parent=1 // loop_exit
      _
    %2448 = vsyncpa [#allocation3], 1
    %s2449 = scalar_lea.sflag [#allocation3], 1
    %2450 = vsyncpa %s2449, 1

</llo_original>
